<compile_context>
chip_gen: v7x
topology: tpu7x:2x2x1
jax: 0.10.0
libtpu: 0.0.40
codegen_flags: <defaults>
</compile_context>

<pallas_src>
import functools
import types

import jax
import jax.numpy as jnp
from jax import lax
from jax.experimental import pallas as pl
from jax.experimental.pallas import tpu as pltpu

_LANE = 128
_VMEM = pl.BlockSpec(memory_space=pltpu.MemorySpace.VMEM)


# ----------------------------- Pallas kernels -----------------------------

def _mse_kernel(a_ref, b_ref, o_ref, *, inv_numel):
    # a_ref, b_ref: (R, 128) f32 lane-dense slabs; o_ref: (1, 1) f32.
    d = a_ref[...] - b_ref[...]
    row = jnp.sum(d * d, axis=1, keepdims=True)        # lane reduce -> (R, 1)
    o_ref[...] = jnp.sum(row, axis=0, keepdims=True) * inv_numel


def _conv_lpips_kernel(p_ref, w_ref, b_ref, lw_ref, feat_ref, dist_ref, *,
                       half, inv_hw, eps):
    # p_ref : (M, Kp)  bf16 im2col patches; rows [0, half) are the gen image,
    #                  rows [half, M) the ref image (stacked along batch).
    # w_ref : (Kp, 128) bf16 conv weights (zero rows/cols in padding).
    # b_ref : (1, 128)  f32 bias (zeros in padded channels).
    # lw_ref: (1, 128)  f32 non-negative LPIPS "lin" weights (zeros in pad).
    # feat_ref: (M, 128) bf16 lane-dense features for the next layer.
    # dist_ref: (1, 1)   f32 LPIPS-layer distance (summed over batch).
    acc = jnp.dot(p_ref[...], w_ref[...],
                  preferred_element_type=jnp.float32)          # MXU, f32 acc
    f = jnp.maximum(acc + b_ref[...], 0.0)                     # f32 epilogue
    feat_ref[...] = f.astype(feat_ref.dtype)

    f0 = f[:half]                                              # gen features
    f1 = f[half:]                                              # ref features
    # Padded channels are exactly 0 (zero weight cols + zero bias), so they
    # add nothing to sum(f^2) or to the weighted diff.
    n0 = f0 * lax.rsqrt(jnp.sum(f0 * f0, axis=1, keepdims=True) + eps)
    n1 = f1 * lax.rsqrt(jnp.sum(f1 * f1, axis=1, keepdims=True) + eps)
    d = (n0 - n1) * (n0 - n1)
    wd = jnp.sum(d * lw_ref[...], axis=1, keepdims=True)       # (half, 1)
    dist_ref[...] = jnp.sum(wd, axis=0, keepdims=True) * inv_hw


# ----------------------------- helpers -------------------------------------

def _round_up(x, m):
    return (x + m - 1) // m * m


def _im2col(x, ksize, stride):
    """x: (B, H, W, C) NHWC -> patches (B*Ho*Wo, ksize*ksize*C), tap-major."""
    B, H, W, C = x.shape
    pad = ksize // 2
    xp = jnp.pad(x, ((0, 0), (pad, pad), (pad, pad), (0, 0)))
    Ho = (H + 2 * pad - ksize) // stride + 1
    Wo = (W + 2 * pad - ksize) // stride + 1
    cols = []
    for dy in range(ksize):
        for dx in range(ksize):
            cols.append(xp[:, dy:dy + stride * Ho:stride,
                           dx:dx + stride * Wo:stride, :])
    patches = jnp.stack(cols, axis=3)                  # (B, Ho, Wo, K*K, C)
    return patches.reshape(B * Ho * Wo, ksize * ksize * C), (B, Ho, Wo)


# ----------------------------- wrappers ------------------------------------

def mse_loss(a, b):
    """torch.nn.MSELoss() equivalent: mean((a-b)^2) over all elements."""
    n = a.size
    af = a.reshape(-1).astype(jnp.float32)
    bf = b.reshape(-1).astype(jnp.float32)
    pad = (-n) % _LANE
    if pad:  # identical zero padding on both sides -> diff contributes 0
        af = jnp.pad(af, (0, pad))
        bf = jnp.pad(bf, (0, pad))
    af = af.reshape(-1, _LANE)
    bf = bf.reshape(-1, _LANE)
    rpad = (-af.shape[0]) % 8
    if rpad:
        af = jnp.pad(af, ((0, rpad), (0, 0)))
        bf = jnp.pad(bf, ((0, rpad), (0, 0)))
    out = pl.pallas_call(
        functools.partial(_mse_kernel, inv_numel=1.0 / float(n)),
        out_shape=jax.ShapeDtypeStruct((1, 1), jnp.float32),
        in_specs=[_VMEM, _VMEM],
        out_specs=_VMEM,
    )(af, bf)
    return out[0, 0]


def conv_lpips_layer(x, w, b, lw, stride):
    """One fused synthetic-VGG layer + LPIPS distance for gen/ref stacked input.

    x : (2B, H, W, Cin) NHWC activations (gen in [:B], ref in [B:]), Cin real.
    w : (Kp, 128) bf16 weights, Kp a multiple of 128, Kp >= 9*Cin.
    Returns (features (2B, Ho, Wo, 128) bf16, layer distance scalar f32).
    """
    patches, (n2b, Ho, Wo) = _im2col(x, 3, stride)
    k = patches.shape[1]
    kp = w.shape[0]
    if kp != k:
        patches = jnp.pad(patches, ((0, 0), (0, kp - k)))
    patches = patches.astype(jnp.bfloat16)
    m = patches.shape[0]
    half = m // 2   # 2B*Ho*Wo is a multiple of 16 for the shapes used here
    feat, dist = pl.pallas_call(
        functools.partial(_conv_lpips_kernel, half=half,
                          inv_hw=1.0 / float(Ho * Wo), eps=1e-10),
        out_shape=(jax.ShapeDtypeStruct((m, _LANE), jnp.bfloat16),
                   jax.ShapeDtypeStruct((1, 1), jnp.float32)),
        in_specs=[_VMEM, _VMEM, _VMEM, _VMEM],
        out_specs=(_VMEM, _VMEM),
    )(patches, w, b, lw)
    return feat.reshape(n2b, Ho, Wo, _LANE), dist[0, 0]


class PerceptualLossPallas:
    """Tiny LPIPS-like perceptual loss (synthetic 'VGG' + 'lin' weights)."""

    # LPIPS ScalingLayer constants
    SHIFT = jnp.array([-0.030, -0.088, -0.188], dtype=jnp.float32)
    SCALE = jnp.array([0.458, 0.448, 0.450], dtype=jnp.float32)

    # (cin_real, cout_real, stride) per layer: 3->16 (s1), 16->32 (s2), 32->64 (s2)
    LAYERS = [(3, 16, 1), (16, 32, 2), (32, 64, 2)]

    def __init__(self, key):
        ks = jax.random.split(key, 3 * len(self.LAYERS))
        self.ws, self.bs, self.lws = [], [], []
        for i, (cin, cout, _) in enumerate(self.LAYERS):
            # Conv weights contract only over the *real* input channels; K is
            # then zero-padded to the next multiple of 128 for MXU alignment.
            w = jnp.zeros((3, 3, cin, _LANE), jnp.float32)
            w = w.at[:, :, :, :cout].set(
                (jax.random.normal(ks[3 * i], (3, 3, cin, cout)) * 0.1)
                .astype(jnp.float32))
            w = w.reshape(9 * cin, _LANE)
            kp = _round_up(w.shape[0], _LANE)
            if kp != w.shape[0]:
                w = jnp.pad(w, ((0, kp - w.shape[0]), (0, 0)))
            self.ws.append(w.astype(jnp.bfloat16))

            bias = jnp.zeros((1, _LANE), jnp.float32)
            bias = bias.at[:, :cout].set(
                (jax.random.normal(ks[3 * i + 1], (1, cout)) * 0.01)
                .astype(jnp.float32))
            self.bs.append(bias)

            lw = jnp.zeros((1, _LANE), jnp.float32)
            lw = lw.at[:, :cout].set(
                (jnp.abs(jax.random.normal(ks[3 * i + 2], (1, cout))) * 0.1)
                .astype(jnp.float32))
            self.lws.append(lw)

    def __call__(self, gen_im, ref_im):
        # NCHW -> LPIPS scaling -> NHWC; gen and ref stacked along batch so
        # each conv weight is DMA'd once and both feature sets stay in VMEM
        # for the fused LPIPS epilogue.
        x = jnp.concatenate([gen_im, ref_im], axis=0).astype(jnp.float32)
        x = (x - self.SHIFT[None, :, None, None]) / self.SCALE[None, :, None, None]
        x = jnp.transpose(x, (0, 2, 3, 1))            # NCHW -> NHWC
        total = jnp.float32(0.0)
        for w, b, lw, (_, cout, stride) in zip(self.ws, self.bs, self.lws,
                                               self.LAYERS):
            feat, dist = conv_lpips_layer(x, w, b, lw, stride)
            total = total + dist
            # Next layer only consumes the real output channels (drop lane pad)
            x = feat[..., :cout]
        return total                                   # == .sum() over batch


class LossBuilderPallas:
    """JAX/Pallas equivalent of the PyTorch LossBuilder.forward."""

    def __init__(self, opt, key):
        self.opt = opt
        self.parsed_loss = [[opt.l2_lambda, 'l2'], [opt.percept_lambda, 'percep']]
        self.percept = PerceptualLossPallas(key)
        self._jit_forward = jax.jit(self._forward)

    def _loss_l2(self, gen_im, ref_im):
        return mse_loss(gen_im, ref_im)

    def _loss_lpips(self, gen_im, ref_im):
        return self.percept(gen_im, ref_im)

    def _forward(self, ref_im_H, ref_im_L, gen_im_H, gen_im_L):
        loss = jnp.float32(0.0)
        loss_fun_dict = {'l2': self._loss_l2, 'percep': self._loss_lpips}
        losses = {}
        for weight, loss_type in self.parsed_loss:
            if loss_type == 'l2':
                var_dict = {'gen_im': gen_im_H, 'ref_im': ref_im_H}
            else:  # 'percep'
                var_dict = {'gen_im': gen_im_L, 'ref_im': ref_im_L}
            tmp_loss = loss_fun_dict[loss_type](**var_dict)
            losses[loss_type] = tmp_loss
            loss = loss + weight * tmp_loss
        return loss, losses

    def __call__(self, ref_im_H, ref_im_L, gen_im_H, gen_im_L):
        return self._jit_forward(ref_im_H, ref_im_L, gen_im_H, gen_im_L)


# ----------------------------- main ----------------------------------------

if __name__ == "__main__":
    key = jax.random.PRNGKey(0)
    k_hr, k_hg, k_lr, k_lg, k_params = jax.random.split(key, 5)

    # NCHW like the PyTorch module: HR 32x32, LR 16x16, batch 2, RGB.
    ref_im_H = jax.random.uniform(k_hr, (2, 3, 32, 32), jnp.float32)
    gen_im_H = jax.random.uniform(k_hg, (2, 3, 32, 32), jnp.float32)
    ref_im_L = jax.random.uniform(k_lr, (2, 3, 16, 16), jnp.float32)
    gen_im_L = jax.random.uniform(k_lg, (2, 3, 16, 16), jnp.float32)

    opt = types.SimpleNamespace(l2_lambda=1.0, percept_lambda=0.05, device='tpu')
    builder = LossBuilderPallas(opt, k_params)

    loss, losses = builder(ref_im_H, ref_im_L, gen_im_H, gen_im_L)
    jax.block_until_ready(loss)
    jax.block_until_ready(losses['l2'])
    jax.block_until_ready(losses['percep'])
    print("KERNEL_OK")
</pallas_src>

<mosaic_0001>
module attributes {stable_mosaic.version = 11 : i64} {
  func.func @_conv_lpips_kernel(%arg0: memref<1024x128xbf16, #tpu.memory_space<vmem>>, %arg1: memref<128x128xbf16, #tpu.memory_space<vmem>>, %arg2: memref<1x128xf32, #tpu.memory_space<vmem>>, %arg3: memref<1x128xf32, #tpu.memory_space<vmem>>, %arg4: memref<1024x128xbf16, #tpu.memory_space<vmem>>, %arg5: memref<1x1xf32, #tpu.memory_space<vmem>>) attributes {dimension_semantics = [], scalar_prefetch = 0 : i64, scratch_operands = 0 : i64, tpu.core_type = #tpu.core_type<tc>} {
    %c0 = arith.constant 0 : index
    %c0_0 = arith.constant 0 : index
    %0 = vector.load %arg0[%c0, %c0_0] : memref<1024x128xbf16, #tpu.memory_space<vmem>>, vector<1024x128xbf16>
    %c0_1 = arith.constant 0 : index
    %c0_2 = arith.constant 0 : index
    %1 = vector.load %arg1[%c0_1, %c0_2] : memref<128x128xbf16, #tpu.memory_space<vmem>>, vector<128x128xbf16>
    %cst = arith.constant dense<0.000000e+00> : vector<1024x128xf32>
    %2 = tpu.matmul %0, %1, %cst {dimension_numbers = #tpu.dot_dimension_numbers<[1], [0], [0], [1], [0, 0, 1, 1], [], []>} : vector<1024x128xbf16>, vector<128x128xbf16>, vector<1024x128xf32> -> vector<1024x128xf32>
    %c0_3 = arith.constant 0 : index
    %c0_4 = arith.constant 0 : index
    %3 = vector.load %arg2[%c0_3, %c0_4] : memref<1x128xf32, #tpu.memory_space<vmem>>, vector<1x128xf32>
    %4 = vector.broadcast %3 : vector<1x128xf32> to vector<1024x128xf32>
    %5 = arith.addf %2, %4 : vector<1024x128xf32>
    %cst_5 = arith.constant 0.000000e+00 : f32
    %6 = vector.broadcast %cst_5 : f32 to vector<1024x128xf32>
    %7 = arith.maximumf %5, %6 : vector<1024x128xf32>
    %8 = arith.truncf %7 : vector<1024x128xf32> to vector<1024x128xbf16>
    %c0_6 = arith.constant 0 : index
    %c0_7 = arith.constant 0 : index
    %9 = vector.load %arg4[%c0_6, %c0_7] : memref<1024x128xbf16, #tpu.memory_space<vmem>>, vector<1024x128xbf16>
    tpu.vector_store %arg4[%c0_6, %c0_7], %8 {strides = array<i32>} : memref<1024x128xbf16, #tpu.memory_space<vmem>>, vector<1024x128xbf16>,
    %10 = vector.extract_strided_slice %7 {offsets = [0, 0], sizes = [512, 128], strides = [1, 1]} : vector<1024x128xf32> to vector<512x128xf32>
    %11 = vector.extract_strided_slice %7 {offsets = [512, 0], sizes = [512, 128], strides = [1, 1]} : vector<1024x128xf32> to vector<512x128xf32>
    %12 = arith.mulf %10, %10 : vector<512x128xf32>
    %cst_8 = arith.constant dense<0.000000e+00> : vector<512xf32>
    %13 = vector.multi_reduction <add>, %12, %cst_8 [1] : vector<512x128xf32> to vector<512xf32>
    %14 = vector.shape_cast %13 : vector<512xf32> to vector<512x1xf32>
    %cst_9 = arith.constant 1.000000e-10 : f32
    %15 = vector.broadcast %cst_9 : f32 to vector<512x1xf32>
    %16 = arith.addf %14, %15 : vector<512x1xf32>
    %17 = math.rsqrt %16 : vector<512x1xf32>
    %18 = vector.broadcast %17 : vector<512x1xf32> to vector<512x128xf32>
    %19 = arith.mulf %10, %18 : vector<512x128xf32>
    %20 = arith.mulf %11, %11 : vector<512x128xf32>
    %cst_10 = arith.constant dense<0.000000e+00> : vector<512xf32>
    %21 = vector.multi_reduction <add>, %20, %cst_10 [1] : vector<512x128xf32> to vector<512xf32>
    %22 = vector.shape_cast %21 : vector<512xf32> to vector<512x1xf32>
    %cst_11 = arith.constant 1.000000e-10 : f32
    %23 = vector.broadcast %cst_11 : f32 to vector<512x1xf32>
    %24 = arith.addf %22, %23 : vector<512x1xf32>
    %25 = math.rsqrt %24 : vector<512x1xf32>
    %26 = vector.broadcast %25 : vector<512x1xf32> to vector<512x128xf32>
    %27 = arith.mulf %11, %26 : vector<512x128xf32>
    %28 = arith.subf %19, %27 : vector<512x128xf32>
    %29 = arith.subf %19, %27 : vector<512x128xf32>
    %30 = arith.mulf %28, %29 : vector<512x128xf32>
    %c0_12 = arith.constant 0 : index
    %c0_13 = arith.constant 0 : index
    %31 = vector.load %arg3[%c0_12, %c0_13] : memref<1x128xf32, #tpu.memory_space<vmem>>, vector<1x128xf32>
    %32 = vector.broadcast %31 : vector<1x128xf32> to vector<512x128xf32>
    %33 = arith.mulf %30, %32 : vector<512x128xf32>
    %cst_14 = arith.constant dense<0.000000e+00> : vector<512xf32>
    %34 = vector.multi_reduction <add>, %33, %cst_14 [1] : vector<512x128xf32> to vector<512xf32>
    %35 = vector.shape_cast %34 : vector<512xf32> to vector<512x1xf32>
    %cst_15 = arith.constant dense<0.000000e+00> : vector<1xf32>
    %36 = vector.multi_reduction <add>, %35, %cst_15 [0] : vector<512x1xf32> to vector<1xf32>
    %37 = vector.shape_cast %36 : vector<1xf32> to vector<1x1xf32>
    %cst_16 = arith.constant 3.906250e-03 : f32
    %38 = vector.broadcast %cst_16 : f32 to vector<1x1xf32>
    %39 = arith.mulf %37, %38 : vector<1x1xf32>
    %c0_17 = arith.constant 0 : index
    %c0_18 = arith.constant 0 : index
    %40 = vector.load %arg5[%c0_17, %c0_18] : memref<1x1xf32, #tpu.memory_space<vmem>>, vector<1x1xf32>
    tpu.vector_store %arg5[%c0_17, %c0_18], %39 {strides = array<i32>} : memref<1x1xf32, #tpu.memory_space<vmem>>, vector<1x1xf32>,
    return
  }
}

module attributes {stable_mosaic.version = 11 : i64} {
  func.func @_conv_lpips_kernel(%arg0: memref<256x256xbf16, #tpu.memory_space<vmem>>, %arg1: memref<256x128xbf16, #tpu.memory_space<vmem>>, %arg2: memref<1x128xf32, #tpu.memory_space<vmem>>, %arg3: memref<1x128xf32, #tpu.memory_space<vmem>>, %arg4: memref<256x128xbf16, #tpu.memory_space<vmem>>, %arg5: memref<1x1xf32, #tpu.memory_space<vmem>>) attributes {dimension_semantics = [], scalar_prefetch = 0 : i64, scratch_operands = 0 : i64, tpu.core_type = #tpu.core_type<tc>} {
    %c0 = arith.constant 0 : index
    %c0_0 = arith.constant 0 : index
    %0 = vector.load %arg0[%c0, %c0_0] : memref<256x256xbf16, #tpu.memory_space<vmem>>, vector<256x256xbf16>
    %c0_1 = arith.constant 0 : index
    %c0_2 = arith.constant 0 : index
    %1 = vector.load %arg1[%c0_1, %c0_2] : memref<256x128xbf16, #tpu.memory_space<vmem>>, vector<256x128xbf16>
    %cst = arith.constant dense<0.000000e+00> : vector<256x128xf32>
    %2 = tpu.matmul %0, %1, %cst {dimension_numbers = #tpu.dot_dimension_numbers<[1], [0], [0], [1], [0, 0, 1, 1], [], []>} : vector<256x256xbf16>, vector<256x128xbf16>, vector<256x128xf32> -> vector<256x128xf32>
    %c0_3 = arith.constant 0 : index
    %c0_4 = arith.constant 0 : index
    %3 = vector.load %arg2[%c0_3, %c0_4] : memref<1x128xf32, #tpu.memory_space<vmem>>, vector<1x128xf32>
    %4 = vector.broadcast %3 : vector<1x128xf32> to vector<256x128xf32>
    %5 = arith.addf %2, %4 : vector<256x128xf32>
    %cst_5 = arith.constant 0.000000e+00 : f32
    %6 = vector.broadcast %cst_5 : f32 to vector<256x128xf32>
    %7 = arith.maximumf %5, %6 : vector<256x128xf32>
    %8 = arith.truncf %7 : vector<256x128xf32> to vector<256x128xbf16>
    %c0_6 = arith.constant 0 : index
    %c0_7 = arith.constant 0 : index
    %9 = vector.load %arg4[%c0_6, %c0_7] : memref<256x128xbf16, #tpu.memory_space<vmem>>, vector<256x128xbf16>
    tpu.vector_store %arg4[%c0_6, %c0_7], %8 {strides = array<i32>} : memref<256x128xbf16, #tpu.memory_space<vmem>>, vector<256x128xbf16>,
    %10 = vector.extract_strided_slice %7 {offsets = [0, 0], sizes = [128, 128], strides = [1, 1]} : vector<256x128xf32> to vector<128x128xf32>
    %11 = vector.extract_strided_slice %7 {offsets = [128, 0], sizes = [128, 128], strides = [1, 1]} : vector<256x128xf32> to vector<128x128xf32>
    %12 = arith.mulf %10, %10 : vector<128x128xf32>
    %cst_8 = arith.constant dense<0.000000e+00> : vector<128xf32>
    %13 = vector.multi_reduction <add>, %12, %cst_8 [1] : vector<128x128xf32> to vector<128xf32>
    %14 = vector.shape_cast %13 : vector<128xf32> to vector<128x1xf32>
    %cst_9 = arith.constant 1.000000e-10 : f32
    %15 = vector.broadcast %cst_9 : f32 to vector<128x1xf32>
    %16 = arith.addf %14, %15 : vector<128x1xf32>
    %17 = math.rsqrt %16 : vector<128x1xf32>
    %18 = vector.broadcast %17 : vector<128x1xf32> to vector<128x128xf32>
    %19 = arith.mulf %10, %18 : vector<128x128xf32>
    %20 = arith.mulf %11, %11 : vector<128x128xf32>
    %cst_10 = arith.constant dense<0.000000e+00> : vector<128xf32>
    %21 = vector.multi_reduction <add>, %20, %cst_10 [1] : vector<128x128xf32> to vector<128xf32>
    %22 = vector.shape_cast %21 : vector<128xf32> to vector<128x1xf32>
    %cst_11 = arith.constant 1.000000e-10 : f32
    %23 = vector.broadcast %cst_11 : f32 to vector<128x1xf32>
    %24 = arith.addf %22, %23 : vector<128x1xf32>
    %25 = math.rsqrt %24 : vector<128x1xf32>
    %26 = vector.broadcast %25 : vector<128x1xf32> to vector<128x128xf32>
    %27 = arith.mulf %11, %26 : vector<128x128xf32>
    %28 = arith.subf %19, %27 : vector<128x128xf32>
    %29 = arith.subf %19, %27 : vector<128x128xf32>
    %30 = arith.mulf %28, %29 : vector<128x128xf32>
    %c0_12 = arith.constant 0 : index
    %c0_13 = arith.constant 0 : index
    %31 = vector.load %arg3[%c0_12, %c0_13] : memref<1x128xf32, #tpu.memory_space<vmem>>, vector<1x128xf32>
    %32 = vector.broadcast %31 : vector<1x128xf32> to vector<128x128xf32>
    %33 = arith.mulf %30, %32 : vector<128x128xf32>
    %cst_14 = arith.constant dense<0.000000e+00> : vector<128xf32>
    %34 = vector.multi_reduction <add>, %33, %cst_14 [1] : vector<128x128xf32> to vector<128xf32>
    %35 = vector.shape_cast %34 : vector<128xf32> to vector<128x1xf32>
    %cst_15 = arith.constant dense<0.000000e+00> : vector<1xf32>
    %36 = vector.multi_reduction <add>, %35, %cst_15 [0] : vector<128x1xf32> to vector<1xf32>
    %37 = vector.shape_cast %36 : vector<1xf32> to vector<1x1xf32>
    %cst_16 = arith.constant 1.562500e-02 : f32
    %38 = vector.broadcast %cst_16 : f32 to vector<1x1xf32>
    %39 = arith.mulf %37, %38 : vector<1x1xf32>
    %c0_17 = arith.constant 0 : index
    %c0_18 = arith.constant 0 : index
    %40 = vector.load %arg5[%c0_17, %c0_18] : memref<1x1xf32, #tpu.memory_space<vmem>>, vector<1x1xf32>
    tpu.vector_store %arg5[%c0_17, %c0_18], %39 {strides = array<i32>} : memref<1x1xf32, #tpu.memory_space<vmem>>, vector<1x1xf32>,
    return
  }
}

module attributes {stable_mosaic.version = 11 : i64} {
  func.func @_conv_lpips_kernel(%arg0: memref<64x384xbf16, #tpu.memory_space<vmem>>, %arg1: memref<384x128xbf16, #tpu.memory_space<vmem>>, %arg2: memref<1x128xf32, #tpu.memory_space<vmem>>, %arg3: memref<1x128xf32, #tpu.memory_space<vmem>>, %arg4: memref<64x128xbf16, #tpu.memory_space<vmem>>, %arg5: memref<1x1xf32, #tpu.memory_space<vmem>>) attributes {dimension_semantics = [], scalar_prefetch = 0 : i64, scratch_operands = 0 : i64, tpu.core_type = #tpu.core_type<tc>} {
    %c0 = arith.constant 0 : index
    %c0_0 = arith.constant 0 : index
    %0 = vector.load %arg0[%c0, %c0_0] : memref<64x384xbf16, #tpu.memory_space<vmem>>, vector<64x384xbf16>
    %c0_1 = arith.constant 0 : index
    %c0_2 = arith.constant 0 : index
    %1 = vector.load %arg1[%c0_1, %c0_2] : memref<384x128xbf16, #tpu.memory_space<vmem>>, vector<384x128xbf16>
    %cst = arith.constant dense<0.000000e+00> : vector<64x128xf32>
    %2 = tpu.matmul %0, %1, %cst {dimension_numbers = #tpu.dot_dimension_numbers<[1], [0], [0], [1], [0, 0, 1, 1], [], []>} : vector<64x384xbf16>, vector<384x128xbf16>, vector<64x128xf32> -> vector<64x128xf32>
    %c0_3 = arith.constant 0 : index
    %c0_4 = arith.constant 0 : index
    %3 = vector.load %arg2[%c0_3, %c0_4] : memref<1x128xf32, #tpu.memory_space<vmem>>, vector<1x128xf32>
    %4 = vector.broadcast %3 : vector<1x128xf32> to vector<64x128xf32>
    %5 = arith.addf %2, %4 : vector<64x128xf32>
    %cst_5 = arith.constant 0.000000e+00 : f32
    %6 = vector.broadcast %cst_5 : f32 to vector<64x128xf32>
    %7 = arith.maximumf %5, %6 : vector<64x128xf32>
    %8 = arith.truncf %7 : vector<64x128xf32> to vector<64x128xbf16>
    %c0_6 = arith.constant 0 : index
    %c0_7 = arith.constant 0 : index
    %9 = vector.load %arg4[%c0_6, %c0_7] : memref<64x128xbf16, #tpu.memory_space<vmem>>, vector<64x128xbf16>
    tpu.vector_store %arg4[%c0_6, %c0_7], %8 {strides = array<i32>} : memref<64x128xbf16, #tpu.memory_space<vmem>>, vector<64x128xbf16>,
    %10 = vector.extract_strided_slice %7 {offsets = [0, 0], sizes = [32, 128], strides = [1, 1]} : vector<64x128xf32> to vector<32x128xf32>
    %11 = vector.extract_strided_slice %7 {offsets = [32, 0], sizes = [32, 128], strides = [1, 1]} : vector<64x128xf32> to vector<32x128xf32>
    %12 = arith.mulf %10, %10 : vector<32x128xf32>
    %cst_8 = arith.constant dense<0.000000e+00> : vector<32xf32>
    %13 = vector.multi_reduction <add>, %12, %cst_8 [1] : vector<32x128xf32> to vector<32xf32>
    %14 = vector.shape_cast %13 : vector<32xf32> to vector<32x1xf32>
    %cst_9 = arith.constant 1.000000e-10 : f32
    %15 = vector.broadcast %cst_9 : f32 to vector<32x1xf32>
    %16 = arith.addf %14, %15 : vector<32x1xf32>
    %17 = math.rsqrt %16 : vector<32x1xf32>
    %18 = vector.broadcast %17 : vector<32x1xf32> to vector<32x128xf32>
    %19 = arith.mulf %10, %18 : vector<32x128xf32>
    %20 = arith.mulf %11, %11 : vector<32x128xf32>
    %cst_10 = arith.constant dense<0.000000e+00> : vector<32xf32>
    %21 = vector.multi_reduction <add>, %20, %cst_10 [1] : vector<32x128xf32> to vector<32xf32>
    %22 = vector.shape_cast %21 : vector<32xf32> to vector<32x1xf32>
    %cst_11 = arith.constant 1.000000e-10 : f32
    %23 = vector.broadcast %cst_11 : f32 to vector<32x1xf32>
    %24 = arith.addf %22, %23 : vector<32x1xf32>
    %25 = math.rsqrt %24 : vector<32x1xf32>
    %26 = vector.broadcast %25 : vector<32x1xf32> to vector<32x128xf32>
    %27 = arith.mulf %11, %26 : vector<32x128xf32>
    %28 = arith.subf %19, %27 : vector<32x128xf32>
    %29 = arith.subf %19, %27 : vector<32x128xf32>
    %30 = arith.mulf %28, %29 : vector<32x128xf32>
    %c0_12 = arith.constant 0 : index
    %c0_13 = arith.constant 0 : index
    %31 = vector.load %arg3[%c0_12, %c0_13] : memref<1x128xf32, #tpu.memory_space<vmem>>, vector<1x128xf32>
    %32 = vector.broadcast %31 : vector<1x128xf32> to vector<32x128xf32>
    %33 = arith.mulf %30, %32 : vector<32x128xf32>
    %cst_14 = arith.constant dense<0.000000e+00> : vector<32xf32>
    %34 = vector.multi_reduction <add>, %33, %cst_14 [1] : vector<32x128xf32> to vector<32xf32>
    %35 = vector.shape_cast %34 : vector<32xf32> to vector<32x1xf32>
    %cst_15 = arith.constant dense<0.000000e+00> : vector<1xf32>
    %36 = vector.multi_reduction <add>, %35, %cst_15 [0] : vector<32x1xf32> to vector<1xf32>
    %37 = vector.shape_cast %36 : vector<1xf32> to vector<1x1xf32>
    %cst_16 = arith.constant 6.250000e-02 : f32
    %38 = vector.broadcast %cst_16 : f32 to vector<1x1xf32>
    %39 = arith.mulf %37, %38 : vector<1x1xf32>
    %c0_17 = arith.constant 0 : index
    %c0_18 = arith.constant 0 : index
    %40 = vector.load %arg5[%c0_17, %c0_18] : memref<1x1xf32, #tpu.memory_space<vmem>>, vector<1x1xf32>
    tpu.vector_store %arg5[%c0_17, %c0_18], %39 {strides = array<i32>} : memref<1x1xf32, #tpu.memory_space<vmem>>, vector<1x1xf32>,
    return
  }
}

module attributes {stable_mosaic.version = 11 : i64} {
  func.func @_mse_kernel(%arg0: memref<48x128xf32, #tpu.memory_space<vmem>>, %arg1: memref<48x128xf32, #tpu.memory_space<vmem>>, %arg2: memref<1x1xf32, #tpu.memory_space<vmem>>) attributes {dimension_semantics = [], scalar_prefetch = 0 : i64, scratch_operands = 0 : i64, tpu.core_type = #tpu.core_type<tc>} {
    %c0 = arith.constant 0 : index
    %c0_0 = arith.constant 0 : index
    %0 = vector.load %arg0[%c0, %c0_0] : memref<48x128xf32, #tpu.memory_space<vmem>>, vector<48x128xf32>
    %c0_1 = arith.constant 0 : index
    %c0_2 = arith.constant 0 : index
    %1 = vector.load %arg1[%c0_1, %c0_2] : memref<48x128xf32, #tpu.memory_space<vmem>>, vector<48x128xf32>
    %2 = arith.subf %0, %1 : vector<48x128xf32>
    %3 = arith.mulf %2, %2 : vector<48x128xf32>
    %cst = arith.constant dense<0.000000e+00> : vector<48xf32>
    %4 = vector.multi_reduction <add>, %3, %cst [1] : vector<48x128xf32> to vector<48xf32>
    %5 = vector.shape_cast %4 : vector<48xf32> to vector<48x1xf32>
    %cst_3 = arith.constant dense<0.000000e+00> : vector<1xf32>
    %6 = vector.multi_reduction <add>, %5, %cst_3 [0] : vector<48x1xf32> to vector<1xf32>
    %7 = vector.shape_cast %6 : vector<1xf32> to vector<1x1xf32>
    %cst_4 = arith.constant 1.62760422E-4 : f32
    %8 = vector.broadcast %cst_4 : f32 to vector<1x1xf32>
    %9 = arith.mulf %7, %8 : vector<1x1xf32>
    %c0_5 = arith.constant 0 : index
    %c0_6 = arith.constant 0 : index
    %10 = vector.load %arg2[%c0_5, %c0_6] : memref<1x1xf32, #tpu.memory_space<vmem>>, vector<1x1xf32>
    tpu.vector_store %arg2[%c0_5, %c0_6], %9 {strides = array<i32>} : memref<1x1xf32, #tpu.memory_space<vmem>>, vector<1x1xf32>,
    return
  }
}

</mosaic_0001>

<llo_original>
// kernel: _forward.5
$region0: #{_forward.5}
  #allocation0 [shape = 'u32[]', space=smem, size = 0x4, offset = 0x4, fixed_abs, tag = 'smem constant byte address 0x4 - core index']
  #allocation1 [shape = 'u32[144,128]{1,0:T(1,128)}', space=vmem, size = 0x12000, scoped, tag = 'internal scratch']
  %s0 = inlined_call_operand.vmem [shape: bf16[1024,128], index: 0, kind: input, shape index: {}]
  %s1 = inlined_call_operand.vmem [shape: bf16[128,128], index: 1, kind: input, shape index: {}]
  %s2 = inlined_call_operand.vmem [shape: f32[1,128], index: 2, kind: input, shape index: {}]
  %s3 = inlined_call_operand.vmem [shape: f32[1,128], index: 3, kind: input, shape index: {}]
  %s4 = inlined_call_operand.vmem [shape: bf16[1024,128], index: 4, kind: output, shape index: {0}]
  %s5 = inlined_call_operand.hbm [shape: f32[1,1], index: 5, kind: output, shape index: {1}]
  %6 = xla_tuple %s4, %s5
  %s7 = sld [smem:[#allocation0]]
  $region34: #{_forward.5} parent=0
    _
  %s9 = ssub.s32 1, %s7
  %s10 = scalar_select 0, %s9, %s7
  $region1: #{_forward.5} parent=0
    #allocation2 [shape = 'u8[512]{0}', space=vmem, size = 0x400, scoped, tag = 'output window, operand 1, single buffered']
    #allocation3 [shape = 's32[1]{0}', space=sflag, size = 0x4, scoped, tag = 'scoped memory for _forward.5']
    %11 = vsyncpa [#allocation3], 0
    // Predicated region
    $region2: #{_forward.5} parent=1 // pred_check
      _
    $region3: #{_forward.5} parent=1 // pred_check_branch
      %13 = sbr.rel (0) target = $region5
    $region4: #{_forward.5} parent=1 // pred_region
      _
    $region5: #{_forward.5} parent=1 // pred_fallthru
      _
    // Predicated region
    $region6: #{_forward.5} parent=1 // pred_check
      _
    $region7: #{_forward.5} parent=1 // pred_check_branch
      %15 = sbr.rel (0) target = $region9
    $region8: #{_forward.5} parent=1 // pred_region
      _
    $region9: #{_forward.5} parent=1 // pred_fallthru
      _
    // Predicated region
    $region10: #{_forward.5} parent=1 // pred_check
      _
    $region11: #{_forward.5} parent=1 // pred_check_branch
      %17 = sbr.rel (0) target = $region13
    $region12: #{_forward.5} parent=1 // pred_region
      _
    $region13: #{_forward.5} parent=1 // pred_fallthru
      _
    // Predicated region
    $region14: #{_forward.5} parent=1 // pred_check
      _
    $region15: #{_forward.5} parent=1 // pred_check_branch
      %19 = sbr.rel (0) target = $region17
    $region16: #{_forward.5} parent=1 // pred_region
      _
    $region17: #{_forward.5} parent=1 // pred_fallthru
      _
    %v21 = vld [vmem:[%s0] sm:$0xf]
    %v22 = vld [vmem:[%s0 + $0x4] sm:$0xf]
    %v23 = vld [vmem:[%s0 + $0x8] sm:$0xf]
    %v24 = vld [vmem:[%s0 + $0xc] sm:$0xf]
    %v25 = vld [vmem:[%s0 + $0x10] sm:$0xf]
    %v26 = vld [vmem:[%s0 + $0x14] sm:$0xf]
    %v27 = vld [vmem:[%s0 + $0x18] sm:$0xf]
    %v28 = vld [vmem:[%s0 + $0x1c] sm:$0xf]
    %v29 = vld [vmem:[%s0 + $0x20] sm:$0xf]
    %v30 = vld [vmem:[%s0 + $0x24] sm:$0xf]
    %v31 = vld [vmem:[%s0 + $0x28] sm:$0xf]
    %v32 = vld [vmem:[%s0 + $0x2c] sm:$0xf]
    %v33 = vld [vmem:[%s0 + $0x30] sm:$0xf]
    %v34 = vld [vmem:[%s0 + $0x34] sm:$0xf]
    %v35 = vld [vmem:[%s0 + $0x38] sm:$0xf]
    %v36 = vld [vmem:[%s0 + $0x3c] sm:$0xf]
    %v37 = vld [vmem:[%s0 + $0x40] sm:$0xf]
    %v38 = vld [vmem:[%s0 + $0x44] sm:$0xf]
    %v39 = vld [vmem:[%s0 + $0x48] sm:$0xf]
    %v40 = vld [vmem:[%s0 + $0x4c] sm:$0xf]
    %v41 = vld [vmem:[%s0 + $0x50] sm:$0xf]
    %v42 = vld [vmem:[%s0 + $0x54] sm:$0xf]
    %v43 = vld [vmem:[%s0 + $0x58] sm:$0xf]
    %v44 = vld [vmem:[%s0 + $0x5c] sm:$0xf]
    %v45 = vld [vmem:[%s0 + $0x60] sm:$0xf]
    %v46 = vld [vmem:[%s0 + $0x64] sm:$0xf]
    %v47 = vld [vmem:[%s0 + $0x68] sm:$0xf]
    %v48 = vld [vmem:[%s0 + $0x6c] sm:$0xf]
    %v49 = vld [vmem:[%s0 + $0x70] sm:$0xf]
    %v50 = vld [vmem:[%s0 + $0x74] sm:$0xf]
    %v51 = vld [vmem:[%s0 + $0x78] sm:$0xf]
    %v52 = vld [vmem:[%s0 + $0x7c] sm:$0xf]
    %v53 = vld [vmem:[%s0 + $0x80] sm:$0xf]
    %v54 = vld [vmem:[%s0 + $0x84] sm:$0xf]
    %v55 = vld [vmem:[%s0 + $0x88] sm:$0xf]
    %v56 = vld [vmem:[%s0 + $0x8c] sm:$0xf]
    %v57 = vld [vmem:[%s0 + $0x90] sm:$0xf]
    %v58 = vld [vmem:[%s0 + $0x94] sm:$0xf]
    %v59 = vld [vmem:[%s0 + $0x98] sm:$0xf]
    %v60 = vld [vmem:[%s0 + $0x9c] sm:$0xf]
    %v61 = vld [vmem:[%s0 + $0xa0] sm:$0xf]
    %v62 = vld [vmem:[%s0 + $0xa4] sm:$0xf]
    %v63 = vld [vmem:[%s0 + $0xa8] sm:$0xf]
    %v64 = vld [vmem:[%s0 + $0xac] sm:$0xf]
    %v65 = vld [vmem:[%s0 + $0xb0] sm:$0xf]
    %v66 = vld [vmem:[%s0 + $0xb4] sm:$0xf]
    %v67 = vld [vmem:[%s0 + $0xb8] sm:$0xf]
    %v68 = vld [vmem:[%s0 + $0xbc] sm:$0xf]
    %v69 = vld [vmem:[%s0 + $0xc0] sm:$0xf]
    %v70 = vld [vmem:[%s0 + $0xc4] sm:$0xf]
    %v71 = vld [vmem:[%s0 + $0xc8] sm:$0xf]
    %v72 = vld [vmem:[%s0 + $0xcc] sm:$0xf]
    %v73 = vld [vmem:[%s0 + $0xd0] sm:$0xf]
    %v74 = vld [vmem:[%s0 + $0xd4] sm:$0xf]
    %v75 = vld [vmem:[%s0 + $0xd8] sm:$0xf]
    %v76 = vld [vmem:[%s0 + $0xdc] sm:$0xf]
    %v77 = vld [vmem:[%s0 + $0xe0] sm:$0xf]
    %v78 = vld [vmem:[%s0 + $0xe4] sm:$0xf]
    %v79 = vld [vmem:[%s0 + $0xe8] sm:$0xf]
    %v80 = vld [vmem:[%s0 + $0xec] sm:$0xf]
    %v81 = vld [vmem:[%s0 + $0xf0] sm:$0xf]
    %v82 = vld [vmem:[%s0 + $0xf4] sm:$0xf]
    %v83 = vld [vmem:[%s0 + $0xf8] sm:$0xf]
    %v84 = vld [vmem:[%s0 + $0xfc] sm:$0xf]
    %v85 = vld [vmem:[%s0 + $0x100] sm:$0xf]
    %v86 = vld [vmem:[%s0 + $0x104] sm:$0xf]
    %v87 = vld [vmem:[%s0 + $0x108] sm:$0xf]
    %v88 = vld [vmem:[%s0 + $0x10c] sm:$0xf]
    %v89 = vld [vmem:[%s0 + $0x110] sm:$0xf]
    %v90 = vld [vmem:[%s0 + $0x114] sm:$0xf]
    %v91 = vld [vmem:[%s0 + $0x118] sm:$0xf]
    %v92 = vld [vmem:[%s0 + $0x11c] sm:$0xf]
    %v93 = vld [vmem:[%s0 + $0x120] sm:$0xf]
    %v94 = vld [vmem:[%s0 + $0x124] sm:$0xf]
    %v95 = vld [vmem:[%s0 + $0x128] sm:$0xf]
    %v96 = vld [vmem:[%s0 + $0x12c] sm:$0xf]
    %v97 = vld [vmem:[%s0 + $0x130] sm:$0xf]
    %v98 = vld [vmem:[%s0 + $0x134] sm:$0xf]
    %v99 = vld [vmem:[%s0 + $0x138] sm:$0xf]
    %v100 = vld [vmem:[%s0 + $0x13c] sm:$0xf]
    %v101 = vld [vmem:[%s0 + $0x140] sm:$0xf]
    %v102 = vld [vmem:[%s0 + $0x144] sm:$0xf]
    %v103 = vld [vmem:[%s0 + $0x148] sm:$0xf]
    %v104 = vld [vmem:[%s0 + $0x14c] sm:$0xf]
    %v105 = vld [vmem:[%s0 + $0x150] sm:$0xf]
    %v106 = vld [vmem:[%s0 + $0x154] sm:$0xf]
    %v107 = vld [vmem:[%s0 + $0x158] sm:$0xf]
    %v108 = vld [vmem:[%s0 + $0x15c] sm:$0xf]
    %v109 = vld [vmem:[%s0 + $0x160] sm:$0xf]
    %v110 = vld [vmem:[%s0 + $0x164] sm:$0xf]
    %v111 = vld [vmem:[%s0 + $0x168] sm:$0xf]
    %v112 = vld [vmem:[%s0 + $0x16c] sm:$0xf]
    %v113 = vld [vmem:[%s0 + $0x170] sm:$0xf]
    %v114 = vld [vmem:[%s0 + $0x174] sm:$0xf]
    %v115 = vld [vmem:[%s0 + $0x178] sm:$0xf]
    %v116 = vld [vmem:[%s0 + $0x17c] sm:$0xf]
    %v117 = vld [vmem:[%s0 + $0x180] sm:$0xf]
    %v118 = vld [vmem:[%s0 + $0x184] sm:$0xf]
    %v119 = vld [vmem:[%s0 + $0x188] sm:$0xf]
    %v120 = vld [vmem:[%s0 + $0x18c] sm:$0xf]
    %v121 = vld [vmem:[%s0 + $0x190] sm:$0xf]
    %v122 = vld [vmem:[%s0 + $0x194] sm:$0xf]
    %v123 = vld [vmem:[%s0 + $0x198] sm:$0xf]
    %v124 = vld [vmem:[%s0 + $0x19c] sm:$0xf]
    %v125 = vld [vmem:[%s0 + $0x1a0] sm:$0xf]
    %v126 = vld [vmem:[%s0 + $0x1a4] sm:$0xf]
    %v127 = vld [vmem:[%s0 + $0x1a8] sm:$0xf]
    %v128 = vld [vmem:[%s0 + $0x1ac] sm:$0xf]
    %v129 = vld [vmem:[%s0 + $0x1b0] sm:$0xf]
    %v130 = vld [vmem:[%s0 + $0x1b4] sm:$0xf]
    %v131 = vld [vmem:[%s0 + $0x1b8] sm:$0xf]
    %v132 = vld [vmem:[%s0 + $0x1bc] sm:$0xf]
    %v133 = vld [vmem:[%s0 + $0x1c0] sm:$0xf]
    %v134 = vld [vmem:[%s0 + $0x1c4] sm:$0xf]
    %v135 = vld [vmem:[%s0 + $0x1c8] sm:$0xf]
    %v136 = vld [vmem:[%s0 + $0x1cc] sm:$0xf]
    %v137 = vld [vmem:[%s0 + $0x1d0] sm:$0xf]
    %v138 = vld [vmem:[%s0 + $0x1d4] sm:$0xf]
    %v139 = vld [vmem:[%s0 + $0x1d8] sm:$0xf]
    %v140 = vld [vmem:[%s0 + $0x1dc] sm:$0xf]
    %v141 = vld [vmem:[%s0 + $0x1e0] sm:$0xf]
    %v142 = vld [vmem:[%s0 + $0x1e4] sm:$0xf]
    %v143 = vld [vmem:[%s0 + $0x1e8] sm:$0xf]
    %v144 = vld [vmem:[%s0 + $0x1ec] sm:$0xf]
    %v145 = vld [vmem:[%s0 + $0x1f0] sm:$0xf]
    %v146 = vld [vmem:[%s0 + $0x1f4] sm:$0xf]
    %v147 = vld [vmem:[%s0 + $0x1f8] sm:$0xf]
    %v148 = vld [vmem:[%s0 + $0x1fc] sm:$0xf]
    %v149 = vld [vmem:[%s1] sm:$0xf]
    %v150 = vld [vmem:[%s1 + $0x4] sm:$0xf]
    %v151 = vld [vmem:[%s1 + $0x8] sm:$0xf]
    %v152 = vld [vmem:[%s1 + $0xc] sm:$0xf]
    %v153 = vld [vmem:[%s1 + $0x10] sm:$0xf]
    %v154 = vld [vmem:[%s1 + $0x14] sm:$0xf]
    %v155 = vld [vmem:[%s1 + $0x18] sm:$0xf]
    %v156 = vld [vmem:[%s1 + $0x1c] sm:$0xf]
    %v157 = vld [vmem:[%s1 + $0x20] sm:$0xf]
    %v158 = vld [vmem:[%s1 + $0x24] sm:$0xf]
    %v159 = vld [vmem:[%s1 + $0x28] sm:$0xf]
    %v160 = vld [vmem:[%s1 + $0x2c] sm:$0xf]
    %v161 = vld [vmem:[%s1 + $0x30] sm:$0xf]
    %v162 = vld [vmem:[%s1 + $0x34] sm:$0xf]
    %v163 = vld [vmem:[%s1 + $0x38] sm:$0xf]
    %v164 = vld [vmem:[%s1 + $0x3c] sm:$0xf]
    %v165 = vld [vmem:[%s2] sm:$0x1]
    %v167 = vlaneseq
    %v168 = vshrl.u32 %v167, 7
    %v169 = vsub.s32 0, %v168
    %v170 = vrot.slane %v165, %v169
    %v300 = vunpack.c.l.b16 %v21
    %v301 = vunpack.c.l.b16 %v22
    %v302 = vunpack.c.l.b16 %v23
    %v303 = vunpack.c.l.b16 %v24
    %v304 = vunpack.c.l.b16 %v25
    %v305 = vunpack.c.l.b16 %v26
    %v306 = vunpack.c.l.b16 %v27
    %v307 = vunpack.c.l.b16 %v28
    %v308 = vunpack.c.l.b16 %v29
    %v309 = vunpack.c.l.b16 %v30
    %v310 = vunpack.c.l.b16 %v31
    %v311 = vunpack.c.l.b16 %v32
    %v312 = vunpack.c.l.b16 %v33
    %v313 = vunpack.c.l.b16 %v34
    %v314 = vunpack.c.l.b16 %v35
    %v315 = vunpack.c.l.b16 %v36
    %v316 = vunpack.c.l.b16 %v37
    %v317 = vunpack.c.l.b16 %v38
    %v318 = vunpack.c.l.b16 %v39
    %v319 = vunpack.c.l.b16 %v40
    %v320 = vunpack.c.l.b16 %v41
    %v321 = vunpack.c.l.b16 %v42
    %v322 = vunpack.c.l.b16 %v43
    %v323 = vunpack.c.l.b16 %v44
    %v324 = vunpack.c.l.b16 %v45
    %v325 = vunpack.c.l.b16 %v46
    %v326 = vunpack.c.l.b16 %v47
    %v327 = vunpack.c.l.b16 %v48
    %v328 = vunpack.c.l.b16 %v49
    %v329 = vunpack.c.l.b16 %v50
    %v330 = vunpack.c.l.b16 %v51
    %v331 = vunpack.c.l.b16 %v52
    %v332 = vunpack.c.l.b16 %v53
    %v333 = vunpack.c.l.b16 %v54
    %v334 = vunpack.c.l.b16 %v55
    %v335 = vunpack.c.l.b16 %v56
    %v336 = vunpack.c.l.b16 %v57
    %v337 = vunpack.c.l.b16 %v58
    %v338 = vunpack.c.l.b16 %v59
    %v339 = vunpack.c.l.b16 %v60
    %v340 = vunpack.c.l.b16 %v61
    %v341 = vunpack.c.l.b16 %v62
    %v342 = vunpack.c.l.b16 %v63
    %v343 = vunpack.c.l.b16 %v64
    %v344 = vunpack.c.l.b16 %v65
    %v345 = vunpack.c.l.b16 %v66
    %v346 = vunpack.c.l.b16 %v67
    %v347 = vunpack.c.l.b16 %v68
    %v348 = vunpack.c.l.b16 %v69
    %v349 = vunpack.c.l.b16 %v70
    %v350 = vunpack.c.l.b16 %v71
    %v351 = vunpack.c.l.b16 %v72
    %v352 = vunpack.c.l.b16 %v73
    %v353 = vunpack.c.l.b16 %v74
    %v354 = vunpack.c.l.b16 %v75
    %v355 = vunpack.c.l.b16 %v76
    %v356 = vunpack.c.l.b16 %v77
    %v357 = vunpack.c.l.b16 %v78
    %v358 = vunpack.c.l.b16 %v79
    %v359 = vunpack.c.l.b16 %v80
    %v360 = vunpack.c.l.b16 %v81
    %v361 = vunpack.c.l.b16 %v82
    %v362 = vunpack.c.l.b16 %v83
    %v363 = vunpack.c.l.b16 %v84
    %v364 = vunpack.c.l.b16 %v85
    %v365 = vunpack.c.l.b16 %v86
    %v366 = vunpack.c.l.b16 %v87
    %v367 = vunpack.c.l.b16 %v88
    %v368 = vunpack.c.l.b16 %v89
    %v369 = vunpack.c.l.b16 %v90
    %v370 = vunpack.c.l.b16 %v91
    %v371 = vunpack.c.l.b16 %v92
    %v372 = vunpack.c.l.b16 %v93
    %v373 = vunpack.c.l.b16 %v94
    %v374 = vunpack.c.l.b16 %v95
    %v375 = vunpack.c.l.b16 %v96
    %v376 = vunpack.c.l.b16 %v97
    %v377 = vunpack.c.l.b16 %v98
    %v378 = vunpack.c.l.b16 %v99
    %v379 = vunpack.c.l.b16 %v100
    %v380 = vunpack.c.l.b16 %v101
    %v381 = vunpack.c.l.b16 %v102
    %v382 = vunpack.c.l.b16 %v103
    %v383 = vunpack.c.l.b16 %v104
    %v384 = vunpack.c.l.b16 %v105
    %v385 = vunpack.c.l.b16 %v106
    %v386 = vunpack.c.l.b16 %v107
    %v387 = vunpack.c.l.b16 %v108
    %v388 = vunpack.c.l.b16 %v109
    %v389 = vunpack.c.l.b16 %v110
    %v390 = vunpack.c.l.b16 %v111
    %v391 = vunpack.c.l.b16 %v112
    %v392 = vunpack.c.l.b16 %v113
    %v393 = vunpack.c.l.b16 %v114
    %v394 = vunpack.c.l.b16 %v115
    %v395 = vunpack.c.l.b16 %v116
    %v396 = vunpack.c.l.b16 %v117
    %v397 = vunpack.c.l.b16 %v118
    %v398 = vunpack.c.l.b16 %v119
    %v399 = vunpack.c.l.b16 %v120
    %v400 = vunpack.c.l.b16 %v121
    %v401 = vunpack.c.l.b16 %v122
    %v402 = vunpack.c.l.b16 %v123
    %v403 = vunpack.c.l.b16 %v124
    %v404 = vunpack.c.l.b16 %v125
    %v405 = vunpack.c.l.b16 %v126
    %v406 = vunpack.c.l.b16 %v127
    %v407 = vunpack.c.l.b16 %v128
    %v408 = vunpack.c.l.b16 %v129
    %v409 = vunpack.c.l.b16 %v130
    %v410 = vunpack.c.l.b16 %v131
    %v411 = vunpack.c.l.b16 %v132
    %v412 = vunpack.c.l.b16 %v133
    %v413 = vunpack.c.l.b16 %v134
    %v414 = vunpack.c.l.b16 %v135
    %v415 = vunpack.c.l.b16 %v136
    %v416 = vunpack.c.l.b16 %v137
    %v417 = vunpack.c.l.b16 %v138
    %v418 = vunpack.c.l.b16 %v139
    %v419 = vunpack.c.l.b16 %v140
    %v420 = vunpack.c.l.b16 %v141
    %v421 = vunpack.c.l.b16 %v142
    %v422 = vunpack.c.l.b16 %v143
    %v423 = vunpack.c.l.b16 %v144
    %v424 = vunpack.c.l.b16 %v145
    %v425 = vunpack.c.l.b16 %v146
    %v426 = vunpack.c.l.b16 %v147
    %v427 = vunpack.c.l.b16 %v148
    %v428 = vpack.c.b16 %v301, %v300
    %v429 = vpack.c.b16 %v303, %v302
    %v430 = vpack.c.b16 %v305, %v304
    %v431 = vpack.c.b16 %v307, %v306
    %v432 = vpack.c.b16 %v309, %v308
    %v433 = vpack.c.b16 %v311, %v310
    %v434 = vpack.c.b16 %v313, %v312
    %v435 = vpack.c.b16 %v315, %v314
    %v436 = vpack.c.b16 %v317, %v316
    %v437 = vpack.c.b16 %v319, %v318
    %v438 = vpack.c.b16 %v321, %v320
    %v439 = vpack.c.b16 %v323, %v322
    %v440 = vpack.c.b16 %v325, %v324
    %v441 = vpack.c.b16 %v327, %v326
    %v442 = vpack.c.b16 %v329, %v328
    %v443 = vpack.c.b16 %v331, %v330
    %v444 = vpack.c.b16 %v333, %v332
    %v445 = vpack.c.b16 %v335, %v334
    %v446 = vpack.c.b16 %v337, %v336
    %v447 = vpack.c.b16 %v339, %v338
    %v448 = vpack.c.b16 %v341, %v340
    %v449 = vpack.c.b16 %v343, %v342
    %v450 = vpack.c.b16 %v345, %v344
    %v451 = vpack.c.b16 %v347, %v346
    %v452 = vpack.c.b16 %v349, %v348
    %v453 = vpack.c.b16 %v351, %v350
    %v454 = vpack.c.b16 %v353, %v352
    %v455 = vpack.c.b16 %v355, %v354
    %v456 = vpack.c.b16 %v357, %v356
    %v457 = vpack.c.b16 %v359, %v358
    %v458 = vpack.c.b16 %v361, %v360
    %v459 = vpack.c.b16 %v363, %v362
    %v460 = vpack.c.b16 %v365, %v364
    %v461 = vpack.c.b16 %v367, %v366
    %v462 = vpack.c.b16 %v369, %v368
    %v463 = vpack.c.b16 %v371, %v370
    %v464 = vpack.c.b16 %v373, %v372
    %v465 = vpack.c.b16 %v375, %v374
    %v466 = vpack.c.b16 %v377, %v376
    %v467 = vpack.c.b16 %v379, %v378
    %v468 = vpack.c.b16 %v381, %v380
    %v469 = vpack.c.b16 %v383, %v382
    %v470 = vpack.c.b16 %v385, %v384
    %v471 = vpack.c.b16 %v387, %v386
    %v472 = vpack.c.b16 %v389, %v388
    %v473 = vpack.c.b16 %v391, %v390
    %v474 = vpack.c.b16 %v393, %v392
    %v475 = vpack.c.b16 %v395, %v394
    %v476 = vpack.c.b16 %v397, %v396
    %v477 = vpack.c.b16 %v399, %v398
    %v478 = vpack.c.b16 %v401, %v400
    %v479 = vpack.c.b16 %v403, %v402
    %v480 = vpack.c.b16 %v405, %v404
    %v481 = vpack.c.b16 %v407, %v406
    %v482 = vpack.c.b16 %v409, %v408
    %v483 = vpack.c.b16 %v411, %v410
    %v484 = vpack.c.b16 %v413, %v412
    %v485 = vpack.c.b16 %v415, %v414
    %v486 = vpack.c.b16 %v417, %v416
    %v487 = vpack.c.b16 %v419, %v418
    %v488 = vpack.c.b16 %v421, %v420
    %v489 = vpack.c.b16 %v423, %v422
    %v490 = vpack.c.b16 %v425, %v424
    %v491 = vpack.c.b16 %v427, %v426
    %v572 = vunpack.c.l.b16 %v149
    %v573 = vunpack.c.l.b16 %v150
    %v574 = vunpack.c.l.b16 %v151
    %v575 = vunpack.c.l.b16 %v152
    %v576 = vunpack.c.l.b16 %v153
    %v577 = vunpack.c.l.b16 %v154
    %v578 = vunpack.c.l.b16 %v155
    %v579 = vunpack.c.l.b16 %v156
    %v580 = vunpack.c.l.b16 %v157
    %v581 = vunpack.c.l.b16 %v158
    %v582 = vunpack.c.l.b16 %v159
    %v583 = vunpack.c.l.b16 %v160
    %v584 = vunpack.c.l.b16 %v161
    %v585 = vunpack.c.l.b16 %v162
    %v586 = vunpack.c.l.b16 %v163
    %v587 = vunpack.c.l.b16 %v164
    %v588 = vpack.c.b16 %v573, %v572
    %v589 = vpack.c.b16 %v575, %v574
    %v590 = vpack.c.b16 %v577, %v576
    %v591 = vpack.c.b16 %v579, %v578
    %v592 = vpack.c.b16 %v581, %v580
    %v593 = vpack.c.b16 %v583, %v582
    %v594 = vpack.c.b16 %v585, %v584
    %v595 = vpack.c.b16 %v587, %v586
    %604 = vmatprep.subr.bf16.mxu0 0
    %605 = vmatpush1.bf16.msra.mxu0 %v588
    %606 = vmatprep.subr.bf16.mxu0 0
    %607 = vmatpush1.bf16.msra.mxu0 %v589
    %608 = vmatprep.subr.bf16.mxu0 0
    %609 = vmatpush1.bf16.msra.mxu0 %v590
    %610 = vmatprep.subr.bf16.mxu0 0
    %611 = vmatpush1.bf16.msra.mxu0 %v591
    %612 = vmatprep.subr.bf16.mxu0 0
    %613 = vmatpush1.bf16.msra.mxu0 %v592
    %614 = vmatprep.subr.bf16.mxu0 0
    %615 = vmatpush1.bf16.msra.mxu0 %v593
    %616 = vmatprep.subr.bf16.mxu0 0
    %617 = vmatpush1.bf16.msra.mxu0 %v594
    %618 = vmatprep.subr.bf16.mxu0 0
    %619 = vmatpush1.bf16.msra.mxu0 %v595
    %620 = vmatprep.subr.bf16.mxu0 0
    %621 = vmatpush1.bf16.msra.mxu0 0
    %622 = vmatprep.subr.bf16.mxu0 0
    %623 = vmatpush1.bf16.msra.mxu0 0
    %624 = vmatprep.subr.bf16.mxu0 0
    %625 = vmatpush1.bf16.msra.mxu0 0
    %626 = vmatprep.subr.bf16.mxu0 0
    %627 = vmatpush1.bf16.msra.mxu0 0
    %628 = vmatprep.subr.bf16.mxu0 0
    %629 = vmatpush1.bf16.msra.mxu0 0
    %630 = vmatprep.subr.bf16.mxu0 0
    %631 = vmatpush1.bf16.msra.mxu0 0
    %632 = vmatprep.subr.bf16.mxu0 0
    %633 = vmatpush1.bf16.msra.mxu0 0
    %634 = vmatprep.subr.bf16.mxu0 0
    %635 = vmatpush1.bf16.msra.mxu0 0
    %636 = vmatprep.mubr.bf16.mxu0 0
    %637 = vmatmul.mubr.bf16.gmra.mrb[0].mxu0 %v428
    %v638 = vpop.f32.mrb[0].mxu0
    %v639 = vadd.f32 %v170, %v638
    %v640 = vpop.f32.mrb[0].mxu0
    %v641 = vpop.f32.mrb[0].mxu0
    %v642 = vadd.f32 %v170, %v641
    %v643 = vpop.f32.mrb[0].mxu0
    %644 = vmatprep.mubr.bf16.mxu0 0
    %645 = vmatmul.mubr.bf16.gmra.mrb[0].mxu0 %v429
    %v646 = vpop.f32.mrb[0].mxu0
    %v647 = vadd.f32 %v170, %v646
    %v648 = vpop.f32.mrb[0].mxu0
    %v649 = vpop.f32.mrb[0].mxu0
    %v650 = vadd.f32 %v170, %v649
    %v651 = vpop.f32.mrb[0].mxu0
    %652 = vmatprep.mubr.bf16.mxu0 0
    %653 = vmatmul.mubr.bf16.gmra.mrb[0].mxu0 %v430
    %v654 = vpop.f32.mrb[0].mxu0
    %v655 = vadd.f32 %v170, %v654
    %v656 = vpop.f32.mrb[0].mxu0
    %v657 = vpop.f32.mrb[0].mxu0
    %v658 = vadd.f32 %v170, %v657
    %v659 = vpop.f32.mrb[0].mxu0
    %660 = vmatprep.mubr.bf16.mxu0 0
    %661 = vmatmul.mubr.bf16.gmra.mrb[0].mxu0 %v431
    %v662 = vpop.f32.mrb[0].mxu0
    %v663 = vadd.f32 %v170, %v662
    %v664 = vpop.f32.mrb[0].mxu0
    %v665 = vpop.f32.mrb[0].mxu0
    %v666 = vadd.f32 %v170, %v665
    %v667 = vpop.f32.mrb[0].mxu0
    %668 = vmatprep.mubr.bf16.mxu0 0
    %669 = vmatmul.mubr.bf16.gmra.mrb[0].mxu0 %v432
    %v670 = vpop.f32.mrb[0].mxu0
    %v671 = vadd.f32 %v170, %v670
    %v672 = vpop.f32.mrb[0].mxu0
    %v673 = vpop.f32.mrb[0].mxu0
    %v674 = vadd.f32 %v170, %v673
    %v675 = vpop.f32.mrb[0].mxu0
    %676 = vmatprep.mubr.bf16.mxu0 0
    %677 = vmatmul.mubr.bf16.gmra.mrb[0].mxu0 %v433
    %v678 = vpop.f32.mrb[0].mxu0
    %v679 = vadd.f32 %v170, %v678
    %v680 = vpop.f32.mrb[0].mxu0
    %v681 = vpop.f32.mrb[0].mxu0
    %v682 = vadd.f32 %v170, %v681
    %v683 = vpop.f32.mrb[0].mxu0
    %684 = vmatprep.mubr.bf16.mxu0 0
    %685 = vmatmul.mubr.bf16.gmra.mrb[0].mxu0 %v434
    %v686 = vpop.f32.mrb[0].mxu0
    %v687 = vadd.f32 %v170, %v686
    %v688 = vpop.f32.mrb[0].mxu0
    %v689 = vpop.f32.mrb[0].mxu0
    %v690 = vadd.f32 %v170, %v689
    %v691 = vpop.f32.mrb[0].mxu0
    %692 = vmatprep.mubr.bf16.mxu0 0
    %693 = vmatmul.mubr.bf16.gmra.mrb[0].mxu0 %v435
    %v694 = vpop.f32.mrb[0].mxu0
    %v695 = vadd.f32 %v170, %v694
    %v696 = vpop.f32.mrb[0].mxu0
    %v697 = vpop.f32.mrb[0].mxu0
    %v698 = vadd.f32 %v170, %v697
    %v699 = vpop.f32.mrb[0].mxu0
    %700 = vmatprep.mubr.bf16.mxu0 0
    %701 = vmatmul.mubr.bf16.gmra.mrb[0].mxu0 %v436
    %v702 = vpop.f32.mrb[0].mxu0
    %v703 = vadd.f32 %v170, %v702
    %v704 = vpop.f32.mrb[0].mxu0
    %v705 = vpop.f32.mrb[0].mxu0
    %v706 = vadd.f32 %v170, %v705
    %v707 = vpop.f32.mrb[0].mxu0
    %708 = vmatprep.mubr.bf16.mxu0 0
    %709 = vmatmul.mubr.bf16.gmra.mrb[0].mxu0 %v437
    %v710 = vpop.f32.mrb[0].mxu0
    %v711 = vadd.f32 %v170, %v710
    %v712 = vpop.f32.mrb[0].mxu0
    %v713 = vpop.f32.mrb[0].mxu0
    %v714 = vadd.f32 %v170, %v713
    %v715 = vpop.f32.mrb[0].mxu0
    %716 = vmatprep.mubr.bf16.mxu0 0
    %717 = vmatmul.mubr.bf16.gmra.mrb[0].mxu0 %v438
    %v718 = vpop.f32.mrb[0].mxu0
    %v719 = vadd.f32 %v170, %v718
    %v720 = vpop.f32.mrb[0].mxu0
    %v721 = vpop.f32.mrb[0].mxu0
    %v722 = vadd.f32 %v170, %v721
    %v723 = vpop.f32.mrb[0].mxu0
    %724 = vmatprep.mubr.bf16.mxu0 0
    %725 = vmatmul.mubr.bf16.gmra.mrb[0].mxu0 %v439
    %v726 = vpop.f32.mrb[0].mxu0
    %v727 = vadd.f32 %v170, %v726
    %v728 = vpop.f32.mrb[0].mxu0
    %v729 = vpop.f32.mrb[0].mxu0
    %v730 = vadd.f32 %v170, %v729
    %v731 = vpop.f32.mrb[0].mxu0
    %732 = vmatprep.mubr.bf16.mxu0 0
    %733 = vmatmul.mubr.bf16.gmra.mrb[0].mxu0 %v440
    %v734 = vpop.f32.mrb[0].mxu0
    %v735 = vadd.f32 %v170, %v734
    %v736 = vpop.f32.mrb[0].mxu0
    %v737 = vpop.f32.mrb[0].mxu0
    %v738 = vadd.f32 %v170, %v737
    %v739 = vpop.f32.mrb[0].mxu0
    %740 = vmatprep.mubr.bf16.mxu0 0
    %741 = vmatmul.mubr.bf16.gmra.mrb[0].mxu0 %v441
    %v742 = vpop.f32.mrb[0].mxu0
    %v743 = vadd.f32 %v170, %v742
    %v744 = vpop.f32.mrb[0].mxu0
    %v745 = vpop.f32.mrb[0].mxu0
    %v746 = vadd.f32 %v170, %v745
    %v747 = vpop.f32.mrb[0].mxu0
    %748 = vmatprep.mubr.bf16.mxu0 0
    %749 = vmatmul.mubr.bf16.gmra.mrb[0].mxu0 %v442
    %v750 = vpop.f32.mrb[0].mxu0
    %v751 = vadd.f32 %v170, %v750
    %v752 = vpop.f32.mrb[0].mxu0
    %v753 = vpop.f32.mrb[0].mxu0
    %v754 = vadd.f32 %v170, %v753
    %v755 = vpop.f32.mrb[0].mxu0
    %756 = vmatprep.mubr.bf16.mxu0 0
    %757 = vmatmul.mubr.bf16.gmra.mrb[0].mxu0 %v443
    %v758 = vpop.f32.mrb[0].mxu0
    %v759 = vadd.f32 %v170, %v758
    %v760 = vpop.f32.mrb[0].mxu0
    %v761 = vpop.f32.mrb[0].mxu0
    %v762 = vadd.f32 %v170, %v761
    %v763 = vpop.f32.mrb[0].mxu0
    %764 = vmatprep.mubr.bf16.mxu0 0
    %765 = vmatmul.mubr.bf16.gmra.mrb[0].mxu0 %v444
    %v766 = vpop.f32.mrb[0].mxu0
    %v767 = vadd.f32 %v170, %v766
    %v768 = vpop.f32.mrb[0].mxu0
    %v769 = vpop.f32.mrb[0].mxu0
    %v770 = vadd.f32 %v170, %v769
    %v771 = vpop.f32.mrb[0].mxu0
    %772 = vmatprep.mubr.bf16.mxu0 0
    %773 = vmatmul.mubr.bf16.gmra.mrb[0].mxu0 %v445
    %v774 = vpop.f32.mrb[0].mxu0
    %v775 = vadd.f32 %v170, %v774
    %v776 = vpop.f32.mrb[0].mxu0
    %v777 = vpop.f32.mrb[0].mxu0
    %v778 = vadd.f32 %v170, %v777
    %v779 = vpop.f32.mrb[0].mxu0
    %780 = vmatprep.mubr.bf16.mxu0 0
    %781 = vmatmul.mubr.bf16.gmra.mrb[0].mxu0 %v446
    %v782 = vpop.f32.mrb[0].mxu0
    %v783 = vadd.f32 %v170, %v782
    %v784 = vpop.f32.mrb[0].mxu0
    %v785 = vpop.f32.mrb[0].mxu0
    %v786 = vadd.f32 %v170, %v785
    %v787 = vpop.f32.mrb[0].mxu0
    %788 = vmatprep.mubr.bf16.mxu0 0
    %789 = vmatmul.mubr.bf16.gmra.mrb[0].mxu0 %v447
    %v790 = vpop.f32.mrb[0].mxu0
    %v791 = vadd.f32 %v170, %v790
    %v792 = vpop.f32.mrb[0].mxu0
    %v793 = vpop.f32.mrb[0].mxu0
    %v794 = vadd.f32 %v170, %v793
    %v795 = vpop.f32.mrb[0].mxu0
    %796 = vmatprep.mubr.bf16.mxu0 0
    %797 = vmatmul.mubr.bf16.gmra.mrb[0].mxu0 %v448
    %v798 = vpop.f32.mrb[0].mxu0
    %v799 = vadd.f32 %v170, %v798
    %v800 = vpop.f32.mrb[0].mxu0
    %v801 = vpop.f32.mrb[0].mxu0
    %v802 = vadd.f32 %v170, %v801
    %v803 = vpop.f32.mrb[0].mxu0
    %804 = vmatprep.mubr.bf16.mxu0 0
    %805 = vmatmul.mubr.bf16.gmra.mrb[0].mxu0 %v449
    %v806 = vpop.f32.mrb[0].mxu0
    %v807 = vadd.f32 %v170, %v806
    %v808 = vpop.f32.mrb[0].mxu0
    %v809 = vpop.f32.mrb[0].mxu0
    %v810 = vadd.f32 %v170, %v809
    %v811 = vpop.f32.mrb[0].mxu0
    %812 = vmatprep.mubr.bf16.mxu0 0
    %813 = vmatmul.mubr.bf16.gmra.mrb[0].mxu0 %v450
    %v814 = vpop.f32.mrb[0].mxu0
    %v815 = vadd.f32 %v170, %v814
    %v816 = vpop.f32.mrb[0].mxu0
    %v817 = vpop.f32.mrb[0].mxu0
    %v818 = vadd.f32 %v170, %v817
    %v819 = vpop.f32.mrb[0].mxu0
    %820 = vmatprep.mubr.bf16.mxu0 0
    %821 = vmatmul.mubr.bf16.gmra.mrb[0].mxu0 %v451
    %v822 = vpop.f32.mrb[0].mxu0
    %v823 = vadd.f32 %v170, %v822
    %v824 = vpop.f32.mrb[0].mxu0
    %v825 = vpop.f32.mrb[0].mxu0
    %v826 = vadd.f32 %v170, %v825
    %v827 = vpop.f32.mrb[0].mxu0
    %828 = vmatprep.mubr.bf16.mxu0 0
    %829 = vmatmul.mubr.bf16.gmra.mrb[0].mxu0 %v452
    %v830 = vpop.f32.mrb[0].mxu0
    %v831 = vadd.f32 %v170, %v830
    %v832 = vpop.f32.mrb[0].mxu0
    %v833 = vpop.f32.mrb[0].mxu0
    %v834 = vadd.f32 %v170, %v833
    %v835 = vpop.f32.mrb[0].mxu0
    %836 = vmatprep.mubr.bf16.mxu0 0
    %837 = vmatmul.mubr.bf16.gmra.mrb[0].mxu0 %v453
    %v838 = vpop.f32.mrb[0].mxu0
    %v839 = vadd.f32 %v170, %v838
    %v840 = vpop.f32.mrb[0].mxu0
    %v841 = vpop.f32.mrb[0].mxu0
    %v842 = vadd.f32 %v170, %v841
    %v843 = vpop.f32.mrb[0].mxu0
    %844 = vmatprep.mubr.bf16.mxu0 0
    %845 = vmatmul.mubr.bf16.gmra.mrb[0].mxu0 %v454
    %v846 = vpop.f32.mrb[0].mxu0
    %v847 = vadd.f32 %v170, %v846
    %v848 = vpop.f32.mrb[0].mxu0
    %v849 = vpop.f32.mrb[0].mxu0
    %v850 = vadd.f32 %v170, %v849
    %v851 = vpop.f32.mrb[0].mxu0
    %852 = vmatprep.mubr.bf16.mxu0 0
    %853 = vmatmul.mubr.bf16.gmra.mrb[0].mxu0 %v455
    %v854 = vpop.f32.mrb[0].mxu0
    %v855 = vadd.f32 %v170, %v854
    %v856 = vpop.f32.mrb[0].mxu0
    %v857 = vpop.f32.mrb[0].mxu0
    %v858 = vadd.f32 %v170, %v857
    %v859 = vpop.f32.mrb[0].mxu0
    %860 = vmatprep.mubr.bf16.mxu0 0
    %861 = vmatmul.mubr.bf16.gmra.mrb[0].mxu0 %v456
    %v862 = vpop.f32.mrb[0].mxu0
    %v863 = vadd.f32 %v170, %v862
    %v864 = vpop.f32.mrb[0].mxu0
    %v865 = vpop.f32.mrb[0].mxu0
    %v866 = vadd.f32 %v170, %v865
    %v867 = vpop.f32.mrb[0].mxu0
    %868 = vmatprep.mubr.bf16.mxu0 0
    %869 = vmatmul.mubr.bf16.gmra.mrb[0].mxu0 %v457
    %v870 = vpop.f32.mrb[0].mxu0
    %v871 = vadd.f32 %v170, %v870
    %v872 = vpop.f32.mrb[0].mxu0
    %v873 = vpop.f32.mrb[0].mxu0
    %v874 = vadd.f32 %v170, %v873
    %v875 = vpop.f32.mrb[0].mxu0
    %876 = vmatprep.mubr.bf16.mxu0 0
    %877 = vmatmul.mubr.bf16.gmra.mrb[0].mxu0 %v458
    %v878 = vpop.f32.mrb[0].mxu0
    %v879 = vadd.f32 %v170, %v878
    %v880 = vpop.f32.mrb[0].mxu0
    %v881 = vpop.f32.mrb[0].mxu0
    %v882 = vadd.f32 %v170, %v881
    %v883 = vpop.f32.mrb[0].mxu0
    %884 = vmatprep.mubr.bf16.mxu0 0
    %885 = vmatmul.mubr.bf16.gmra.mrb[0].mxu0 %v459
    %v886 = vpop.f32.mrb[0].mxu0
    %v887 = vadd.f32 %v170, %v886
    %v888 = vpop.f32.mrb[0].mxu0
    %v889 = vpop.f32.mrb[0].mxu0
    %v890 = vadd.f32 %v170, %v889
    %v891 = vpop.f32.mrb[0].mxu0
    %892 = vmatprep.mubr.bf16.mxu0 0
    %893 = vmatmul.mubr.bf16.gmra.mrb[0].mxu0 %v460
    %v894 = vpop.f32.mrb[0].mxu0
    %v895 = vadd.f32 %v170, %v894
    %v896 = vpop.f32.mrb[0].mxu0
    %v897 = vpop.f32.mrb[0].mxu0
    %v898 = vadd.f32 %v170, %v897
    %v899 = vpop.f32.mrb[0].mxu0
    %900 = vmatprep.mubr.bf16.mxu0 0
    %901 = vmatmul.mubr.bf16.gmra.mrb[0].mxu0 %v461
    %v902 = vpop.f32.mrb[0].mxu0
    %v903 = vadd.f32 %v170, %v902
    %v904 = vpop.f32.mrb[0].mxu0
    %v905 = vpop.f32.mrb[0].mxu0
    %v906 = vadd.f32 %v170, %v905
    %v907 = vpop.f32.mrb[0].mxu0
    %908 = vmatprep.mubr.bf16.mxu0 0
    %909 = vmatmul.mubr.bf16.gmra.mrb[0].mxu0 %v462
    %v910 = vpop.f32.mrb[0].mxu0
    %v911 = vadd.f32 %v170, %v910
    %v912 = vpop.f32.mrb[0].mxu0
    %v913 = vpop.f32.mrb[0].mxu0
    %v914 = vadd.f32 %v170, %v913
    %v915 = vpop.f32.mrb[0].mxu0
    %916 = vmatprep.mubr.bf16.mxu0 0
    %917 = vmatmul.mubr.bf16.gmra.mrb[0].mxu0 %v463
    %v918 = vpop.f32.mrb[0].mxu0
    %v919 = vadd.f32 %v170, %v918
    %v920 = vpop.f32.mrb[0].mxu0
    %v921 = vpop.f32.mrb[0].mxu0
    %v922 = vadd.f32 %v170, %v921
    %v923 = vpop.f32.mrb[0].mxu0
    %924 = vmatprep.mubr.bf16.mxu0 0
    %925 = vmatmul.mubr.bf16.gmra.mrb[0].mxu0 %v464
    %v926 = vpop.f32.mrb[0].mxu0
    %v927 = vadd.f32 %v170, %v926
    %v928 = vpop.f32.mrb[0].mxu0
    %v929 = vpop.f32.mrb[0].mxu0
    %v930 = vadd.f32 %v170, %v929
    %v931 = vpop.f32.mrb[0].mxu0
    %932 = vmatprep.mubr.bf16.mxu0 0
    %933 = vmatmul.mubr.bf16.gmra.mrb[0].mxu0 %v465
    %v934 = vpop.f32.mrb[0].mxu0
    %v935 = vadd.f32 %v170, %v934
    %v936 = vpop.f32.mrb[0].mxu0
    %v937 = vpop.f32.mrb[0].mxu0
    %v938 = vadd.f32 %v170, %v937
    %v939 = vpop.f32.mrb[0].mxu0
    %940 = vmatprep.mubr.bf16.mxu0 0
    %941 = vmatmul.mubr.bf16.gmra.mrb[0].mxu0 %v466
    %v942 = vpop.f32.mrb[0].mxu0
    %v943 = vadd.f32 %v170, %v942
    %v944 = vpop.f32.mrb[0].mxu0
    %v945 = vpop.f32.mrb[0].mxu0
    %v946 = vadd.f32 %v170, %v945
    %v947 = vpop.f32.mrb[0].mxu0
    %948 = vmatprep.mubr.bf16.mxu0 0
    %949 = vmatmul.mubr.bf16.gmra.mrb[0].mxu0 %v467
    %v950 = vpop.f32.mrb[0].mxu0
    %v951 = vadd.f32 %v170, %v950
    %v952 = vpop.f32.mrb[0].mxu0
    %v953 = vpop.f32.mrb[0].mxu0
    %v954 = vadd.f32 %v170, %v953
    %v955 = vpop.f32.mrb[0].mxu0
    %956 = vmatprep.mubr.bf16.mxu0 0
    %957 = vmatmul.mubr.bf16.gmra.mrb[0].mxu0 %v468
    %v958 = vpop.f32.mrb[0].mxu0
    %v959 = vadd.f32 %v170, %v958
    %v960 = vpop.f32.mrb[0].mxu0
    %v961 = vpop.f32.mrb[0].mxu0
    %v962 = vadd.f32 %v170, %v961
    %v963 = vpop.f32.mrb[0].mxu0
    %964 = vmatprep.mubr.bf16.mxu0 0
    %965 = vmatmul.mubr.bf16.gmra.mrb[0].mxu0 %v469
    %v966 = vpop.f32.mrb[0].mxu0
    %v967 = vadd.f32 %v170, %v966
    %v968 = vpop.f32.mrb[0].mxu0
    %v969 = vpop.f32.mrb[0].mxu0
    %v970 = vadd.f32 %v170, %v969
    %v971 = vpop.f32.mrb[0].mxu0
    %972 = vmatprep.mubr.bf16.mxu0 0
    %973 = vmatmul.mubr.bf16.gmra.mrb[0].mxu0 %v470
    %v974 = vpop.f32.mrb[0].mxu0
    %v975 = vadd.f32 %v170, %v974
    %v976 = vpop.f32.mrb[0].mxu0
    %v977 = vpop.f32.mrb[0].mxu0
    %v978 = vadd.f32 %v170, %v977
    %v979 = vpop.f32.mrb[0].mxu0
    %980 = vmatprep.mubr.bf16.mxu0 0
    %981 = vmatmul.mubr.bf16.gmra.mrb[0].mxu0 %v471
    %v982 = vpop.f32.mrb[0].mxu0
    %v983 = vadd.f32 %v170, %v982
    %v984 = vpop.f32.mrb[0].mxu0
    %v985 = vpop.f32.mrb[0].mxu0
    %v986 = vadd.f32 %v170, %v985
    %v987 = vpop.f32.mrb[0].mxu0
    %988 = vmatprep.mubr.bf16.mxu0 0
    %989 = vmatmul.mubr.bf16.gmra.mrb[0].mxu0 %v472
    %v990 = vpop.f32.mrb[0].mxu0
    %v991 = vadd.f32 %v170, %v990
    %v992 = vpop.f32.mrb[0].mxu0
    %v993 = vpop.f32.mrb[0].mxu0
    %v994 = vadd.f32 %v170, %v993
    %v995 = vpop.f32.mrb[0].mxu0
    %996 = vmatprep.mubr.bf16.mxu0 0
    %997 = vmatmul.mubr.bf16.gmra.mrb[0].mxu0 %v473
    %v998 = vpop.f32.mrb[0].mxu0
    %v999 = vadd.f32 %v170, %v998
    %v1000 = vpop.f32.mrb[0].mxu0
    %v1001 = vpop.f32.mrb[0].mxu0
    %v1002 = vadd.f32 %v170, %v1001
    %v1003 = vpop.f32.mrb[0].mxu0
    %1004 = vmatprep.mubr.bf16.mxu0 0
    %1005 = vmatmul.mubr.bf16.gmra.mrb[0].mxu0 %v474
    %v1006 = vpop.f32.mrb[0].mxu0
    %v1007 = vadd.f32 %v170, %v1006
    %v1008 = vpop.f32.mrb[0].mxu0
    %v1009 = vpop.f32.mrb[0].mxu0
    %v1010 = vadd.f32 %v170, %v1009
    %v1011 = vpop.f32.mrb[0].mxu0
    %1012 = vmatprep.mubr.bf16.mxu0 0
    %1013 = vmatmul.mubr.bf16.gmra.mrb[0].mxu0 %v475
    %v1014 = vpop.f32.mrb[0].mxu0
    %v1015 = vadd.f32 %v170, %v1014
    %v1016 = vpop.f32.mrb[0].mxu0
    %v1017 = vpop.f32.mrb[0].mxu0
    %v1018 = vadd.f32 %v170, %v1017
    %v1019 = vpop.f32.mrb[0].mxu0
    %1020 = vmatprep.mubr.bf16.mxu0 0
    %1021 = vmatmul.mubr.bf16.gmra.mrb[0].mxu0 %v476
    %v1022 = vpop.f32.mrb[0].mxu0
    %v1023 = vadd.f32 %v170, %v1022
    %v1024 = vpop.f32.mrb[0].mxu0
    %v1025 = vpop.f32.mrb[0].mxu0
    %v1026 = vadd.f32 %v170, %v1025
    %v1027 = vpop.f32.mrb[0].mxu0
    %1028 = vmatprep.mubr.bf16.mxu0 0
    %1029 = vmatmul.mubr.bf16.gmra.mrb[0].mxu0 %v477
    %v1030 = vpop.f32.mrb[0].mxu0
    %v1031 = vadd.f32 %v170, %v1030
    %v1032 = vpop.f32.mrb[0].mxu0
    %v1033 = vpop.f32.mrb[0].mxu0
    %v1034 = vadd.f32 %v170, %v1033
    %v1035 = vpop.f32.mrb[0].mxu0
    %1036 = vmatprep.mubr.bf16.mxu0 0
    %1037 = vmatmul.mubr.bf16.gmra.mrb[0].mxu0 %v478
    %v1038 = vpop.f32.mrb[0].mxu0
    %v1039 = vadd.f32 %v170, %v1038
    %v1040 = vpop.f32.mrb[0].mxu0
    %v1041 = vpop.f32.mrb[0].mxu0
    %v1042 = vadd.f32 %v170, %v1041
    %v1043 = vpop.f32.mrb[0].mxu0
    %1044 = vmatprep.mubr.bf16.mxu0 0
    %1045 = vmatmul.mubr.bf16.gmra.mrb[0].mxu0 %v479
    %v1046 = vpop.f32.mrb[0].mxu0
    %v1047 = vadd.f32 %v170, %v1046
    %v1048 = vpop.f32.mrb[0].mxu0
    %v1049 = vpop.f32.mrb[0].mxu0
    %v1050 = vadd.f32 %v170, %v1049
    %v1051 = vpop.f32.mrb[0].mxu0
    %1052 = vmatprep.mubr.bf16.mxu0 0
    %1053 = vmatmul.mubr.bf16.gmra.mrb[0].mxu0 %v480
    %v1054 = vpop.f32.mrb[0].mxu0
    %v1055 = vadd.f32 %v170, %v1054
    %v1056 = vpop.f32.mrb[0].mxu0
    %v1057 = vpop.f32.mrb[0].mxu0
    %v1058 = vadd.f32 %v170, %v1057
    %v1059 = vpop.f32.mrb[0].mxu0
    %1060 = vmatprep.mubr.bf16.mxu0 0
    %1061 = vmatmul.mubr.bf16.gmra.mrb[0].mxu0 %v481
    %v1062 = vpop.f32.mrb[0].mxu0
    %v1063 = vadd.f32 %v170, %v1062
    %v1064 = vpop.f32.mrb[0].mxu0
    %v1065 = vpop.f32.mrb[0].mxu0
    %v1066 = vadd.f32 %v170, %v1065
    %v1067 = vpop.f32.mrb[0].mxu0
    %1068 = vmatprep.mubr.bf16.mxu0 0
    %1069 = vmatmul.mubr.bf16.gmra.mrb[0].mxu0 %v482
    %v1070 = vpop.f32.mrb[0].mxu0
    %v1071 = vadd.f32 %v170, %v1070
    %v1072 = vpop.f32.mrb[0].mxu0
    %v1073 = vpop.f32.mrb[0].mxu0
    %v1074 = vadd.f32 %v170, %v1073
    %v1075 = vpop.f32.mrb[0].mxu0
    %1076 = vmatprep.mubr.bf16.mxu0 0
    %1077 = vmatmul.mubr.bf16.gmra.mrb[0].mxu0 %v483
    %v1078 = vpop.f32.mrb[0].mxu0
    %v1079 = vadd.f32 %v170, %v1078
    %v1080 = vpop.f32.mrb[0].mxu0
    %v1081 = vpop.f32.mrb[0].mxu0
    %v1082 = vadd.f32 %v170, %v1081
    %v1083 = vpop.f32.mrb[0].mxu0
    %1084 = vmatprep.mubr.bf16.mxu0 0
    %1085 = vmatmul.mubr.bf16.gmra.mrb[0].mxu0 %v484
    %v1086 = vpop.f32.mrb[0].mxu0
    %v1087 = vadd.f32 %v170, %v1086
    %v1088 = vpop.f32.mrb[0].mxu0
    %v1089 = vpop.f32.mrb[0].mxu0
    %v1090 = vadd.f32 %v170, %v1089
    %v1091 = vpop.f32.mrb[0].mxu0
    %1092 = vmatprep.mubr.bf16.mxu0 0
    %1093 = vmatmul.mubr.bf16.gmra.mrb[0].mxu0 %v485
    %v1094 = vpop.f32.mrb[0].mxu0
    %v1095 = vadd.f32 %v170, %v1094
    %v1096 = vpop.f32.mrb[0].mxu0
    %v1097 = vpop.f32.mrb[0].mxu0
    %v1098 = vadd.f32 %v170, %v1097
    %v1099 = vpop.f32.mrb[0].mxu0
    %1100 = vmatprep.mubr.bf16.mxu0 0
    %1101 = vmatmul.mubr.bf16.gmra.mrb[0].mxu0 %v486
    %v1102 = vpop.f32.mrb[0].mxu0
    %v1103 = vadd.f32 %v170, %v1102
    %v1104 = vpop.f32.mrb[0].mxu0
    %v1105 = vpop.f32.mrb[0].mxu0
    %v1106 = vadd.f32 %v170, %v1105
    %v1107 = vpop.f32.mrb[0].mxu0
    %1108 = vmatprep.mubr.bf16.mxu0 0
    %1109 = vmatmul.mubr.bf16.gmra.mrb[0].mxu0 %v487
    %v1110 = vpop.f32.mrb[0].mxu0
    %v1111 = vadd.f32 %v170, %v1110
    %v1112 = vpop.f32.mrb[0].mxu0
    %v1113 = vpop.f32.mrb[0].mxu0
    %v1114 = vadd.f32 %v170, %v1113
    %v1115 = vpop.f32.mrb[0].mxu0
    %1116 = vmatprep.mubr.bf16.mxu0 0
    %1117 = vmatmul.mubr.bf16.gmra.mrb[0].mxu0 %v488
    %v1118 = vpop.f32.mrb[0].mxu0
    %v1119 = vadd.f32 %v170, %v1118
    %v1120 = vpop.f32.mrb[0].mxu0
    %v1121 = vpop.f32.mrb[0].mxu0
    %v1122 = vadd.f32 %v170, %v1121
    %v1123 = vpop.f32.mrb[0].mxu0
    %1124 = vmatprep.mubr.bf16.mxu0 0
    %1125 = vmatmul.mubr.bf16.gmra.mrb[0].mxu0 %v489
    %v1126 = vpop.f32.mrb[0].mxu0
    %v1127 = vadd.f32 %v170, %v1126
    %v1128 = vpop.f32.mrb[0].mxu0
    %v1129 = vpop.f32.mrb[0].mxu0
    %v1130 = vadd.f32 %v170, %v1129
    %v1131 = vpop.f32.mrb[0].mxu0
    %1132 = vmatprep.mubr.bf16.mxu0 0
    %1133 = vmatmul.mubr.bf16.gmra.mrb[0].mxu0 %v490
    %v1134 = vpop.f32.mrb[0].mxu0
    %v1135 = vadd.f32 %v170, %v1134
    %v1136 = vpop.f32.mrb[0].mxu0
    %v1137 = vpop.f32.mrb[0].mxu0
    %v1138 = vadd.f32 %v170, %v1137
    %v1139 = vpop.f32.mrb[0].mxu0
    %1140 = vmatprep.mubr.bf16.mxu0 0
    %1141 = vmatmul.mubr.bf16.gmra.mrb[0].mxu0 %v491
    %v1142 = vpop.f32.mrb[0].mxu0
    %v1143 = vadd.f32 %v170, %v1142
    %v1144 = vpop.f32.mrb[0].mxu0
    %v1145 = vpop.f32.mrb[0].mxu0
    %v1146 = vadd.f32 %v170, %v1145
    %v1147 = vpop.f32.mrb[0].mxu0
    %1148 = vdwg.mxu0
    %v1149 = vmax.f32 %v639, 0.0
    %v1150 = vmax.f32 %v642, 0.0
    %v1151 = vmax.f32 %v647, 0.0
    %v1152 = vmax.f32 %v650, 0.0
    %v1153 = vmax.f32 %v655, 0.0
    %v1154 = vmax.f32 %v658, 0.0
    %v1155 = vmax.f32 %v663, 0.0
    %v1156 = vmax.f32 %v666, 0.0
    %v1157 = vmax.f32 %v671, 0.0
    %v1158 = vmax.f32 %v674, 0.0
    %v1159 = vmax.f32 %v679, 0.0
    %v1160 = vmax.f32 %v682, 0.0
    %v1161 = vmax.f32 %v687, 0.0
    %v1162 = vmax.f32 %v690, 0.0
    %v1163 = vmax.f32 %v695, 0.0
    %v1164 = vmax.f32 %v698, 0.0
    %v1165 = vmax.f32 %v703, 0.0
    %v1166 = vmax.f32 %v706, 0.0
    %v1167 = vmax.f32 %v711, 0.0
    %v1168 = vmax.f32 %v714, 0.0
    %v1169 = vmax.f32 %v719, 0.0
    %v1170 = vmax.f32 %v722, 0.0
    %v1171 = vmax.f32 %v727, 0.0
    %v1172 = vmax.f32 %v730, 0.0
    %v1173 = vmax.f32 %v735, 0.0
    %v1174 = vmax.f32 %v738, 0.0
    %v1175 = vmax.f32 %v743, 0.0
    %v1176 = vmax.f32 %v746, 0.0
    %v1177 = vmax.f32 %v751, 0.0
    %v1178 = vmax.f32 %v754, 0.0
    %v1179 = vmax.f32 %v759, 0.0
    %v1180 = vmax.f32 %v762, 0.0
    %v1181 = vmax.f32 %v767, 0.0
    %v1182 = vmax.f32 %v770, 0.0
    %v1183 = vmax.f32 %v775, 0.0
    %v1184 = vmax.f32 %v778, 0.0
    %v1185 = vmax.f32 %v783, 0.0
    %v1186 = vmax.f32 %v786, 0.0
    %v1187 = vmax.f32 %v791, 0.0
    %v1188 = vmax.f32 %v794, 0.0
    %v1189 = vmax.f32 %v799, 0.0
    %v1190 = vmax.f32 %v802, 0.0
    %v1191 = vmax.f32 %v807, 0.0
    %v1192 = vmax.f32 %v810, 0.0
    %v1193 = vmax.f32 %v815, 0.0
    %v1194 = vmax.f32 %v818, 0.0
    %v1195 = vmax.f32 %v823, 0.0
    %v1196 = vmax.f32 %v826, 0.0
    %v1197 = vmax.f32 %v831, 0.0
    %v1198 = vmax.f32 %v834, 0.0
    %v1199 = vmax.f32 %v839, 0.0
    %v1200 = vmax.f32 %v842, 0.0
    %v1201 = vmax.f32 %v847, 0.0
    %v1202 = vmax.f32 %v850, 0.0
    %v1203 = vmax.f32 %v855, 0.0
    %v1204 = vmax.f32 %v858, 0.0
    %v1205 = vmax.f32 %v863, 0.0
    %v1206 = vmax.f32 %v866, 0.0
    %v1207 = vmax.f32 %v871, 0.0
    %v1208 = vmax.f32 %v874, 0.0
    %v1209 = vmax.f32 %v879, 0.0
    %v1210 = vmax.f32 %v882, 0.0
    %v1211 = vmax.f32 %v887, 0.0
    %v1212 = vmax.f32 %v890, 0.0
    %v1213 = vmax.f32 %v895, 0.0
    %v1214 = vmax.f32 %v898, 0.0
    %v1215 = vmax.f32 %v903, 0.0
    %v1216 = vmax.f32 %v906, 0.0
    %v1217 = vmax.f32 %v911, 0.0
    %v1218 = vmax.f32 %v914, 0.0
    %v1219 = vmax.f32 %v919, 0.0
    %v1220 = vmax.f32 %v922, 0.0
    %v1221 = vmax.f32 %v927, 0.0
    %v1222 = vmax.f32 %v930, 0.0
    %v1223 = vmax.f32 %v935, 0.0
    %v1224 = vmax.f32 %v938, 0.0
    %v1225 = vmax.f32 %v943, 0.0
    %v1226 = vmax.f32 %v946, 0.0
    %v1227 = vmax.f32 %v951, 0.0
    %v1228 = vmax.f32 %v954, 0.0
    %v1229 = vmax.f32 %v959, 0.0
    %v1230 = vmax.f32 %v962, 0.0
    %v1231 = vmax.f32 %v967, 0.0
    %v1232 = vmax.f32 %v970, 0.0
    %v1233 = vmax.f32 %v975, 0.0
    %v1234 = vmax.f32 %v978, 0.0
    %v1235 = vmax.f32 %v983, 0.0
    %v1236 = vmax.f32 %v986, 0.0
    %v1237 = vmax.f32 %v991, 0.0
    %v1238 = vmax.f32 %v994, 0.0
    %v1239 = vmax.f32 %v999, 0.0
    %v1240 = vmax.f32 %v1002, 0.0
    %v1241 = vmax.f32 %v1007, 0.0
    %v1242 = vmax.f32 %v1010, 0.0
    %v1243 = vmax.f32 %v1015, 0.0
    %v1244 = vmax.f32 %v1018, 0.0
    %v1245 = vmax.f32 %v1023, 0.0
    %v1246 = vmax.f32 %v1026, 0.0
    %v1247 = vmax.f32 %v1031, 0.0
    %v1248 = vmax.f32 %v1034, 0.0
    %v1249 = vmax.f32 %v1039, 0.0
    %v1250 = vmax.f32 %v1042, 0.0
    %v1251 = vmax.f32 %v1047, 0.0
    %v1252 = vmax.f32 %v1050, 0.0
    %v1253 = vmax.f32 %v1055, 0.0
    %v1254 = vmax.f32 %v1058, 0.0
    %v1255 = vmax.f32 %v1063, 0.0
    %v1256 = vmax.f32 %v1066, 0.0
    %v1257 = vmax.f32 %v1071, 0.0
    %v1258 = vmax.f32 %v1074, 0.0
    %v1259 = vmax.f32 %v1079, 0.0
    %v1260 = vmax.f32 %v1082, 0.0
    %v1261 = vmax.f32 %v1087, 0.0
    %v1262 = vmax.f32 %v1090, 0.0
    %v1263 = vmax.f32 %v1095, 0.0
    %v1264 = vmax.f32 %v1098, 0.0
    %v1265 = vmax.f32 %v1103, 0.0
    %v1266 = vmax.f32 %v1106, 0.0
    %v1267 = vmax.f32 %v1111, 0.0
    %v1268 = vmax.f32 %v1114, 0.0
    %v1269 = vmax.f32 %v1119, 0.0
    %v1270 = vmax.f32 %v1122, 0.0
    %v1271 = vmax.f32 %v1127, 0.0
    %v1272 = vmax.f32 %v1130, 0.0
    %v1273 = vmax.f32 %v1135, 0.0
    %v1274 = vmax.f32 %v1138, 0.0
    %v1275 = vmax.f32 %v1143, 0.0
    %v1276 = vmax.f32 %v1146, 0.0
    %v1277 = vpack.c.bf16 %v1150, %v1149
    %v1278 = vpack.c.bf16 %v1152, %v1151
    %v1279 = vpack.c.bf16 %v1154, %v1153
    %v1280 = vpack.c.bf16 %v1156, %v1155
    %v1281 = vpack.c.bf16 %v1158, %v1157
    %v1282 = vpack.c.bf16 %v1160, %v1159
    %v1283 = vpack.c.bf16 %v1162, %v1161
    %v1284 = vpack.c.bf16 %v1164, %v1163
    %v1285 = vpack.c.bf16 %v1166, %v1165
    %v1286 = vpack.c.bf16 %v1168, %v1167
    %v1287 = vpack.c.bf16 %v1170, %v1169
    %v1288 = vpack.c.bf16 %v1172, %v1171
    %v1289 = vpack.c.bf16 %v1174, %v1173
    %v1290 = vpack.c.bf16 %v1176, %v1175
    %v1291 = vpack.c.bf16 %v1178, %v1177
    %v1292 = vpack.c.bf16 %v1180, %v1179
    %v1293 = vpack.c.bf16 %v1182, %v1181
    %v1294 = vpack.c.bf16 %v1184, %v1183
    %v1295 = vpack.c.bf16 %v1186, %v1185
    %v1296 = vpack.c.bf16 %v1188, %v1187
    %v1297 = vpack.c.bf16 %v1190, %v1189
    %v1298 = vpack.c.bf16 %v1192, %v1191
    %v1299 = vpack.c.bf16 %v1194, %v1193
    %v1300 = vpack.c.bf16 %v1196, %v1195
    %v1301 = vpack.c.bf16 %v1198, %v1197
    %v1302 = vpack.c.bf16 %v1200, %v1199
    %v1303 = vpack.c.bf16 %v1202, %v1201
    %v1304 = vpack.c.bf16 %v1204, %v1203
    %v1305 = vpack.c.bf16 %v1206, %v1205
    %v1306 = vpack.c.bf16 %v1208, %v1207
    %v1307 = vpack.c.bf16 %v1210, %v1209
    %v1308 = vpack.c.bf16 %v1212, %v1211
    %v1309 = vpack.c.bf16 %v1214, %v1213
    %v1310 = vpack.c.bf16 %v1216, %v1215
    %v1311 = vpack.c.bf16 %v1218, %v1217
    %v1312 = vpack.c.bf16 %v1220, %v1219
    %v1313 = vpack.c.bf16 %v1222, %v1221
    %v1314 = vpack.c.bf16 %v1224, %v1223
    %v1315 = vpack.c.bf16 %v1226, %v1225
    %v1316 = vpack.c.bf16 %v1228, %v1227
    %v1317 = vpack.c.bf16 %v1230, %v1229
    %v1318 = vpack.c.bf16 %v1232, %v1231
    %v1319 = vpack.c.bf16 %v1234, %v1233
    %v1320 = vpack.c.bf16 %v1236, %v1235
    %v1321 = vpack.c.bf16 %v1238, %v1237
    %v1322 = vpack.c.bf16 %v1240, %v1239
    %v1323 = vpack.c.bf16 %v1242, %v1241
    %v1324 = vpack.c.bf16 %v1244, %v1243
    %v1325 = vpack.c.bf16 %v1246, %v1245
    %v1326 = vpack.c.bf16 %v1248, %v1247
    %v1327 = vpack.c.bf16 %v1250, %v1249
    %v1328 = vpack.c.bf16 %v1252, %v1251
    %v1329 = vpack.c.bf16 %v1254, %v1253
    %v1330 = vpack.c.bf16 %v1256, %v1255
    %v1331 = vpack.c.bf16 %v1258, %v1257
    %v1332 = vpack.c.bf16 %v1260, %v1259
    %v1333 = vpack.c.bf16 %v1262, %v1261
    %v1334 = vpack.c.bf16 %v1264, %v1263
    %v1335 = vpack.c.bf16 %v1266, %v1265
    %v1336 = vpack.c.bf16 %v1268, %v1267
    %v1337 = vpack.c.bf16 %v1270, %v1269
    %v1338 = vpack.c.bf16 %v1272, %v1271
    %v1339 = vpack.c.bf16 %v1274, %v1273
    %v1340 = vpack.c.bf16 %v1276, %v1275
    %v1405 = vunpack.c.l.b16 %v1277
    %v1406 = vunpack.c.h.b16 %v1277
    %v1407 = vunpack.c.l.b16 %v1278
    %v1408 = vunpack.c.h.b16 %v1278
    %v1409 = vunpack.c.l.b16 %v1279
    %v1410 = vunpack.c.h.b16 %v1279
    %v1411 = vunpack.c.l.b16 %v1280
    %v1412 = vunpack.c.h.b16 %v1280
    %v1413 = vunpack.c.l.b16 %v1281
    %v1414 = vunpack.c.h.b16 %v1281
    %v1415 = vunpack.c.l.b16 %v1282
    %v1416 = vunpack.c.h.b16 %v1282
    %v1417 = vunpack.c.l.b16 %v1283
    %v1418 = vunpack.c.h.b16 %v1283
    %v1419 = vunpack.c.l.b16 %v1284
    %v1420 = vunpack.c.h.b16 %v1284
    %v1421 = vunpack.c.l.b16 %v1285
    %v1422 = vunpack.c.h.b16 %v1285
    %v1423 = vunpack.c.l.b16 %v1286
    %v1424 = vunpack.c.h.b16 %v1286
    %v1425 = vunpack.c.l.b16 %v1287
    %v1426 = vunpack.c.h.b16 %v1287
    %v1427 = vunpack.c.l.b16 %v1288
    %v1428 = vunpack.c.h.b16 %v1288
    %v1429 = vunpack.c.l.b16 %v1289
    %v1430 = vunpack.c.h.b16 %v1289
    %v1431 = vunpack.c.l.b16 %v1290
    %v1432 = vunpack.c.h.b16 %v1290
    %v1433 = vunpack.c.l.b16 %v1291
    %v1434 = vunpack.c.h.b16 %v1291
    %v1435 = vunpack.c.l.b16 %v1292
    %v1436 = vunpack.c.h.b16 %v1292
    %v1437 = vunpack.c.l.b16 %v1293
    %v1438 = vunpack.c.h.b16 %v1293
    %v1439 = vunpack.c.l.b16 %v1294
    %v1440 = vunpack.c.h.b16 %v1294
    %v1441 = vunpack.c.l.b16 %v1295
    %v1442 = vunpack.c.h.b16 %v1295
    %v1443 = vunpack.c.l.b16 %v1296
    %v1444 = vunpack.c.h.b16 %v1296
    %v1445 = vunpack.c.l.b16 %v1297
    %v1446 = vunpack.c.h.b16 %v1297
    %v1447 = vunpack.c.l.b16 %v1298
    %v1448 = vunpack.c.h.b16 %v1298
    %v1449 = vunpack.c.l.b16 %v1299
    %v1450 = vunpack.c.h.b16 %v1299
    %v1451 = vunpack.c.l.b16 %v1300
    %v1452 = vunpack.c.h.b16 %v1300
    %v1453 = vunpack.c.l.b16 %v1301
    %v1454 = vunpack.c.h.b16 %v1301
    %v1455 = vunpack.c.l.b16 %v1302
    %v1456 = vunpack.c.h.b16 %v1302
    %v1457 = vunpack.c.l.b16 %v1303
    %v1458 = vunpack.c.h.b16 %v1303
    %v1459 = vunpack.c.l.b16 %v1304
    %v1460 = vunpack.c.h.b16 %v1304
    %v1461 = vunpack.c.l.b16 %v1305
    %v1462 = vunpack.c.h.b16 %v1305
    %v1463 = vunpack.c.l.b16 %v1306
    %v1464 = vunpack.c.h.b16 %v1306
    %v1465 = vunpack.c.l.b16 %v1307
    %v1466 = vunpack.c.h.b16 %v1307
    %v1467 = vunpack.c.l.b16 %v1308
    %v1468 = vunpack.c.h.b16 %v1308
    %v1469 = vunpack.c.l.b16 %v1309
    %v1470 = vunpack.c.h.b16 %v1309
    %v1471 = vunpack.c.l.b16 %v1310
    %v1472 = vunpack.c.h.b16 %v1310
    %v1473 = vunpack.c.l.b16 %v1311
    %v1474 = vunpack.c.h.b16 %v1311
    %v1475 = vunpack.c.l.b16 %v1312
    %v1476 = vunpack.c.h.b16 %v1312
    %v1477 = vunpack.c.l.b16 %v1313
    %v1478 = vunpack.c.h.b16 %v1313
    %v1479 = vunpack.c.l.b16 %v1314
    %v1480 = vunpack.c.h.b16 %v1314
    %v1481 = vunpack.c.l.b16 %v1315
    %v1482 = vunpack.c.h.b16 %v1315
    %v1483 = vunpack.c.l.b16 %v1316
    %v1484 = vunpack.c.h.b16 %v1316
    %v1485 = vunpack.c.l.b16 %v1317
    %v1486 = vunpack.c.h.b16 %v1317
    %v1487 = vunpack.c.l.b16 %v1318
    %v1488 = vunpack.c.h.b16 %v1318
    %v1489 = vunpack.c.l.b16 %v1319
    %v1490 = vunpack.c.h.b16 %v1319
    %v1491 = vunpack.c.l.b16 %v1320
    %v1492 = vunpack.c.h.b16 %v1320
    %v1493 = vunpack.c.l.b16 %v1321
    %v1494 = vunpack.c.h.b16 %v1321
    %v1495 = vunpack.c.l.b16 %v1322
    %v1496 = vunpack.c.h.b16 %v1322
    %v1497 = vunpack.c.l.b16 %v1323
    %v1498 = vunpack.c.h.b16 %v1323
    %v1499 = vunpack.c.l.b16 %v1324
    %v1500 = vunpack.c.h.b16 %v1324
    %v1501 = vunpack.c.l.b16 %v1325
    %v1502 = vunpack.c.h.b16 %v1325
    %v1503 = vunpack.c.l.b16 %v1326
    %v1504 = vunpack.c.h.b16 %v1326
    %v1505 = vunpack.c.l.b16 %v1327
    %v1506 = vunpack.c.h.b16 %v1327
    %v1507 = vunpack.c.l.b16 %v1328
    %v1508 = vunpack.c.h.b16 %v1328
    %v1509 = vunpack.c.l.b16 %v1329
    %v1510 = vunpack.c.h.b16 %v1329
    %v1511 = vunpack.c.l.b16 %v1330
    %v1512 = vunpack.c.h.b16 %v1330
    %v1513 = vunpack.c.l.b16 %v1331
    %v1514 = vunpack.c.h.b16 %v1331
    %v1515 = vunpack.c.l.b16 %v1332
    %v1516 = vunpack.c.h.b16 %v1332
    %v1517 = vunpack.c.l.b16 %v1333
    %v1518 = vunpack.c.h.b16 %v1333
    %v1519 = vunpack.c.l.b16 %v1334
    %v1520 = vunpack.c.h.b16 %v1334
    %v1521 = vunpack.c.l.b16 %v1335
    %v1522 = vunpack.c.h.b16 %v1335
    %v1523 = vunpack.c.l.b16 %v1336
    %v1524 = vunpack.c.h.b16 %v1336
    %v1525 = vunpack.c.l.b16 %v1337
    %v1526 = vunpack.c.h.b16 %v1337
    %v1527 = vunpack.c.l.b16 %v1338
    %v1528 = vunpack.c.h.b16 %v1338
    %v1529 = vunpack.c.l.b16 %v1339
    %v1530 = vunpack.c.h.b16 %v1339
    %v1531 = vunpack.c.l.b16 %v1340
    %v1532 = vunpack.c.h.b16 %v1340
    %v1533 = vpack.c.b16 %v1405, %v1405
    %v1534 = vpack.c.b16 %v1406, %v1406
    %v1535 = vpack.c.b16 %v1407, %v1407
    %v1536 = vpack.c.b16 %v1408, %v1408
    %v1537 = vpack.c.b16 %v1409, %v1409
    %v1538 = vpack.c.b16 %v1410, %v1410
    %v1539 = vpack.c.b16 %v1411, %v1411
    %v1540 = vpack.c.b16 %v1412, %v1412
    %v1541 = vpack.c.b16 %v1413, %v1413
    %v1542 = vpack.c.b16 %v1414, %v1414
    %v1543 = vpack.c.b16 %v1415, %v1415
    %v1544 = vpack.c.b16 %v1416, %v1416
    %v1545 = vpack.c.b16 %v1417, %v1417
    %v1546 = vpack.c.b16 %v1418, %v1418
    %v1547 = vpack.c.b16 %v1419, %v1419
    %v1548 = vpack.c.b16 %v1420, %v1420
    %v1549 = vpack.c.b16 %v1421, %v1421
    %v1550 = vpack.c.b16 %v1422, %v1422
    %v1551 = vpack.c.b16 %v1423, %v1423
    %v1552 = vpack.c.b16 %v1424, %v1424
    %v1553 = vpack.c.b16 %v1425, %v1425
    %v1554 = vpack.c.b16 %v1426, %v1426
    %v1555 = vpack.c.b16 %v1427, %v1427
    %v1556 = vpack.c.b16 %v1428, %v1428
    %v1557 = vpack.c.b16 %v1429, %v1429
    %v1558 = vpack.c.b16 %v1430, %v1430
    %v1559 = vpack.c.b16 %v1431, %v1431
    %v1560 = vpack.c.b16 %v1432, %v1432
    %v1561 = vpack.c.b16 %v1433, %v1433
    %v1562 = vpack.c.b16 %v1434, %v1434
    %v1563 = vpack.c.b16 %v1435, %v1435
    %v1564 = vpack.c.b16 %v1436, %v1436
    %v1565 = vpack.c.b16 %v1437, %v1437
    %v1566 = vpack.c.b16 %v1438, %v1438
    %v1567 = vpack.c.b16 %v1439, %v1439
    %v1568 = vpack.c.b16 %v1440, %v1440
    %v1569 = vpack.c.b16 %v1441, %v1441
    %v1570 = vpack.c.b16 %v1442, %v1442
    %v1571 = vpack.c.b16 %v1443, %v1443
    %v1572 = vpack.c.b16 %v1444, %v1444
    %v1573 = vpack.c.b16 %v1445, %v1445
    %v1574 = vpack.c.b16 %v1446, %v1446
    %v1575 = vpack.c.b16 %v1447, %v1447
    %v1576 = vpack.c.b16 %v1448, %v1448
    %v1577 = vpack.c.b16 %v1449, %v1449
    %v1578 = vpack.c.b16 %v1450, %v1450
    %v1579 = vpack.c.b16 %v1451, %v1451
    %v1580 = vpack.c.b16 %v1452, %v1452
    %v1581 = vpack.c.b16 %v1453, %v1453
    %v1582 = vpack.c.b16 %v1454, %v1454
    %v1583 = vpack.c.b16 %v1455, %v1455
    %v1584 = vpack.c.b16 %v1456, %v1456
    %v1585 = vpack.c.b16 %v1457, %v1457
    %v1586 = vpack.c.b16 %v1458, %v1458
    %v1587 = vpack.c.b16 %v1459, %v1459
    %v1588 = vpack.c.b16 %v1460, %v1460
    %v1589 = vpack.c.b16 %v1461, %v1461
    %v1590 = vpack.c.b16 %v1462, %v1462
    %v1591 = vpack.c.b16 %v1463, %v1463
    %v1592 = vpack.c.b16 %v1464, %v1464
    %v1593 = vpack.c.b16 %v1465, %v1465
    %v1594 = vpack.c.b16 %v1466, %v1466
    %v1595 = vpack.c.b16 %v1467, %v1467
    %v1596 = vpack.c.b16 %v1468, %v1468
    %v1597 = vpack.c.b16 %v1469, %v1469
    %v1598 = vpack.c.b16 %v1470, %v1470
    %v1599 = vpack.c.b16 %v1471, %v1471
    %v1600 = vpack.c.b16 %v1472, %v1472
    %v1601 = vpack.c.b16 %v1473, %v1473
    %v1602 = vpack.c.b16 %v1474, %v1474
    %v1603 = vpack.c.b16 %v1475, %v1475
    %v1604 = vpack.c.b16 %v1476, %v1476
    %v1605 = vpack.c.b16 %v1477, %v1477
    %v1606 = vpack.c.b16 %v1478, %v1478
    %v1607 = vpack.c.b16 %v1479, %v1479
    %v1608 = vpack.c.b16 %v1480, %v1480
    %v1609 = vpack.c.b16 %v1481, %v1481
    %v1610 = vpack.c.b16 %v1482, %v1482
    %v1611 = vpack.c.b16 %v1483, %v1483
    %v1612 = vpack.c.b16 %v1484, %v1484
    %v1613 = vpack.c.b16 %v1485, %v1485
    %v1614 = vpack.c.b16 %v1486, %v1486
    %v1615 = vpack.c.b16 %v1487, %v1487
    %v1616 = vpack.c.b16 %v1488, %v1488
    %v1617 = vpack.c.b16 %v1489, %v1489
    %v1618 = vpack.c.b16 %v1490, %v1490
    %v1619 = vpack.c.b16 %v1491, %v1491
    %v1620 = vpack.c.b16 %v1492, %v1492
    %v1621 = vpack.c.b16 %v1493, %v1493
    %v1622 = vpack.c.b16 %v1494, %v1494
    %v1623 = vpack.c.b16 %v1495, %v1495
    %v1624 = vpack.c.b16 %v1496, %v1496
    %v1625 = vpack.c.b16 %v1497, %v1497
    %v1626 = vpack.c.b16 %v1498, %v1498
    %v1627 = vpack.c.b16 %v1499, %v1499
    %v1628 = vpack.c.b16 %v1500, %v1500
    %v1629 = vpack.c.b16 %v1501, %v1501
    %v1630 = vpack.c.b16 %v1502, %v1502
    %v1631 = vpack.c.b16 %v1503, %v1503
    %v1632 = vpack.c.b16 %v1504, %v1504
    %v1633 = vpack.c.b16 %v1505, %v1505
    %v1634 = vpack.c.b16 %v1506, %v1506
    %v1635 = vpack.c.b16 %v1507, %v1507
    %v1636 = vpack.c.b16 %v1508, %v1508
    %v1637 = vpack.c.b16 %v1509, %v1509
    %v1638 = vpack.c.b16 %v1510, %v1510
    %v1639 = vpack.c.b16 %v1511, %v1511
    %v1640 = vpack.c.b16 %v1512, %v1512
    %v1641 = vpack.c.b16 %v1513, %v1513
    %v1642 = vpack.c.b16 %v1514, %v1514
    %v1643 = vpack.c.b16 %v1515, %v1515
    %v1644 = vpack.c.b16 %v1516, %v1516
    %v1645 = vpack.c.b16 %v1517, %v1517
    %v1646 = vpack.c.b16 %v1518, %v1518
    %v1647 = vpack.c.b16 %v1519, %v1519
    %v1648 = vpack.c.b16 %v1520, %v1520
    %v1649 = vpack.c.b16 %v1521, %v1521
    %v1650 = vpack.c.b16 %v1522, %v1522
    %v1651 = vpack.c.b16 %v1523, %v1523
    %v1652 = vpack.c.b16 %v1524, %v1524
    %v1653 = vpack.c.b16 %v1525, %v1525
    %v1654 = vpack.c.b16 %v1526, %v1526
    %v1655 = vpack.c.b16 %v1527, %v1527
    %v1656 = vpack.c.b16 %v1528, %v1528
    %v1657 = vpack.c.b16 %v1529, %v1529
    %v1658 = vpack.c.b16 %v1530, %v1530
    %v1659 = vpack.c.b16 %v1531, %v1531
    %v1660 = vpack.c.b16 %v1532, %v1532
    %1789 = vst [vmem:[%s4] sm:$0xf] %v1533
    %1790 = vst [vmem:[%s4 + $0x4] sm:$0xf] %v1534
    %1791 = vst [vmem:[%s4 + $0x8] sm:$0xf] %v1535
    %1792 = vst [vmem:[%s4 + $0xc] sm:$0xf] %v1536
    %1793 = vst [vmem:[%s4 + $0x10] sm:$0xf] %v1537
    %1794 = vst [vmem:[%s4 + $0x14] sm:$0xf] %v1538
    %1795 = vst [vmem:[%s4 + $0x18] sm:$0xf] %v1539
    %1796 = vst [vmem:[%s4 + $0x1c] sm:$0xf] %v1540
    %1797 = vst [vmem:[%s4 + $0x20] sm:$0xf] %v1541
    %1798 = vst [vmem:[%s4 + $0x24] sm:$0xf] %v1542
    %1799 = vst [vmem:[%s4 + $0x28] sm:$0xf] %v1543
    %1800 = vst [vmem:[%s4 + $0x2c] sm:$0xf] %v1544
    %1801 = vst [vmem:[%s4 + $0x30] sm:$0xf] %v1545
    %1802 = vst [vmem:[%s4 + $0x34] sm:$0xf] %v1546
    %1803 = vst [vmem:[%s4 + $0x38] sm:$0xf] %v1547
    %1804 = vst [vmem:[%s4 + $0x3c] sm:$0xf] %v1548
    %1805 = vst [vmem:[%s4 + $0x40] sm:$0xf] %v1549
    %1806 = vst [vmem:[%s4 + $0x44] sm:$0xf] %v1550
    %1807 = vst [vmem:[%s4 + $0x48] sm:$0xf] %v1551
    %1808 = vst [vmem:[%s4 + $0x4c] sm:$0xf] %v1552
    %1809 = vst [vmem:[%s4 + $0x50] sm:$0xf] %v1553
    %1810 = vst [vmem:[%s4 + $0x54] sm:$0xf] %v1554
    %1811 = vst [vmem:[%s4 + $0x58] sm:$0xf] %v1555
    %1812 = vst [vmem:[%s4 + $0x5c] sm:$0xf] %v1556
    %1813 = vst [vmem:[%s4 + $0x60] sm:$0xf] %v1557
    %1814 = vst [vmem:[%s4 + $0x64] sm:$0xf] %v1558
    %1815 = vst [vmem:[%s4 + $0x68] sm:$0xf] %v1559
    %1816 = vst [vmem:[%s4 + $0x6c] sm:$0xf] %v1560
    %1817 = vst [vmem:[%s4 + $0x70] sm:$0xf] %v1561
    %1818 = vst [vmem:[%s4 + $0x74] sm:$0xf] %v1562
    %1819 = vst [vmem:[%s4 + $0x78] sm:$0xf] %v1563
    %1820 = vst [vmem:[%s4 + $0x7c] sm:$0xf] %v1564
    %1821 = vst [vmem:[%s4 + $0x80] sm:$0xf] %v1565
    %1822 = vst [vmem:[%s4 + $0x84] sm:$0xf] %v1566
    %1823 = vst [vmem:[%s4 + $0x88] sm:$0xf] %v1567
    %1824 = vst [vmem:[%s4 + $0x8c] sm:$0xf] %v1568
    %1825 = vst [vmem:[%s4 + $0x90] sm:$0xf] %v1569
    %1826 = vst [vmem:[%s4 + $0x94] sm:$0xf] %v1570
    %1827 = vst [vmem:[%s4 + $0x98] sm:$0xf] %v1571
    %1828 = vst [vmem:[%s4 + $0x9c] sm:$0xf] %v1572
    %1829 = vst [vmem:[%s4 + $0xa0] sm:$0xf] %v1573
    %1830 = vst [vmem:[%s4 + $0xa4] sm:$0xf] %v1574
    %1831 = vst [vmem:[%s4 + $0xa8] sm:$0xf] %v1575
    %1832 = vst [vmem:[%s4 + $0xac] sm:$0xf] %v1576
    %1833 = vst [vmem:[%s4 + $0xb0] sm:$0xf] %v1577
    %1834 = vst [vmem:[%s4 + $0xb4] sm:$0xf] %v1578
    %1835 = vst [vmem:[%s4 + $0xb8] sm:$0xf] %v1579
    %1836 = vst [vmem:[%s4 + $0xbc] sm:$0xf] %v1580
    %1837 = vst [vmem:[%s4 + $0xc0] sm:$0xf] %v1581
    %1838 = vst [vmem:[%s4 + $0xc4] sm:$0xf] %v1582
    %1839 = vst [vmem:[%s4 + $0xc8] sm:$0xf] %v1583
    %1840 = vst [vmem:[%s4 + $0xcc] sm:$0xf] %v1584
    %1841 = vst [vmem:[%s4 + $0xd0] sm:$0xf] %v1585
    %1842 = vst [vmem:[%s4 + $0xd4] sm:$0xf] %v1586
    %1843 = vst [vmem:[%s4 + $0xd8] sm:$0xf] %v1587
    %1844 = vst [vmem:[%s4 + $0xdc] sm:$0xf] %v1588
    %1845 = vst [vmem:[%s4 + $0xe0] sm:$0xf] %v1589
    %1846 = vst [vmem:[%s4 + $0xe4] sm:$0xf] %v1590
    %1847 = vst [vmem:[%s4 + $0xe8] sm:$0xf] %v1591
    %1848 = vst [vmem:[%s4 + $0xec] sm:$0xf] %v1592
    %1849 = vst [vmem:[%s4 + $0xf0] sm:$0xf] %v1593
    %1850 = vst [vmem:[%s4 + $0xf4] sm:$0xf] %v1594
    %1851 = vst [vmem:[%s4 + $0xf8] sm:$0xf] %v1595
    %1852 = vst [vmem:[%s4 + $0xfc] sm:$0xf] %v1596
    %1853 = vst [vmem:[%s4 + $0x100] sm:$0xf] %v1597
    %1854 = vst [vmem:[%s4 + $0x104] sm:$0xf] %v1598
    %1855 = vst [vmem:[%s4 + $0x108] sm:$0xf] %v1599
    %1856 = vst [vmem:[%s4 + $0x10c] sm:$0xf] %v1600
    %1857 = vst [vmem:[%s4 + $0x110] sm:$0xf] %v1601
    %1858 = vst [vmem:[%s4 + $0x114] sm:$0xf] %v1602
    %1859 = vst [vmem:[%s4 + $0x118] sm:$0xf] %v1603
    %1860 = vst [vmem:[%s4 + $0x11c] sm:$0xf] %v1604
    %1861 = vst [vmem:[%s4 + $0x120] sm:$0xf] %v1605
    %1862 = vst [vmem:[%s4 + $0x124] sm:$0xf] %v1606
    %1863 = vst [vmem:[%s4 + $0x128] sm:$0xf] %v1607
    %1864 = vst [vmem:[%s4 + $0x12c] sm:$0xf] %v1608
    %1865 = vst [vmem:[%s4 + $0x130] sm:$0xf] %v1609
    %1866 = vst [vmem:[%s4 + $0x134] sm:$0xf] %v1610
    %1867 = vst [vmem:[%s4 + $0x138] sm:$0xf] %v1611
    %1868 = vst [vmem:[%s4 + $0x13c] sm:$0xf] %v1612
    %1869 = vst [vmem:[%s4 + $0x140] sm:$0xf] %v1613
    %1870 = vst [vmem:[%s4 + $0x144] sm:$0xf] %v1614
    %1871 = vst [vmem:[%s4 + $0x148] sm:$0xf] %v1615
    %1872 = vst [vmem:[%s4 + $0x14c] sm:$0xf] %v1616
    %1873 = vst [vmem:[%s4 + $0x150] sm:$0xf] %v1617
    %1874 = vst [vmem:[%s4 + $0x154] sm:$0xf] %v1618
    %1875 = vst [vmem:[%s4 + $0x158] sm:$0xf] %v1619
    %1876 = vst [vmem:[%s4 + $0x15c] sm:$0xf] %v1620
    %1877 = vst [vmem:[%s4 + $0x160] sm:$0xf] %v1621
    %1878 = vst [vmem:[%s4 + $0x164] sm:$0xf] %v1622
    %1879 = vst [vmem:[%s4 + $0x168] sm:$0xf] %v1623
    %1880 = vst [vmem:[%s4 + $0x16c] sm:$0xf] %v1624
    %1881 = vst [vmem:[%s4 + $0x170] sm:$0xf] %v1625
    %1882 = vst [vmem:[%s4 + $0x174] sm:$0xf] %v1626
    %1883 = vst [vmem:[%s4 + $0x178] sm:$0xf] %v1627
    %1884 = vst [vmem:[%s4 + $0x17c] sm:$0xf] %v1628
    %1885 = vst [vmem:[%s4 + $0x180] sm:$0xf] %v1629
    %1886 = vst [vmem:[%s4 + $0x184] sm:$0xf] %v1630
    %1887 = vst [vmem:[%s4 + $0x188] sm:$0xf] %v1631
    %1888 = vst [vmem:[%s4 + $0x18c] sm:$0xf] %v1632
    %1889 = vst [vmem:[%s4 + $0x190] sm:$0xf] %v1633
    %1890 = vst [vmem:[%s4 + $0x194] sm:$0xf] %v1634
    %1891 = vst [vmem:[%s4 + $0x198] sm:$0xf] %v1635
    %1892 = vst [vmem:[%s4 + $0x19c] sm:$0xf] %v1636
    %1893 = vst [vmem:[%s4 + $0x1a0] sm:$0xf] %v1637
    %1894 = vst [vmem:[%s4 + $0x1a4] sm:$0xf] %v1638
    %1895 = vst [vmem:[%s4 + $0x1a8] sm:$0xf] %v1639
    %1896 = vst [vmem:[%s4 + $0x1ac] sm:$0xf] %v1640
    %1897 = vst [vmem:[%s4 + $0x1b0] sm:$0xf] %v1641
    %1898 = vst [vmem:[%s4 + $0x1b4] sm:$0xf] %v1642
    %1899 = vst [vmem:[%s4 + $0x1b8] sm:$0xf] %v1643
    %1900 = vst [vmem:[%s4 + $0x1bc] sm:$0xf] %v1644
    %1901 = vst [vmem:[%s4 + $0x1c0] sm:$0xf] %v1645
    %1902 = vst [vmem:[%s4 + $0x1c4] sm:$0xf] %v1646
    %1903 = vst [vmem:[%s4 + $0x1c8] sm:$0xf] %v1647
    %1904 = vst [vmem:[%s4 + $0x1cc] sm:$0xf] %v1648
    %1905 = vst [vmem:[%s4 + $0x1d0] sm:$0xf] %v1649
    %1906 = vst [vmem:[%s4 + $0x1d4] sm:$0xf] %v1650
    %1907 = vst [vmem:[%s4 + $0x1d8] sm:$0xf] %v1651
    %1908 = vst [vmem:[%s4 + $0x1dc] sm:$0xf] %v1652
    %1909 = vst [vmem:[%s4 + $0x1e0] sm:$0xf] %v1653
    %1910 = vst [vmem:[%s4 + $0x1e4] sm:$0xf] %v1654
    %1911 = vst [vmem:[%s4 + $0x1e8] sm:$0xf] %v1655
    %1912 = vst [vmem:[%s4 + $0x1ec] sm:$0xf] %v1656
    %1913 = vst [vmem:[%s4 + $0x1f0] sm:$0xf] %v1657
    %1914 = vst [vmem:[%s4 + $0x1f4] sm:$0xf] %v1658
    %1915 = vst [vmem:[%s4 + $0x1f8] sm:$0xf] %v1659
    %1916 = vst [vmem:[%s4 + $0x1fc] sm:$0xf] %v1660
    %v1917 = vmul.f32 %v1149, %v1149
    %v1918 = vmul.f32 %v1150, %v1150
    %v1919 = vmul.f32 %v1151, %v1151
    %v1920 = vmul.f32 %v1152, %v1152
    %v1921 = vmul.f32 %v1153, %v1153
    %v1922 = vmul.f32 %v1154, %v1154
    %v1923 = vmul.f32 %v1155, %v1155
    %v1924 = vmul.f32 %v1156, %v1156
    %v1925 = vmul.f32 %v1157, %v1157
    %v1926 = vmul.f32 %v1158, %v1158
    %v1927 = vmul.f32 %v1159, %v1159
    %v1928 = vmul.f32 %v1160, %v1160
    %v1929 = vmul.f32 %v1161, %v1161
    %v1930 = vmul.f32 %v1162, %v1162
    %v1931 = vmul.f32 %v1163, %v1163
    %v1932 = vmul.f32 %v1164, %v1164
    %v1933 = vmul.f32 %v1165, %v1165
    %v1934 = vmul.f32 %v1166, %v1166
    %v1935 = vmul.f32 %v1167, %v1167
    %v1936 = vmul.f32 %v1168, %v1168
    %v1937 = vmul.f32 %v1169, %v1169
    %v1938 = vmul.f32 %v1170, %v1170
    %v1939 = vmul.f32 %v1171, %v1171
    %v1940 = vmul.f32 %v1172, %v1172
    %v1941 = vmul.f32 %v1173, %v1173
    %v1942 = vmul.f32 %v1174, %v1174
    %v1943 = vmul.f32 %v1175, %v1175
    %v1944 = vmul.f32 %v1176, %v1176
    %v1945 = vmul.f32 %v1177, %v1177
    %v1946 = vmul.f32 %v1178, %v1178
    %v1947 = vmul.f32 %v1179, %v1179
    %v1948 = vmul.f32 %v1180, %v1180
    %v1949 = vmul.f32 %v1181, %v1181
    %v1950 = vmul.f32 %v1182, %v1182
    %v1951 = vmul.f32 %v1183, %v1183
    %v1952 = vmul.f32 %v1184, %v1184
    %v1953 = vmul.f32 %v1185, %v1185
    %v1954 = vmul.f32 %v1186, %v1186
    %v1955 = vmul.f32 %v1187, %v1187
    %v1956 = vmul.f32 %v1188, %v1188
    %v1957 = vmul.f32 %v1189, %v1189
    %v1958 = vmul.f32 %v1190, %v1190
    %v1959 = vmul.f32 %v1191, %v1191
    %v1960 = vmul.f32 %v1192, %v1192
    %v1961 = vmul.f32 %v1193, %v1193
    %v1962 = vmul.f32 %v1194, %v1194
    %v1963 = vmul.f32 %v1195, %v1195
    %v1964 = vmul.f32 %v1196, %v1196
    %v1965 = vmul.f32 %v1197, %v1197
    %v1966 = vmul.f32 %v1198, %v1198
    %v1967 = vmul.f32 %v1199, %v1199
    %v1968 = vmul.f32 %v1200, %v1200
    %v1969 = vmul.f32 %v1201, %v1201
    %v1970 = vmul.f32 %v1202, %v1202
    %v1971 = vmul.f32 %v1203, %v1203
    %v1972 = vmul.f32 %v1204, %v1204
    %v1973 = vmul.f32 %v1205, %v1205
    %v1974 = vmul.f32 %v1206, %v1206
    %v1975 = vmul.f32 %v1207, %v1207
    %v1976 = vmul.f32 %v1208, %v1208
    %v1977 = vmul.f32 %v1209, %v1209
    %v1978 = vmul.f32 %v1210, %v1210
    %v1979 = vmul.f32 %v1211, %v1211
    %v1980 = vmul.f32 %v1212, %v1212
    %1981 = vadd.xlane.f32.xlu0 %v1917
    %v1982 = vpop.xlane.xlu0 %1981
    %1983 = vadd.xlane.f32.xlu0 %v1918
    %v1984 = vpop.xlane.xlu0 %1983
    %1985 = vadd.xlane.f32.xlu0 %v1919
    %v1986 = vpop.xlane.xlu0 %1985
    %1987 = vadd.xlane.f32.xlu0 %v1920
    %v1988 = vpop.xlane.xlu0 %1987
    %1989 = vadd.xlane.f32.xlu0 %v1921
    %v1990 = vpop.xlane.xlu0 %1989
    %1991 = vadd.xlane.f32.xlu0 %v1922
    %v1992 = vpop.xlane.xlu0 %1991
    %1993 = vadd.xlane.f32.xlu0 %v1923
    %v1994 = vpop.xlane.xlu0 %1993
    %1995 = vadd.xlane.f32.xlu0 %v1924
    %v1996 = vpop.xlane.xlu0 %1995
    %1997 = vadd.xlane.f32.xlu0 %v1925
    %v1998 = vpop.xlane.xlu0 %1997
    %1999 = vadd.xlane.f32.xlu0 %v1926
    %v2000 = vpop.xlane.xlu0 %1999
    %2001 = vadd.xlane.f32.xlu0 %v1927
    %v2002 = vpop.xlane.xlu0 %2001
    %2003 = vadd.xlane.f32.xlu0 %v1928
    %v2004 = vpop.xlane.xlu0 %2003
    %2005 = vadd.xlane.f32.xlu0 %v1929
    %v2006 = vpop.xlane.xlu0 %2005
    %2007 = vadd.xlane.f32.xlu0 %v1930
    %v2008 = vpop.xlane.xlu0 %2007
    %2009 = vadd.xlane.f32.xlu0 %v1931
    %v2010 = vpop.xlane.xlu0 %2009
    %2011 = vadd.xlane.f32.xlu0 %v1932
    %v2012 = vpop.xlane.xlu0 %2011
    %2013 = vadd.xlane.f32.xlu0 %v1933
    %v2014 = vpop.xlane.xlu0 %2013
    %2015 = vadd.xlane.f32.xlu0 %v1934
    %v2016 = vpop.xlane.xlu0 %2015
    %2017 = vadd.xlane.f32.xlu0 %v1935
    %v2018 = vpop.xlane.xlu0 %2017
    %2019 = vadd.xlane.f32.xlu0 %v1936
    %v2020 = vpop.xlane.xlu0 %2019
    %2021 = vadd.xlane.f32.xlu0 %v1937
    %v2022 = vpop.xlane.xlu0 %2021
    %2023 = vadd.xlane.f32.xlu0 %v1938
    %v2024 = vpop.xlane.xlu0 %2023
    %2025 = vadd.xlane.f32.xlu0 %v1939
    %v2026 = vpop.xlane.xlu0 %2025
    %2027 = vadd.xlane.f32.xlu0 %v1940
    %v2028 = vpop.xlane.xlu0 %2027
    %2029 = vadd.xlane.f32.xlu0 %v1941
    %v2030 = vpop.xlane.xlu0 %2029
    %2031 = vadd.xlane.f32.xlu0 %v1942
    %v2032 = vpop.xlane.xlu0 %2031
    %2033 = vadd.xlane.f32.xlu0 %v1943
    %v2034 = vpop.xlane.xlu0 %2033
    %2035 = vadd.xlane.f32.xlu0 %v1944
    %v2036 = vpop.xlane.xlu0 %2035
    %2037 = vadd.xlane.f32.xlu0 %v1945
    %v2038 = vpop.xlane.xlu0 %2037
    %2039 = vadd.xlane.f32.xlu0 %v1946
    %v2040 = vpop.xlane.xlu0 %2039
    %2041 = vadd.xlane.f32.xlu0 %v1947
    %v2042 = vpop.xlane.xlu0 %2041
    %2043 = vadd.xlane.f32.xlu0 %v1948
    %v2044 = vpop.xlane.xlu0 %2043
    %2045 = vadd.xlane.f32.xlu0 %v1949
    %v2046 = vpop.xlane.xlu0 %2045
    %2047 = vadd.xlane.f32.xlu0 %v1950
    %v2048 = vpop.xlane.xlu0 %2047
    %2049 = vadd.xlane.f32.xlu0 %v1951
    %v2050 = vpop.xlane.xlu0 %2049
    %2051 = vadd.xlane.f32.xlu0 %v1952
    %v2052 = vpop.xlane.xlu0 %2051
    %2053 = vadd.xlane.f32.xlu0 %v1953
    %v2054 = vpop.xlane.xlu0 %2053
    %2055 = vadd.xlane.f32.xlu0 %v1954
    %v2056 = vpop.xlane.xlu0 %2055
    %2057 = vadd.xlane.f32.xlu0 %v1955
    %v2058 = vpop.xlane.xlu0 %2057
    %2059 = vadd.xlane.f32.xlu0 %v1956
    %v2060 = vpop.xlane.xlu0 %2059
    %2061 = vadd.xlane.f32.xlu0 %v1957
    %v2062 = vpop.xlane.xlu0 %2061
    %2063 = vadd.xlane.f32.xlu0 %v1958
    %v2064 = vpop.xlane.xlu0 %2063
    %2065 = vadd.xlane.f32.xlu0 %v1959
    %v2066 = vpop.xlane.xlu0 %2065
    %2067 = vadd.xlane.f32.xlu0 %v1960
    %v2068 = vpop.xlane.xlu0 %2067
    %2069 = vadd.xlane.f32.xlu0 %v1961
    %v2070 = vpop.xlane.xlu0 %2069
    %2071 = vadd.xlane.f32.xlu0 %v1962
    %v2072 = vpop.xlane.xlu0 %2071
    %2073 = vadd.xlane.f32.xlu0 %v1963
    %v2074 = vpop.xlane.xlu0 %2073
    %2075 = vadd.xlane.f32.xlu0 %v1964
    %v2076 = vpop.xlane.xlu0 %2075
    %2077 = vadd.xlane.f32.xlu0 %v1965
    %v2078 = vpop.xlane.xlu0 %2077
    %2079 = vadd.xlane.f32.xlu0 %v1966
    %v2080 = vpop.xlane.xlu0 %2079
    %2081 = vadd.xlane.f32.xlu0 %v1967
    %v2082 = vpop.xlane.xlu0 %2081
    %2083 = vadd.xlane.f32.xlu0 %v1968
    %v2084 = vpop.xlane.xlu0 %2083
    %2085 = vadd.xlane.f32.xlu0 %v1969
    %v2086 = vpop.xlane.xlu0 %2085
    %2087 = vadd.xlane.f32.xlu0 %v1970
    %v2088 = vpop.xlane.xlu0 %2087
    %2089 = vadd.xlane.f32.xlu0 %v1971
    %v2090 = vpop.xlane.xlu0 %2089
    %2091 = vadd.xlane.f32.xlu0 %v1972
    %v2092 = vpop.xlane.xlu0 %2091
    %2093 = vadd.xlane.f32.xlu0 %v1973
    %v2094 = vpop.xlane.xlu0 %2093
    %2095 = vadd.xlane.f32.xlu0 %v1974
    %v2096 = vpop.xlane.xlu0 %2095
    %2097 = vadd.xlane.f32.xlu0 %v1975
    %v2098 = vpop.xlane.xlu0 %2097
    %2099 = vadd.xlane.f32.xlu0 %v1976
    %v2100 = vpop.xlane.xlu0 %2099
    %2101 = vadd.xlane.f32.xlu0 %v1977
    %v2102 = vpop.xlane.xlu0 %2101
    %2103 = vadd.xlane.f32.xlu0 %v1978
    %v2104 = vpop.xlane.xlu0 %2103
    %2105 = vadd.xlane.f32.xlu0 %v1979
    %v2106 = vpop.xlane.xlu0 %2105
    %2107 = vadd.xlane.f32.xlu0 %v1980
    %v2108 = vpop.xlane.xlu0 %2107
    %v2109 = vadd.f32 %v1982, 1e-10
    %v2110 = vadd.f32 %v1984, 1e-10
    %v2111 = vadd.f32 %v1986, 1e-10
    %v2112 = vadd.f32 %v1988, 1e-10
    %v2113 = vadd.f32 %v1990, 1e-10
    %v2114 = vadd.f32 %v1992, 1e-10
    %v2115 = vadd.f32 %v1994, 1e-10
    %v2116 = vadd.f32 %v1996, 1e-10
    %v2117 = vadd.f32 %v1998, 1e-10
    %v2118 = vadd.f32 %v2000, 1e-10
    %v2119 = vadd.f32 %v2002, 1e-10
    %v2120 = vadd.f32 %v2004, 1e-10
    %v2121 = vadd.f32 %v2006, 1e-10
    %v2122 = vadd.f32 %v2008, 1e-10
    %v2123 = vadd.f32 %v2010, 1e-10
    %v2124 = vadd.f32 %v2012, 1e-10
    %v2125 = vadd.f32 %v2014, 1e-10
    %v2126 = vadd.f32 %v2016, 1e-10
    %v2127 = vadd.f32 %v2018, 1e-10
    %v2128 = vadd.f32 %v2020, 1e-10
    %v2129 = vadd.f32 %v2022, 1e-10
    %v2130 = vadd.f32 %v2024, 1e-10
    %v2131 = vadd.f32 %v2026, 1e-10
    %v2132 = vadd.f32 %v2028, 1e-10
    %v2133 = vadd.f32 %v2030, 1e-10
    %v2134 = vadd.f32 %v2032, 1e-10
    %v2135 = vadd.f32 %v2034, 1e-10
    %v2136 = vadd.f32 %v2036, 1e-10
    %v2137 = vadd.f32 %v2038, 1e-10
    %v2138 = vadd.f32 %v2040, 1e-10
    %v2139 = vadd.f32 %v2042, 1e-10
    %v2140 = vadd.f32 %v2044, 1e-10
    %v2141 = vadd.f32 %v2046, 1e-10
    %v2142 = vadd.f32 %v2048, 1e-10
    %v2143 = vadd.f32 %v2050, 1e-10
    %v2144 = vadd.f32 %v2052, 1e-10
    %v2145 = vadd.f32 %v2054, 1e-10
    %v2146 = vadd.f32 %v2056, 1e-10
    %v2147 = vadd.f32 %v2058, 1e-10
    %v2148 = vadd.f32 %v2060, 1e-10
    %v2149 = vadd.f32 %v2062, 1e-10
    %v2150 = vadd.f32 %v2064, 1e-10
    %v2151 = vadd.f32 %v2066, 1e-10
    %v2152 = vadd.f32 %v2068, 1e-10
    %v2153 = vadd.f32 %v2070, 1e-10
    %v2154 = vadd.f32 %v2072, 1e-10
    %v2155 = vadd.f32 %v2074, 1e-10
    %v2156 = vadd.f32 %v2076, 1e-10
    %v2157 = vadd.f32 %v2078, 1e-10
    %v2158 = vadd.f32 %v2080, 1e-10
    %v2159 = vadd.f32 %v2082, 1e-10
    %v2160 = vadd.f32 %v2084, 1e-10
    %v2161 = vadd.f32 %v2086, 1e-10
    %v2162 = vadd.f32 %v2088, 1e-10
    %v2163 = vadd.f32 %v2090, 1e-10
    %v2164 = vadd.f32 %v2092, 1e-10
    %v2165 = vadd.f32 %v2094, 1e-10
    %v2166 = vadd.f32 %v2096, 1e-10
    %v2167 = vadd.f32 %v2098, 1e-10
    %v2168 = vadd.f32 %v2100, 1e-10
    %v2169 = vadd.f32 %v2102, 1e-10
    %v2170 = vadd.f32 %v2104, 1e-10
    %v2171 = vadd.f32 %v2106, 1e-10
    %v2172 = vadd.f32 %v2108, 1e-10
    %v2173 = vrsqrt.pop %v2109
    %v2174 = vrsqrt.pop %v2110
    %v2175 = vrsqrt.pop %v2111
    %v2176 = vrsqrt.pop %v2112
    %v2177 = vrsqrt.pop %v2113
    %v2178 = vrsqrt.pop %v2114
    %v2179 = vrsqrt.pop %v2115
    %v2180 = vrsqrt.pop %v2116
    %v2181 = vrsqrt.pop %v2117
    %v2182 = vrsqrt.pop %v2118
    %v2183 = vrsqrt.pop %v2119
    %v2184 = vrsqrt.pop %v2120
    %v2185 = vrsqrt.pop %v2121
    %v2186 = vrsqrt.pop %v2122
    %v2187 = vrsqrt.pop %v2123
    %v2188 = vrsqrt.pop %v2124
    %v2189 = vrsqrt.pop %v2125
    %v2190 = vrsqrt.pop %v2126
    %v2191 = vrsqrt.pop %v2127
    %v2192 = vrsqrt.pop %v2128
    %v2193 = vrsqrt.pop %v2129
    %v2194 = vrsqrt.pop %v2130
    %v2195 = vrsqrt.pop %v2131
    %v2196 = vrsqrt.pop %v2132
    %v2197 = vrsqrt.pop %v2133
    %v2198 = vrsqrt.pop %v2134
    %v2199 = vrsqrt.pop %v2135
    %v2200 = vrsqrt.pop %v2136
    %v2201 = vrsqrt.pop %v2137
    %v2202 = vrsqrt.pop %v2138
    %v2203 = vrsqrt.pop %v2139
    %v2204 = vrsqrt.pop %v2140
    %v2205 = vrsqrt.pop %v2141
    %v2206 = vrsqrt.pop %v2142
    %v2207 = vrsqrt.pop %v2143
    %v2208 = vrsqrt.pop %v2144
    %v2209 = vrsqrt.pop %v2145
    %v2210 = vrsqrt.pop %v2146
    %v2211 = vrsqrt.pop %v2147
    %v2212 = vrsqrt.pop %v2148
    %v2213 = vrsqrt.pop %v2149
    %v2214 = vrsqrt.pop %v2150
    %v2215 = vrsqrt.pop %v2151
    %v2216 = vrsqrt.pop %v2152
    %v2217 = vrsqrt.pop %v2153
    %v2218 = vrsqrt.pop %v2154
    %v2219 = vrsqrt.pop %v2155
    %v2220 = vrsqrt.pop %v2156
    %v2221 = vrsqrt.pop %v2157
    %v2222 = vrsqrt.pop %v2158
    %v2223 = vrsqrt.pop %v2159
    %v2224 = vrsqrt.pop %v2160
    %v2225 = vrsqrt.pop %v2161
    %v2226 = vrsqrt.pop %v2162
    %v2227 = vrsqrt.pop %v2163
    %v2228 = vrsqrt.pop %v2164
    %v2229 = vrsqrt.pop %v2165
    %v2230 = vrsqrt.pop %v2166
    %v2231 = vrsqrt.pop %v2167
    %v2232 = vrsqrt.pop %v2168
    %v2233 = vrsqrt.pop %v2169
    %v2234 = vrsqrt.pop %v2170
    %v2235 = vrsqrt.pop %v2171
    %v2236 = vrsqrt.pop %v2172
    %v2237 = vmul.f32 %v1149, %v2173
    %v2238 = vmul.f32 %v1150, %v2174
    %v2239 = vmul.f32 %v1151, %v2175
    %v2240 = vmul.f32 %v1152, %v2176
    %v2241 = vmul.f32 %v1153, %v2177
    %v2242 = vmul.f32 %v1154, %v2178
    %v2243 = vmul.f32 %v1155, %v2179
    %v2244 = vmul.f32 %v1156, %v2180
    %v2245 = vmul.f32 %v1157, %v2181
    %v2246 = vmul.f32 %v1158, %v2182
    %v2247 = vmul.f32 %v1159, %v2183
    %v2248 = vmul.f32 %v1160, %v2184
    %v2249 = vmul.f32 %v1161, %v2185
    %v2250 = vmul.f32 %v1162, %v2186
    %v2251 = vmul.f32 %v1163, %v2187
    %v2252 = vmul.f32 %v1164, %v2188
    %v2253 = vmul.f32 %v1165, %v2189
    %v2254 = vmul.f32 %v1166, %v2190
    %v2255 = vmul.f32 %v1167, %v2191
    %v2256 = vmul.f32 %v1168, %v2192
    %v2257 = vmul.f32 %v1169, %v2193
    %v2258 = vmul.f32 %v1170, %v2194
    %v2259 = vmul.f32 %v1171, %v2195
    %v2260 = vmul.f32 %v1172, %v2196
    %v2261 = vmul.f32 %v1173, %v2197
    %v2262 = vmul.f32 %v1174, %v2198
    %v2263 = vmul.f32 %v1175, %v2199
    %v2264 = vmul.f32 %v1176, %v2200
    %v2265 = vmul.f32 %v1177, %v2201
    %v2266 = vmul.f32 %v1178, %v2202
    %v2267 = vmul.f32 %v1179, %v2203
    %v2268 = vmul.f32 %v1180, %v2204
    %v2269 = vmul.f32 %v1181, %v2205
    %v2270 = vmul.f32 %v1182, %v2206
    %v2271 = vmul.f32 %v1183, %v2207
    %v2272 = vmul.f32 %v1184, %v2208
    %v2273 = vmul.f32 %v1185, %v2209
    %v2274 = vmul.f32 %v1186, %v2210
    %v2275 = vmul.f32 %v1187, %v2211
    %v2276 = vmul.f32 %v1188, %v2212
    %v2277 = vmul.f32 %v1189, %v2213
    %v2278 = vmul.f32 %v1190, %v2214
    %v2279 = vmul.f32 %v1191, %v2215
    %v2280 = vmul.f32 %v1192, %v2216
    %v2281 = vmul.f32 %v1193, %v2217
    %v2282 = vmul.f32 %v1194, %v2218
    %v2283 = vmul.f32 %v1195, %v2219
    %v2284 = vmul.f32 %v1196, %v2220
    %v2285 = vmul.f32 %v1197, %v2221
    %v2286 = vmul.f32 %v1198, %v2222
    %v2287 = vmul.f32 %v1199, %v2223
    %v2288 = vmul.f32 %v1200, %v2224
    %v2289 = vmul.f32 %v1201, %v2225
    %v2290 = vmul.f32 %v1202, %v2226
    %v2291 = vmul.f32 %v1203, %v2227
    %v2292 = vmul.f32 %v1204, %v2228
    %v2293 = vmul.f32 %v1205, %v2229
    %v2294 = vmul.f32 %v1206, %v2230
    %v2295 = vmul.f32 %v1207, %v2231
    %v2296 = vmul.f32 %v1208, %v2232
    %v2297 = vmul.f32 %v1209, %v2233
    %v2298 = vmul.f32 %v1210, %v2234
    %v2299 = vmul.f32 %v1211, %v2235
    %v2300 = vmul.f32 %v1212, %v2236
    %v2301 = vmul.f32 %v1213, %v1213
    %v2302 = vmul.f32 %v1214, %v1214
    %v2303 = vmul.f32 %v1215, %v1215
    %v2304 = vmul.f32 %v1216, %v1216
    %v2305 = vmul.f32 %v1217, %v1217
    %v2306 = vmul.f32 %v1218, %v1218
    %v2307 = vmul.f32 %v1219, %v1219
    %v2308 = vmul.f32 %v1220, %v1220
    %v2309 = vmul.f32 %v1221, %v1221
    %v2310 = vmul.f32 %v1222, %v1222
    %v2311 = vmul.f32 %v1223, %v1223
    %v2312 = vmul.f32 %v1224, %v1224
    %v2313 = vmul.f32 %v1225, %v1225
    %v2314 = vmul.f32 %v1226, %v1226
    %v2315 = vmul.f32 %v1227, %v1227
    %v2316 = vmul.f32 %v1228, %v1228
    %v2317 = vmul.f32 %v1229, %v1229
    %v2318 = vmul.f32 %v1230, %v1230
    %v2319 = vmul.f32 %v1231, %v1231
    %v2320 = vmul.f32 %v1232, %v1232
    %v2321 = vmul.f32 %v1233, %v1233
    %v2322 = vmul.f32 %v1234, %v1234
    %v2323 = vmul.f32 %v1235, %v1235
    %v2324 = vmul.f32 %v1236, %v1236
    %v2325 = vmul.f32 %v1237, %v1237
    %v2326 = vmul.f32 %v1238, %v1238
    %v2327 = vmul.f32 %v1239, %v1239
    %v2328 = vmul.f32 %v1240, %v1240
    %v2329 = vmul.f32 %v1241, %v1241
    %v2330 = vmul.f32 %v1242, %v1242
    %v2331 = vmul.f32 %v1243, %v1243
    %v2332 = vmul.f32 %v1244, %v1244
    %v2333 = vmul.f32 %v1245, %v1245
    %v2334 = vmul.f32 %v1246, %v1246
    %v2335 = vmul.f32 %v1247, %v1247
    %v2336 = vmul.f32 %v1248, %v1248
    %v2337 = vmul.f32 %v1249, %v1249
    %v2338 = vmul.f32 %v1250, %v1250
    %v2339 = vmul.f32 %v1251, %v1251
    %v2340 = vmul.f32 %v1252, %v1252
    %v2341 = vmul.f32 %v1253, %v1253
    %v2342 = vmul.f32 %v1254, %v1254
    %v2343 = vmul.f32 %v1255, %v1255
    %v2344 = vmul.f32 %v1256, %v1256
    %v2345 = vmul.f32 %v1257, %v1257
    %v2346 = vmul.f32 %v1258, %v1258
    %v2347 = vmul.f32 %v1259, %v1259
    %v2348 = vmul.f32 %v1260, %v1260
    %v2349 = vmul.f32 %v1261, %v1261
    %v2350 = vmul.f32 %v1262, %v1262
    %v2351 = vmul.f32 %v1263, %v1263
    %v2352 = vmul.f32 %v1264, %v1264
    %v2353 = vmul.f32 %v1265, %v1265
    %v2354 = vmul.f32 %v1266, %v1266
    %v2355 = vmul.f32 %v1267, %v1267
    %v2356 = vmul.f32 %v1268, %v1268
    %v2357 = vmul.f32 %v1269, %v1269
    %v2358 = vmul.f32 %v1270, %v1270
    %v2359 = vmul.f32 %v1271, %v1271
    %v2360 = vmul.f32 %v1272, %v1272
    %v2361 = vmul.f32 %v1273, %v1273
    %v2362 = vmul.f32 %v1274, %v1274
    %v2363 = vmul.f32 %v1275, %v1275
    %v2364 = vmul.f32 %v1276, %v1276
    %2365 = vadd.xlane.f32.xlu0 %v2301
    %v2366 = vpop.xlane.xlu0 %2365
    %2367 = vadd.xlane.f32.xlu0 %v2302
    %v2368 = vpop.xlane.xlu0 %2367
    %2369 = vadd.xlane.f32.xlu0 %v2303
    %v2370 = vpop.xlane.xlu0 %2369
    %2371 = vadd.xlane.f32.xlu0 %v2304
    %v2372 = vpop.xlane.xlu0 %2371
    %2373 = vadd.xlane.f32.xlu0 %v2305
    %v2374 = vpop.xlane.xlu0 %2373
    %2375 = vadd.xlane.f32.xlu0 %v2306
    %v2376 = vpop.xlane.xlu0 %2375
    %2377 = vadd.xlane.f32.xlu0 %v2307
    %v2378 = vpop.xlane.xlu0 %2377
    %2379 = vadd.xlane.f32.xlu0 %v2308
    %v2380 = vpop.xlane.xlu0 %2379
    %2381 = vadd.xlane.f32.xlu0 %v2309
    %v2382 = vpop.xlane.xlu0 %2381
    %2383 = vadd.xlane.f32.xlu0 %v2310
    %v2384 = vpop.xlane.xlu0 %2383
    %2385 = vadd.xlane.f32.xlu0 %v2311
    %v2386 = vpop.xlane.xlu0 %2385
    %2387 = vadd.xlane.f32.xlu0 %v2312
    %v2388 = vpop.xlane.xlu0 %2387
    %2389 = vadd.xlane.f32.xlu0 %v2313
    %v2390 = vpop.xlane.xlu0 %2389
    %2391 = vadd.xlane.f32.xlu0 %v2314
    %v2392 = vpop.xlane.xlu0 %2391
    %2393 = vadd.xlane.f32.xlu0 %v2315
    %v2394 = vpop.xlane.xlu0 %2393
    %2395 = vadd.xlane.f32.xlu0 %v2316
    %v2396 = vpop.xlane.xlu0 %2395
    %2397 = vadd.xlane.f32.xlu0 %v2317
    %v2398 = vpop.xlane.xlu0 %2397
    %2399 = vadd.xlane.f32.xlu0 %v2318
    %v2400 = vpop.xlane.xlu0 %2399
    %2401 = vadd.xlane.f32.xlu0 %v2319
    %v2402 = vpop.xlane.xlu0 %2401
    %2403 = vadd.xlane.f32.xlu0 %v2320
    %v2404 = vpop.xlane.xlu0 %2403
    %2405 = vadd.xlane.f32.xlu0 %v2321
    %v2406 = vpop.xlane.xlu0 %2405
    %2407 = vadd.xlane.f32.xlu0 %v2322
    %v2408 = vpop.xlane.xlu0 %2407
    %2409 = vadd.xlane.f32.xlu0 %v2323
    %v2410 = vpop.xlane.xlu0 %2409
    %2411 = vadd.xlane.f32.xlu0 %v2324
    %v2412 = vpop.xlane.xlu0 %2411
    %2413 = vadd.xlane.f32.xlu0 %v2325
    %v2414 = vpop.xlane.xlu0 %2413
    %2415 = vadd.xlane.f32.xlu0 %v2326
    %v2416 = vpop.xlane.xlu0 %2415
    %2417 = vadd.xlane.f32.xlu0 %v2327
    %v2418 = vpop.xlane.xlu0 %2417
    %2419 = vadd.xlane.f32.xlu0 %v2328
    %v2420 = vpop.xlane.xlu0 %2419
    %2421 = vadd.xlane.f32.xlu0 %v2329
    %v2422 = vpop.xlane.xlu0 %2421
    %2423 = vadd.xlane.f32.xlu0 %v2330
    %v2424 = vpop.xlane.xlu0 %2423
    %2425 = vadd.xlane.f32.xlu0 %v2331
    %v2426 = vpop.xlane.xlu0 %2425
    %2427 = vadd.xlane.f32.xlu0 %v2332
    %v2428 = vpop.xlane.xlu0 %2427
    %2429 = vadd.xlane.f32.xlu0 %v2333
    %v2430 = vpop.xlane.xlu0 %2429
    %2431 = vadd.xlane.f32.xlu0 %v2334
    %v2432 = vpop.xlane.xlu0 %2431
    %2433 = vadd.xlane.f32.xlu0 %v2335
    %v2434 = vpop.xlane.xlu0 %2433
    %2435 = vadd.xlane.f32.xlu0 %v2336
    %v2436 = vpop.xlane.xlu0 %2435
    %2437 = vadd.xlane.f32.xlu0 %v2337
    %v2438 = vpop.xlane.xlu0 %2437
    %2439 = vadd.xlane.f32.xlu0 %v2338
    %v2440 = vpop.xlane.xlu0 %2439
    %2441 = vadd.xlane.f32.xlu0 %v2339
    %v2442 = vpop.xlane.xlu0 %2441
    %2443 = vadd.xlane.f32.xlu0 %v2340
    %v2444 = vpop.xlane.xlu0 %2443
    %2445 = vadd.xlane.f32.xlu0 %v2341
    %v2446 = vpop.xlane.xlu0 %2445
    %2447 = vadd.xlane.f32.xlu0 %v2342
    %v2448 = vpop.xlane.xlu0 %2447
    %2449 = vadd.xlane.f32.xlu0 %v2343
    %v2450 = vpop.xlane.xlu0 %2449
    %2451 = vadd.xlane.f32.xlu0 %v2344
    %v2452 = vpop.xlane.xlu0 %2451
    %2453 = vadd.xlane.f32.xlu0 %v2345
    %v2454 = vpop.xlane.xlu0 %2453
    %2455 = vadd.xlane.f32.xlu0 %v2346
    %v2456 = vpop.xlane.xlu0 %2455
    %2457 = vadd.xlane.f32.xlu0 %v2347
    %v2458 = vpop.xlane.xlu0 %2457
    %2459 = vadd.xlane.f32.xlu0 %v2348
    %v2460 = vpop.xlane.xlu0 %2459
    %2461 = vadd.xlane.f32.xlu0 %v2349
    %v2462 = vpop.xlane.xlu0 %2461
    %2463 = vadd.xlane.f32.xlu0 %v2350
    %v2464 = vpop.xlane.xlu0 %2463
    %2465 = vadd.xlane.f32.xlu0 %v2351
    %v2466 = vpop.xlane.xlu0 %2465
    %2467 = vadd.xlane.f32.xlu0 %v2352
    %v2468 = vpop.xlane.xlu0 %2467
    %2469 = vadd.xlane.f32.xlu0 %v2353
    %v2470 = vpop.xlane.xlu0 %2469
    %2471 = vadd.xlane.f32.xlu0 %v2354
    %v2472 = vpop.xlane.xlu0 %2471
    %2473 = vadd.xlane.f32.xlu0 %v2355
    %v2474 = vpop.xlane.xlu0 %2473
    %2475 = vadd.xlane.f32.xlu0 %v2356
    %v2476 = vpop.xlane.xlu0 %2475
    %2477 = vadd.xlane.f32.xlu0 %v2357
    %v2478 = vpop.xlane.xlu0 %2477
    %2479 = vadd.xlane.f32.xlu0 %v2358
    %v2480 = vpop.xlane.xlu0 %2479
    %2481 = vadd.xlane.f32.xlu0 %v2359
    %v2482 = vpop.xlane.xlu0 %2481
    %2483 = vadd.xlane.f32.xlu0 %v2360
    %v2484 = vpop.xlane.xlu0 %2483
    %2485 = vadd.xlane.f32.xlu0 %v2361
    %v2486 = vpop.xlane.xlu0 %2485
    %2487 = vadd.xlane.f32.xlu0 %v2362
    %v2488 = vpop.xlane.xlu0 %2487
    %2489 = vadd.xlane.f32.xlu0 %v2363
    %v2490 = vpop.xlane.xlu0 %2489
    %2491 = vadd.xlane.f32.xlu0 %v2364
    %v2492 = vpop.xlane.xlu0 %2491
    %v2493 = vadd.f32 %v2366, 1e-10
    %v2494 = vadd.f32 %v2368, 1e-10
    %v2495 = vadd.f32 %v2370, 1e-10
    %v2496 = vadd.f32 %v2372, 1e-10
    %v2497 = vadd.f32 %v2374, 1e-10
    %v2498 = vadd.f32 %v2376, 1e-10
    %v2499 = vadd.f32 %v2378, 1e-10
    %v2500 = vadd.f32 %v2380, 1e-10
    %v2501 = vadd.f32 %v2382, 1e-10
    %v2502 = vadd.f32 %v2384, 1e-10
    %v2503 = vadd.f32 %v2386, 1e-10
    %v2504 = vadd.f32 %v2388, 1e-10
    %v2505 = vadd.f32 %v2390, 1e-10
    %v2506 = vadd.f32 %v2392, 1e-10
    %v2507 = vadd.f32 %v2394, 1e-10
    %v2508 = vadd.f32 %v2396, 1e-10
    %v2509 = vadd.f32 %v2398, 1e-10
    %v2510 = vadd.f32 %v2400, 1e-10
    %v2511 = vadd.f32 %v2402, 1e-10
    %v2512 = vadd.f32 %v2404, 1e-10
    %v2513 = vadd.f32 %v2406, 1e-10
    %v2514 = vadd.f32 %v2408, 1e-10
    %v2515 = vadd.f32 %v2410, 1e-10
    %v2516 = vadd.f32 %v2412, 1e-10
    %v2517 = vadd.f32 %v2414, 1e-10
    %v2518 = vadd.f32 %v2416, 1e-10
    %v2519 = vadd.f32 %v2418, 1e-10
    %v2520 = vadd.f32 %v2420, 1e-10
    %v2521 = vadd.f32 %v2422, 1e-10
    %v2522 = vadd.f32 %v2424, 1e-10
    %v2523 = vadd.f32 %v2426, 1e-10
    %v2524 = vadd.f32 %v2428, 1e-10
    %v2525 = vadd.f32 %v2430, 1e-10
    %v2526 = vadd.f32 %v2432, 1e-10
    %v2527 = vadd.f32 %v2434, 1e-10
    %v2528 = vadd.f32 %v2436, 1e-10
    %v2529 = vadd.f32 %v2438, 1e-10
    %v2530 = vadd.f32 %v2440, 1e-10
    %v2531 = vadd.f32 %v2442, 1e-10
    %v2532 = vadd.f32 %v2444, 1e-10
    %v2533 = vadd.f32 %v2446, 1e-10
    %v2534 = vadd.f32 %v2448, 1e-10
    %v2535 = vadd.f32 %v2450, 1e-10
    %v2536 = vadd.f32 %v2452, 1e-10
    %v2537 = vadd.f32 %v2454, 1e-10
    %v2538 = vadd.f32 %v2456, 1e-10
    %v2539 = vadd.f32 %v2458, 1e-10
    %v2540 = vadd.f32 %v2460, 1e-10
    %v2541 = vadd.f32 %v2462, 1e-10
    %v2542 = vadd.f32 %v2464, 1e-10
    %v2543 = vadd.f32 %v2466, 1e-10
    %v2544 = vadd.f32 %v2468, 1e-10
    %v2545 = vadd.f32 %v2470, 1e-10
    %v2546 = vadd.f32 %v2472, 1e-10
    %v2547 = vadd.f32 %v2474, 1e-10
    %v2548 = vadd.f32 %v2476, 1e-10
    %v2549 = vadd.f32 %v2478, 1e-10
    %v2550 = vadd.f32 %v2480, 1e-10
    %v2551 = vadd.f32 %v2482, 1e-10
    %v2552 = vadd.f32 %v2484, 1e-10
    %v2553 = vadd.f32 %v2486, 1e-10
    %v2554 = vadd.f32 %v2488, 1e-10
    %v2555 = vadd.f32 %v2490, 1e-10
    %v2556 = vadd.f32 %v2492, 1e-10
    %v2557 = vrsqrt.pop %v2493
    %v2558 = vrsqrt.pop %v2494
    %v2559 = vrsqrt.pop %v2495
    %v2560 = vrsqrt.pop %v2496
    %v2561 = vrsqrt.pop %v2497
    %v2562 = vrsqrt.pop %v2498
    %v2563 = vrsqrt.pop %v2499
    %v2564 = vrsqrt.pop %v2500
    %v2565 = vrsqrt.pop %v2501
    %v2566 = vrsqrt.pop %v2502
    %v2567 = vrsqrt.pop %v2503
    %v2568 = vrsqrt.pop %v2504
    %v2569 = vrsqrt.pop %v2505
    %v2570 = vrsqrt.pop %v2506
    %v2571 = vrsqrt.pop %v2507
    %v2572 = vrsqrt.pop %v2508
    %v2573 = vrsqrt.pop %v2509
    %v2574 = vrsqrt.pop %v2510
    %v2575 = vrsqrt.pop %v2511
    %v2576 = vrsqrt.pop %v2512
    %v2577 = vrsqrt.pop %v2513
    %v2578 = vrsqrt.pop %v2514
    %v2579 = vrsqrt.pop %v2515
    %v2580 = vrsqrt.pop %v2516
    %v2581 = vrsqrt.pop %v2517
    %v2582 = vrsqrt.pop %v2518
    %v2583 = vrsqrt.pop %v2519
    %v2584 = vrsqrt.pop %v2520
    %v2585 = vrsqrt.pop %v2521
    %v2586 = vrsqrt.pop %v2522
    %v2587 = vrsqrt.pop %v2523
    %v2588 = vrsqrt.pop %v2524
    %v2589 = vrsqrt.pop %v2525
    %v2590 = vrsqrt.pop %v2526
    %v2591 = vrsqrt.pop %v2527
    %v2592 = vrsqrt.pop %v2528
    %v2593 = vrsqrt.pop %v2529
    %v2594 = vrsqrt.pop %v2530
    %v2595 = vrsqrt.pop %v2531
    %v2596 = vrsqrt.pop %v2532
    %v2597 = vrsqrt.pop %v2533
    %v2598 = vrsqrt.pop %v2534
    %v2599 = vrsqrt.pop %v2535
    %v2600 = vrsqrt.pop %v2536
    %v2601 = vrsqrt.pop %v2537
    %v2602 = vrsqrt.pop %v2538
    %v2603 = vrsqrt.pop %v2539
    %v2604 = vrsqrt.pop %v2540
    %v2605 = vrsqrt.pop %v2541
    %v2606 = vrsqrt.pop %v2542
    %v2607 = vrsqrt.pop %v2543
    %v2608 = vrsqrt.pop %v2544
    %v2609 = vrsqrt.pop %v2545
    %v2610 = vrsqrt.pop %v2546
    %v2611 = vrsqrt.pop %v2547
    %v2612 = vrsqrt.pop %v2548
    %v2613 = vrsqrt.pop %v2549
    %v2614 = vrsqrt.pop %v2550
    %v2615 = vrsqrt.pop %v2551
    %v2616 = vrsqrt.pop %v2552
    %v2617 = vrsqrt.pop %v2553
    %v2618 = vrsqrt.pop %v2554
    %v2619 = vrsqrt.pop %v2555
    %v2620 = vrsqrt.pop %v2556
    %v2621 = vmul.f32 %v1213, %v2557
    %v2622 = vmul.f32 %v1214, %v2558
    %v2623 = vmul.f32 %v1215, %v2559
    %v2624 = vmul.f32 %v1216, %v2560
    %v2625 = vmul.f32 %v1217, %v2561
    %v2626 = vmul.f32 %v1218, %v2562
    %v2627 = vmul.f32 %v1219, %v2563
    %v2628 = vmul.f32 %v1220, %v2564
    %v2629 = vmul.f32 %v1221, %v2565
    %v2630 = vmul.f32 %v1222, %v2566
    %v2631 = vmul.f32 %v1223, %v2567
    %v2632 = vmul.f32 %v1224, %v2568
    %v2633 = vmul.f32 %v1225, %v2569
    %v2634 = vmul.f32 %v1226, %v2570
    %v2635 = vmul.f32 %v1227, %v2571
    %v2636 = vmul.f32 %v1228, %v2572
    %v2637 = vmul.f32 %v1229, %v2573
    %v2638 = vmul.f32 %v1230, %v2574
    %v2639 = vmul.f32 %v1231, %v2575
    %v2640 = vmul.f32 %v1232, %v2576
    %v2641 = vmul.f32 %v1233, %v2577
    %v2642 = vmul.f32 %v1234, %v2578
    %v2643 = vmul.f32 %v1235, %v2579
    %v2644 = vmul.f32 %v1236, %v2580
    %v2645 = vmul.f32 %v1237, %v2581
    %v2646 = vmul.f32 %v1238, %v2582
    %v2647 = vmul.f32 %v1239, %v2583
    %v2648 = vmul.f32 %v1240, %v2584
    %v2649 = vmul.f32 %v1241, %v2585
    %v2650 = vmul.f32 %v1242, %v2586
    %v2651 = vmul.f32 %v1243, %v2587
    %v2652 = vmul.f32 %v1244, %v2588
    %v2653 = vmul.f32 %v1245, %v2589
    %v2654 = vmul.f32 %v1246, %v2590
    %v2655 = vmul.f32 %v1247, %v2591
    %v2656 = vmul.f32 %v1248, %v2592
    %v2657 = vmul.f32 %v1249, %v2593
    %v2658 = vmul.f32 %v1250, %v2594
    %v2659 = vmul.f32 %v1251, %v2595
    %v2660 = vmul.f32 %v1252, %v2596
    %v2661 = vmul.f32 %v1253, %v2597
    %v2662 = vmul.f32 %v1254, %v2598
    %v2663 = vmul.f32 %v1255, %v2599
    %v2664 = vmul.f32 %v1256, %v2600
    %v2665 = vmul.f32 %v1257, %v2601
    %v2666 = vmul.f32 %v1258, %v2602
    %v2667 = vmul.f32 %v1259, %v2603
    %v2668 = vmul.f32 %v1260, %v2604
    %v2669 = vmul.f32 %v1261, %v2605
    %v2670 = vmul.f32 %v1262, %v2606
    %v2671 = vmul.f32 %v1263, %v2607
    %v2672 = vmul.f32 %v1264, %v2608
    %v2673 = vmul.f32 %v1265, %v2609
    %v2674 = vmul.f32 %v1266, %v2610
    %v2675 = vmul.f32 %v1267, %v2611
    %v2676 = vmul.f32 %v1268, %v2612
    %v2677 = vmul.f32 %v1269, %v2613
    %v2678 = vmul.f32 %v1270, %v2614
    %v2679 = vmul.f32 %v1271, %v2615
    %v2680 = vmul.f32 %v1272, %v2616
    %v2681 = vmul.f32 %v1273, %v2617
    %v2682 = vmul.f32 %v1274, %v2618
    %v2683 = vmul.f32 %v1275, %v2619
    %v2684 = vmul.f32 %v1276, %v2620
    %v2685 = vsub.f32 %v2237, %v2621
    %v2686 = vsub.f32 %v2238, %v2622
    %v2687 = vsub.f32 %v2239, %v2623
    %v2688 = vsub.f32 %v2240, %v2624
    %v2689 = vsub.f32 %v2241, %v2625
    %v2690 = vsub.f32 %v2242, %v2626
    %v2691 = vsub.f32 %v2243, %v2627
    %v2692 = vsub.f32 %v2244, %v2628
    %v2693 = vsub.f32 %v2245, %v2629
    %v2694 = vsub.f32 %v2246, %v2630
    %v2695 = vsub.f32 %v2247, %v2631
    %v2696 = vsub.f32 %v2248, %v2632
    %v2697 = vsub.f32 %v2249, %v2633
    %v2698 = vsub.f32 %v2250, %v2634
    %v2699 = vsub.f32 %v2251, %v2635
    %v2700 = vsub.f32 %v2252, %v2636
    %v2701 = vsub.f32 %v2253, %v2637
    %v2702 = vsub.f32 %v2254, %v2638
    %v2703 = vsub.f32 %v2255, %v2639
    %v2704 = vsub.f32 %v2256, %v2640
    %v2705 = vsub.f32 %v2257, %v2641
    %v2706 = vsub.f32 %v2258, %v2642
    %v2707 = vsub.f32 %v2259, %v2643
    %v2708 = vsub.f32 %v2260, %v2644
    %v2709 = vsub.f32 %v2261, %v2645
    %v2710 = vsub.f32 %v2262, %v2646
    %v2711 = vsub.f32 %v2263, %v2647
    %v2712 = vsub.f32 %v2264, %v2648
    %v2713 = vsub.f32 %v2265, %v2649
    %v2714 = vsub.f32 %v2266, %v2650
    %v2715 = vsub.f32 %v2267, %v2651
    %v2716 = vsub.f32 %v2268, %v2652
    %v2717 = vsub.f32 %v2269, %v2653
    %v2718 = vsub.f32 %v2270, %v2654
    %v2719 = vsub.f32 %v2271, %v2655
    %v2720 = vsub.f32 %v2272, %v2656
    %v2721 = vsub.f32 %v2273, %v2657
    %v2722 = vsub.f32 %v2274, %v2658
    %v2723 = vsub.f32 %v2275, %v2659
    %v2724 = vsub.f32 %v2276, %v2660
    %v2725 = vsub.f32 %v2277, %v2661
    %v2726 = vsub.f32 %v2278, %v2662
    %v2727 = vsub.f32 %v2279, %v2663
    %v2728 = vsub.f32 %v2280, %v2664
    %v2729 = vsub.f32 %v2281, %v2665
    %v2730 = vsub.f32 %v2282, %v2666
    %v2731 = vsub.f32 %v2283, %v2667
    %v2732 = vsub.f32 %v2284, %v2668
    %v2733 = vsub.f32 %v2285, %v2669
    %v2734 = vsub.f32 %v2286, %v2670
    %v2735 = vsub.f32 %v2287, %v2671
    %v2736 = vsub.f32 %v2288, %v2672
    %v2737 = vsub.f32 %v2289, %v2673
    %v2738 = vsub.f32 %v2290, %v2674
    %v2739 = vsub.f32 %v2291, %v2675
    %v2740 = vsub.f32 %v2292, %v2676
    %v2741 = vsub.f32 %v2293, %v2677
    %v2742 = vsub.f32 %v2294, %v2678
    %v2743 = vsub.f32 %v2295, %v2679
    %v2744 = vsub.f32 %v2296, %v2680
    %v2745 = vsub.f32 %v2297, %v2681
    %v2746 = vsub.f32 %v2298, %v2682
    %v2747 = vsub.f32 %v2299, %v2683
    %v2748 = vsub.f32 %v2300, %v2684
    %v2749 = vmul.f32 %v2685, %v2685
    %v2750 = vmul.f32 %v2686, %v2686
    %v2751 = vmul.f32 %v2687, %v2687
    %v2752 = vmul.f32 %v2688, %v2688
    %v2753 = vmul.f32 %v2689, %v2689
    %v2754 = vmul.f32 %v2690, %v2690
    %v2755 = vmul.f32 %v2691, %v2691
    %v2756 = vmul.f32 %v2692, %v2692
    %v2757 = vmul.f32 %v2693, %v2693
    %v2758 = vmul.f32 %v2694, %v2694
    %v2759 = vmul.f32 %v2695, %v2695
    %v2760 = vmul.f32 %v2696, %v2696
    %v2761 = vmul.f32 %v2697, %v2697
    %v2762 = vmul.f32 %v2698, %v2698
    %v2763 = vmul.f32 %v2699, %v2699
    %v2764 = vmul.f32 %v2700, %v2700
    %v2765 = vmul.f32 %v2701, %v2701
    %v2766 = vmul.f32 %v2702, %v2702
    %v2767 = vmul.f32 %v2703, %v2703
    %v2768 = vmul.f32 %v2704, %v2704
    %v2769 = vmul.f32 %v2705, %v2705
    %v2770 = vmul.f32 %v2706, %v2706
    %v2771 = vmul.f32 %v2707, %v2707
    %v2772 = vmul.f32 %v2708, %v2708
    %v2773 = vmul.f32 %v2709, %v2709
    %v2774 = vmul.f32 %v2710, %v2710
    %v2775 = vmul.f32 %v2711, %v2711
    %v2776 = vmul.f32 %v2712, %v2712
    %v2777 = vmul.f32 %v2713, %v2713
    %v2778 = vmul.f32 %v2714, %v2714
    %v2779 = vmul.f32 %v2715, %v2715
    %v2780 = vmul.f32 %v2716, %v2716
    %v2781 = vmul.f32 %v2717, %v2717
    %v2782 = vmul.f32 %v2718, %v2718
    %v2783 = vmul.f32 %v2719, %v2719
    %v2784 = vmul.f32 %v2720, %v2720
    %v2785 = vmul.f32 %v2721, %v2721
    %v2786 = vmul.f32 %v2722, %v2722
    %v2787 = vmul.f32 %v2723, %v2723
    %v2788 = vmul.f32 %v2724, %v2724
    %v2789 = vmul.f32 %v2725, %v2725
    %v2790 = vmul.f32 %v2726, %v2726
    %v2791 = vmul.f32 %v2727, %v2727
    %v2792 = vmul.f32 %v2728, %v2728
    %v2793 = vmul.f32 %v2729, %v2729
    %v2794 = vmul.f32 %v2730, %v2730
    %v2795 = vmul.f32 %v2731, %v2731
    %v2796 = vmul.f32 %v2732, %v2732
    %v2797 = vmul.f32 %v2733, %v2733
    %v2798 = vmul.f32 %v2734, %v2734
    %v2799 = vmul.f32 %v2735, %v2735
    %v2800 = vmul.f32 %v2736, %v2736
    %v2801 = vmul.f32 %v2737, %v2737
    %v2802 = vmul.f32 %v2738, %v2738
    %v2803 = vmul.f32 %v2739, %v2739
    %v2804 = vmul.f32 %v2740, %v2740
    %v2805 = vmul.f32 %v2741, %v2741
    %v2806 = vmul.f32 %v2742, %v2742
    %v2807 = vmul.f32 %v2743, %v2743
    %v2808 = vmul.f32 %v2744, %v2744
    %v2809 = vmul.f32 %v2745, %v2745
    %v2810 = vmul.f32 %v2746, %v2746
    %v2811 = vmul.f32 %v2747, %v2747
    %v2812 = vmul.f32 %v2748, %v2748
    %v2813 = vld [vmem:[%s3] sm:$0x1]
    %v2815 = vlaneseq
    %v2816 = vshrl.u32 %v2815, 7
    %v2817 = vsub.s32 0, %v2816
    %v2818 = vrot.slane %v2813, %v2817
    %v2820 = vmul.f32 %v2749, %v2818
    %v2821 = vmul.f32 %v2750, %v2818
    %v2822 = vmul.f32 %v2751, %v2818
    %v2823 = vmul.f32 %v2752, %v2818
    %v2824 = vmul.f32 %v2753, %v2818
    %v2825 = vmul.f32 %v2754, %v2818
    %v2826 = vmul.f32 %v2755, %v2818
    %v2827 = vmul.f32 %v2756, %v2818
    %v2828 = vmul.f32 %v2757, %v2818
    %v2829 = vmul.f32 %v2758, %v2818
    %v2830 = vmul.f32 %v2759, %v2818
    %v2831 = vmul.f32 %v2760, %v2818
    %v2832 = vmul.f32 %v2761, %v2818
    %v2833 = vmul.f32 %v2762, %v2818
    %v2834 = vmul.f32 %v2763, %v2818
    %v2835 = vmul.f32 %v2764, %v2818
    %v2836 = vmul.f32 %v2765, %v2818
    %v2837 = vmul.f32 %v2766, %v2818
    %v2838 = vmul.f32 %v2767, %v2818
    %v2839 = vmul.f32 %v2768, %v2818
    %v2840 = vmul.f32 %v2769, %v2818
    %v2841 = vmul.f32 %v2770, %v2818
    %v2842 = vmul.f32 %v2771, %v2818
    %v2843 = vmul.f32 %v2772, %v2818
    %v2844 = vmul.f32 %v2773, %v2818
    %v2845 = vmul.f32 %v2774, %v2818
    %v2846 = vmul.f32 %v2775, %v2818
    %v2847 = vmul.f32 %v2776, %v2818
    %v2848 = vmul.f32 %v2777, %v2818
    %v2849 = vmul.f32 %v2778, %v2818
    %v2850 = vmul.f32 %v2779, %v2818
    %v2851 = vmul.f32 %v2780, %v2818
    %v2852 = vmul.f32 %v2781, %v2818
    %v2853 = vmul.f32 %v2782, %v2818
    %v2854 = vmul.f32 %v2783, %v2818
    %v2855 = vmul.f32 %v2784, %v2818
    %v2856 = vmul.f32 %v2785, %v2818
    %v2857 = vmul.f32 %v2786, %v2818
    %v2858 = vmul.f32 %v2787, %v2818
    %v2859 = vmul.f32 %v2788, %v2818
    %v2860 = vmul.f32 %v2789, %v2818
    %v2861 = vmul.f32 %v2790, %v2818
    %v2862 = vmul.f32 %v2791, %v2818
    %v2863 = vmul.f32 %v2792, %v2818
    %v2864 = vmul.f32 %v2793, %v2818
    %v2865 = vmul.f32 %v2794, %v2818
    %v2866 = vmul.f32 %v2795, %v2818
    %v2867 = vmul.f32 %v2796, %v2818
    %v2868 = vmul.f32 %v2797, %v2818
    %v2869 = vmul.f32 %v2798, %v2818
    %v2870 = vmul.f32 %v2799, %v2818
    %v2871 = vmul.f32 %v2800, %v2818
    %v2872 = vmul.f32 %v2801, %v2818
    %v2873 = vmul.f32 %v2802, %v2818
    %v2874 = vmul.f32 %v2803, %v2818
    %v2875 = vmul.f32 %v2804, %v2818
    %v2876 = vmul.f32 %v2805, %v2818
    %v2877 = vmul.f32 %v2806, %v2818
    %v2878 = vmul.f32 %v2807, %v2818
    %v2879 = vmul.f32 %v2808, %v2818
    %v2880 = vmul.f32 %v2809, %v2818
    %v2881 = vmul.f32 %v2810, %v2818
    %v2882 = vmul.f32 %v2811, %v2818
    %v2883 = vmul.f32 %v2812, %v2818
    %2884 = vadd.xlane.f32.xlu0 %v2820
    %v2885 = vpop.xlane.xlu0 %2884
    %2886 = vadd.xlane.f32.xlu0 %v2821
    %v2887 = vpop.xlane.xlu0 %2886
    %2888 = vadd.xlane.f32.xlu0 %v2822
    %v2889 = vpop.xlane.xlu0 %2888
    %2890 = vadd.xlane.f32.xlu0 %v2823
    %v2891 = vpop.xlane.xlu0 %2890
    %2892 = vadd.xlane.f32.xlu0 %v2824
    %v2893 = vpop.xlane.xlu0 %2892
    %2894 = vadd.xlane.f32.xlu0 %v2825
    %v2895 = vpop.xlane.xlu0 %2894
    %2896 = vadd.xlane.f32.xlu0 %v2826
    %v2897 = vpop.xlane.xlu0 %2896
    %2898 = vadd.xlane.f32.xlu0 %v2827
    %v2899 = vpop.xlane.xlu0 %2898
    %2900 = vadd.xlane.f32.xlu0 %v2828
    %v2901 = vpop.xlane.xlu0 %2900
    %2902 = vadd.xlane.f32.xlu0 %v2829
    %v2903 = vpop.xlane.xlu0 %2902
    %2904 = vadd.xlane.f32.xlu0 %v2830
    %v2905 = vpop.xlane.xlu0 %2904
    %2906 = vadd.xlane.f32.xlu0 %v2831
    %v2907 = vpop.xlane.xlu0 %2906
    %2908 = vadd.xlane.f32.xlu0 %v2832
    %v2909 = vpop.xlane.xlu0 %2908
    %2910 = vadd.xlane.f32.xlu0 %v2833
    %v2911 = vpop.xlane.xlu0 %2910
    %2912 = vadd.xlane.f32.xlu0 %v2834
    %v2913 = vpop.xlane.xlu0 %2912
    %2914 = vadd.xlane.f32.xlu0 %v2835
    %v2915 = vpop.xlane.xlu0 %2914
    %2916 = vadd.xlane.f32.xlu0 %v2836
    %v2917 = vpop.xlane.xlu0 %2916
    %2918 = vadd.xlane.f32.xlu0 %v2837
    %v2919 = vpop.xlane.xlu0 %2918
    %2920 = vadd.xlane.f32.xlu0 %v2838
    %v2921 = vpop.xlane.xlu0 %2920
    %2922 = vadd.xlane.f32.xlu0 %v2839
    %v2923 = vpop.xlane.xlu0 %2922
    %2924 = vadd.xlane.f32.xlu0 %v2840
    %v2925 = vpop.xlane.xlu0 %2924
    %2926 = vadd.xlane.f32.xlu0 %v2841
    %v2927 = vpop.xlane.xlu0 %2926
    %2928 = vadd.xlane.f32.xlu0 %v2842
    %v2929 = vpop.xlane.xlu0 %2928
    %2930 = vadd.xlane.f32.xlu0 %v2843
    %v2931 = vpop.xlane.xlu0 %2930
    %2932 = vadd.xlane.f32.xlu0 %v2844
    %v2933 = vpop.xlane.xlu0 %2932
    %2934 = vadd.xlane.f32.xlu0 %v2845
    %v2935 = vpop.xlane.xlu0 %2934
    %2936 = vadd.xlane.f32.xlu0 %v2846
    %v2937 = vpop.xlane.xlu0 %2936
    %2938 = vadd.xlane.f32.xlu0 %v2847
    %v2939 = vpop.xlane.xlu0 %2938
    %2940 = vadd.xlane.f32.xlu0 %v2848
    %v2941 = vpop.xlane.xlu0 %2940
    %2942 = vadd.xlane.f32.xlu0 %v2849
    %v2943 = vpop.xlane.xlu0 %2942
    %2944 = vadd.xlane.f32.xlu0 %v2850
    %v2945 = vpop.xlane.xlu0 %2944
    %2946 = vadd.xlane.f32.xlu0 %v2851
    %v2947 = vpop.xlane.xlu0 %2946
    %2948 = vadd.xlane.f32.xlu0 %v2852
    %v2949 = vpop.xlane.xlu0 %2948
    %2950 = vadd.xlane.f32.xlu0 %v2853
    %v2951 = vpop.xlane.xlu0 %2950
    %2952 = vadd.xlane.f32.xlu0 %v2854
    %v2953 = vpop.xlane.xlu0 %2952
    %2954 = vadd.xlane.f32.xlu0 %v2855
    %v2955 = vpop.xlane.xlu0 %2954
    %2956 = vadd.xlane.f32.xlu0 %v2856
    %v2957 = vpop.xlane.xlu0 %2956
    %2958 = vadd.xlane.f32.xlu0 %v2857
    %v2959 = vpop.xlane.xlu0 %2958
    %2960 = vadd.xlane.f32.xlu0 %v2858
    %v2961 = vpop.xlane.xlu0 %2960
    %2962 = vadd.xlane.f32.xlu0 %v2859
    %v2963 = vpop.xlane.xlu0 %2962
    %2964 = vadd.xlane.f32.xlu0 %v2860
    %v2965 = vpop.xlane.xlu0 %2964
    %2966 = vadd.xlane.f32.xlu0 %v2861
    %v2967 = vpop.xlane.xlu0 %2966
    %2968 = vadd.xlane.f32.xlu0 %v2862
    %v2969 = vpop.xlane.xlu0 %2968
    %2970 = vadd.xlane.f32.xlu0 %v2863
    %v2971 = vpop.xlane.xlu0 %2970
    %2972 = vadd.xlane.f32.xlu0 %v2864
    %v2973 = vpop.xlane.xlu0 %2972
    %2974 = vadd.xlane.f32.xlu0 %v2865
    %v2975 = vpop.xlane.xlu0 %2974
    %2976 = vadd.xlane.f32.xlu0 %v2866
    %v2977 = vpop.xlane.xlu0 %2976
    %2978 = vadd.xlane.f32.xlu0 %v2867
    %v2979 = vpop.xlane.xlu0 %2978
    %2980 = vadd.xlane.f32.xlu0 %v2868
    %v2981 = vpop.xlane.xlu0 %2980
    %2982 = vadd.xlane.f32.xlu0 %v2869
    %v2983 = vpop.xlane.xlu0 %2982
    %2984 = vadd.xlane.f32.xlu0 %v2870
    %v2985 = vpop.xlane.xlu0 %2984
    %2986 = vadd.xlane.f32.xlu0 %v2871
    %v2987 = vpop.xlane.xlu0 %2986
    %2988 = vadd.xlane.f32.xlu0 %v2872
    %v2989 = vpop.xlane.xlu0 %2988
    %2990 = vadd.xlane.f32.xlu0 %v2873
    %v2991 = vpop.xlane.xlu0 %2990
    %2992 = vadd.xlane.f32.xlu0 %v2874
    %v2993 = vpop.xlane.xlu0 %2992
    %2994 = vadd.xlane.f32.xlu0 %v2875
    %v2995 = vpop.xlane.xlu0 %2994
    %2996 = vadd.xlane.f32.xlu0 %v2876
    %v2997 = vpop.xlane.xlu0 %2996
    %2998 = vadd.xlane.f32.xlu0 %v2877
    %v2999 = vpop.xlane.xlu0 %2998
    %3000 = vadd.xlane.f32.xlu0 %v2878
    %v3001 = vpop.xlane.xlu0 %3000
    %3002 = vadd.xlane.f32.xlu0 %v2879
    %v3003 = vpop.xlane.xlu0 %3002
    %3004 = vadd.xlane.f32.xlu0 %v2880
    %v3005 = vpop.xlane.xlu0 %3004
    %3006 = vadd.xlane.f32.xlu0 %v2881
    %v3007 = vpop.xlane.xlu0 %3006
    %3008 = vadd.xlane.f32.xlu0 %v2882
    %v3009 = vpop.xlane.xlu0 %3008
    %3010 = vadd.xlane.f32.xlu0 %v2883
    %v3011 = vpop.xlane.xlu0 %3010
    %v3012 = vadd.f32 %v2885, %v2887
    %v3013 = vadd.f32 %v3012, %v2889
    %v3014 = vadd.f32 %v3013, %v2891
    %v3015 = vadd.f32 %v3014, %v2893
    %v3016 = vadd.f32 %v3015, %v2895
    %v3017 = vadd.f32 %v3016, %v2897
    %v3018 = vadd.f32 %v3017, %v2899
    %v3019 = vadd.f32 %v3018, %v2901
    %v3020 = vadd.f32 %v3019, %v2903
    %v3021 = vadd.f32 %v3020, %v2905
    %v3022 = vadd.f32 %v3021, %v2907
    %v3023 = vadd.f32 %v3022, %v2909
    %v3024 = vadd.f32 %v3023, %v2911
    %v3025 = vadd.f32 %v3024, %v2913
    %v3026 = vadd.f32 %v3025, %v2915
    %v3027 = vadd.f32 %v3026, %v2917
    %v3028 = vadd.f32 %v3027, %v2919
    %v3029 = vadd.f32 %v3028, %v2921
    %v3030 = vadd.f32 %v3029, %v2923
    %v3031 = vadd.f32 %v3030, %v2925
    %v3032 = vadd.f32 %v3031, %v2927
    %v3033 = vadd.f32 %v3032, %v2929
    %v3034 = vadd.f32 %v3033, %v2931
    %v3035 = vadd.f32 %v3034, %v2933
    %v3036 = vadd.f32 %v3035, %v2935
    %v3037 = vadd.f32 %v3036, %v2937
    %v3038 = vadd.f32 %v3037, %v2939
    %v3039 = vadd.f32 %v3038, %v2941
    %v3040 = vadd.f32 %v3039, %v2943
    %v3041 = vadd.f32 %v3040, %v2945
    %v3042 = vadd.f32 %v3041, %v2947
    %v3043 = vadd.f32 %v3042, %v2949
    %v3044 = vadd.f32 %v3043, %v2951
    %v3045 = vadd.f32 %v3044, %v2953
    %v3046 = vadd.f32 %v3045, %v2955
    %v3047 = vadd.f32 %v3046, %v2957
    %v3048 = vadd.f32 %v3047, %v2959
    %v3049 = vadd.f32 %v3048, %v2961
    %v3050 = vadd.f32 %v3049, %v2963
    %v3051 = vadd.f32 %v3050, %v2965
    %v3052 = vadd.f32 %v3051, %v2967
    %v3053 = vadd.f32 %v3052, %v2969
    %v3054 = vadd.f32 %v3053, %v2971
    %v3055 = vadd.f32 %v3054, %v2973
    %v3056 = vadd.f32 %v3055, %v2975
    %v3057 = vadd.f32 %v3056, %v2977
    %v3058 = vadd.f32 %v3057, %v2979
    %v3059 = vadd.f32 %v3058, %v2981
    %v3060 = vadd.f32 %v3059, %v2983
    %v3061 = vadd.f32 %v3060, %v2985
    %v3062 = vadd.f32 %v3061, %v2987
    %v3063 = vadd.f32 %v3062, %v2989
    %v3064 = vadd.f32 %v3063, %v2991
    %v3065 = vadd.f32 %v3064, %v2993
    %v3066 = vadd.f32 %v3065, %v2995
    %v3067 = vadd.f32 %v3066, %v2997
    %v3068 = vadd.f32 %v3067, %v2999
    %v3069 = vadd.f32 %v3068, %v3001
    %v3070 = vadd.f32 %v3069, %v3003
    %v3071 = vadd.f32 %v3070, %v3005
    %v3072 = vadd.f32 %v3071, %v3007
    %v3073 = vadd.f32 %v3072, %v3009
    %v3074 = vadd.f32 %v3073, %v3011
    %v3075 = vrot.slane %v3074, 4
    %v3076 = vadd.f32 %v3074, %v3075
    %v3077 = vrot.slane %v3076, 2
    %v3078 = vadd.f32 %v3076, %v3077
    %v3079 = vrot.slane %v3078, 1
    %v3080 = vadd.f32 %v3078, %v3079
    %v3081 = vmul.f32 %v3080, 0.00390625
    %vm3082 = vcmask 0
    %3083 = vst.msk [vmem:[#allocation2] sm:$0x1] %vm3082, %v3081
    // Predicated region
    $region18: #{_forward.5} parent=1 // pred_check
      _
    $region19: #{_forward.5} parent=1 // pred_check_branch
      %3085 = sbr.rel (0) target = $region21
    $region20: #{_forward.5} parent=1 // pred_region
      _
    $region21: #{_forward.5} parent=1 // pred_fallthru
      _
    // Predicated region
    $region22: #{_forward.5} parent=1 // pred_check
      _
    $region23: #{_forward.5} parent=1 // pred_check_branch
      %3087 = sbr.rel (0) target = $region25
    $region24: #{_forward.5} parent=1 // pred_region
      %s3089 = ssub.s32 16, 16
      %3090 = vsyncadd [#allocation3], %s3089
      %s3092 = sshll.u32 [#allocation2], 4
      %s3093 = int_to_ptr.vmem [resolvable:$true] %s3092
      %3095 = dma.vmem_to_hbm [thread:$0]  %s3093, 16, %s5, [#allocation3]
    $region25: #{_forward.5} parent=1 // pred_fallthru
      _
    // Predicated region
    $region26: #{_forward.5} parent=1 // pred_check
      _
    $region27: #{_forward.5} parent=1 // pred_check_branch
      %3097 = sbr.rel (0) target = $region29
    $region28: #{_forward.5} parent=1 // pred_region
      _
    $region29: #{_forward.5} parent=1 // pred_fallthru
      _
    // Predicated region
    $region30: #{_forward.5} parent=1 // pred_check
      _
    $region31: #{_forward.5} parent=1 // pred_check_branch
      %3099 = sbr.rel (0) target = $region33
    $region32: #{_forward.5} parent=1 // pred_region
      %3100 = dma.done [#allocation3], 16
    $region33: #{_forward.5} parent=1 // pred_fallthru
      _
    %3101 = vsyncpa [#allocation3], 1

// kernel: _forward.6
$region0: #{_forward.6}
  #allocation0 [shape = 'u32[]', space=smem, size = 0x4, offset = 0x4, fixed_abs, tag = 'smem constant byte address 0x4 - core index']
  #allocation1 [shape = 'u32[144,128]{1,0:T(1,128)}', space=vmem, size = 0x12000, scoped, tag = 'internal scratch']
  %s0 = inlined_call_operand.vmem [shape: bf16[256,256], index: 0, kind: input, shape index: {}]
  %s1 = inlined_call_operand.vmem [shape: bf16[256,128], index: 1, kind: input, shape index: {}]
  %s2 = inlined_call_operand.vmem [shape: f32[1,128], index: 2, kind: input, shape index: {}]
  %s3 = inlined_call_operand.vmem [shape: f32[1,128], index: 3, kind: input, shape index: {}]
  %s4 = inlined_call_operand.vmem [shape: bf16[256,128], index: 4, kind: output, shape index: {0}]
  %s5 = inlined_call_operand.hbm [shape: f32[1,1], index: 5, kind: output, shape index: {1}]
  %6 = xla_tuple %s4, %s5
  %s7 = sld [smem:[#allocation0]]
  $region34: #{_forward.6} parent=0
    _
  %s9 = ssub.s32 1, %s7
  %s10 = scalar_select 0, %s9, %s7
  $region1: #{_forward.6} parent=0
    #allocation2 [shape = 'u8[512]{0}', space=vmem, size = 0x400, scoped, tag = 'output window, operand 1, single buffered']
    #allocation3 [shape = 's32[1]{0}', space=sflag, size = 0x4, scoped, tag = 'scoped memory for _forward.6']
    %11 = vsyncpa [#allocation3], 0
    // Predicated region
    $region2: #{_forward.6} parent=1 // pred_check
      _
    $region3: #{_forward.6} parent=1 // pred_check_branch
      %13 = sbr.rel (0) target = $region5
    $region4: #{_forward.6} parent=1 // pred_region
      _
    $region5: #{_forward.6} parent=1 // pred_fallthru
      _
    // Predicated region
    $region6: #{_forward.6} parent=1 // pred_check
      _
    $region7: #{_forward.6} parent=1 // pred_check_branch
      %15 = sbr.rel (0) target = $region9
    $region8: #{_forward.6} parent=1 // pred_region
      _
    $region9: #{_forward.6} parent=1 // pred_fallthru
      _
    // Predicated region
    $region10: #{_forward.6} parent=1 // pred_check
      _
    $region11: #{_forward.6} parent=1 // pred_check_branch
      %17 = sbr.rel (0) target = $region13
    $region12: #{_forward.6} parent=1 // pred_region
      _
    $region13: #{_forward.6} parent=1 // pred_fallthru
      _
    // Predicated region
    $region14: #{_forward.6} parent=1 // pred_check
      _
    $region15: #{_forward.6} parent=1 // pred_check_branch
      %19 = sbr.rel (0) target = $region17
    $region16: #{_forward.6} parent=1 // pred_region
      _
    $region17: #{_forward.6} parent=1 // pred_fallthru
      _
    %v21 = vld [vmem:[%s0] sm:$0xff]
    %v22 = vld [vmem:[%s0 + $0x8] sm:$0xff]
    %v23 = vld [vmem:[%s0 + $0x10] sm:$0xff]
    %v24 = vld [vmem:[%s0 + $0x18] sm:$0xff]
    %v25 = vld [vmem:[%s0 + $0x20] sm:$0xff]
    %v26 = vld [vmem:[%s0 + $0x28] sm:$0xff]
    %v27 = vld [vmem:[%s0 + $0x30] sm:$0xff]
    %v28 = vld [vmem:[%s0 + $0x38] sm:$0xff]
    %v29 = vld [vmem:[%s0 + $0x40] sm:$0xff]
    %v30 = vld [vmem:[%s0 + $0x48] sm:$0xff]
    %v31 = vld [vmem:[%s0 + $0x50] sm:$0xff]
    %v32 = vld [vmem:[%s0 + $0x58] sm:$0xff]
    %v33 = vld [vmem:[%s0 + $0x60] sm:$0xff]
    %v34 = vld [vmem:[%s0 + $0x68] sm:$0xff]
    %v35 = vld [vmem:[%s0 + $0x70] sm:$0xff]
    %v36 = vld [vmem:[%s0 + $0x78] sm:$0xff]
    %v37 = vld [vmem:[%s0 + $0x80] sm:$0xff]
    %v38 = vld [vmem:[%s0 + $0x88] sm:$0xff]
    %v39 = vld [vmem:[%s0 + $0x90] sm:$0xff]
    %v40 = vld [vmem:[%s0 + $0x98] sm:$0xff]
    %v41 = vld [vmem:[%s0 + $0xa0] sm:$0xff]
    %v42 = vld [vmem:[%s0 + $0xa8] sm:$0xff]
    %v43 = vld [vmem:[%s0 + $0xb0] sm:$0xff]
    %v44 = vld [vmem:[%s0 + $0xb8] sm:$0xff]
    %v45 = vld [vmem:[%s0 + $0xc0] sm:$0xff]
    %v46 = vld [vmem:[%s0 + $0xc8] sm:$0xff]
    %v47 = vld [vmem:[%s0 + $0xd0] sm:$0xff]
    %v48 = vld [vmem:[%s0 + $0xd8] sm:$0xff]
    %v49 = vld [vmem:[%s0 + $0xe0] sm:$0xff]
    %v50 = vld [vmem:[%s0 + $0xe8] sm:$0xff]
    %v51 = vld [vmem:[%s0 + $0xf0] sm:$0xff]
    %v52 = vld [vmem:[%s0 + $0xf8] sm:$0xff]
    %v53 = vld [vmem:[%s1] sm:$0xf]
    %v54 = vld [vmem:[%s1 + $0x4] sm:$0xf]
    %v55 = vld [vmem:[%s1 + $0x8] sm:$0xf]
    %v56 = vld [vmem:[%s1 + $0xc] sm:$0xf]
    %v57 = vld [vmem:[%s1 + $0x10] sm:$0xf]
    %v58 = vld [vmem:[%s1 + $0x14] sm:$0xf]
    %v59 = vld [vmem:[%s1 + $0x18] sm:$0xf]
    %v60 = vld [vmem:[%s1 + $0x1c] sm:$0xf]
    %v61 = vld [vmem:[%s1 + $0x20] sm:$0xf]
    %v62 = vld [vmem:[%s1 + $0x24] sm:$0xf]
    %v63 = vld [vmem:[%s1 + $0x28] sm:$0xf]
    %v64 = vld [vmem:[%s1 + $0x2c] sm:$0xf]
    %v65 = vld [vmem:[%s1 + $0x30] sm:$0xf]
    %v66 = vld [vmem:[%s1 + $0x34] sm:$0xf]
    %v67 = vld [vmem:[%s1 + $0x38] sm:$0xf]
    %v68 = vld [vmem:[%s1 + $0x3c] sm:$0xf]
    %v69 = vld [vmem:[%s1 + $0x40] sm:$0xf]
    %v70 = vld [vmem:[%s1 + $0x44] sm:$0xf]
    %v71 = vld [vmem:[%s1 + $0x48] sm:$0xf]
    %v72 = vld [vmem:[%s1 + $0x4c] sm:$0xf]
    %v73 = vld [vmem:[%s1 + $0x50] sm:$0xf]
    %v74 = vld [vmem:[%s1 + $0x54] sm:$0xf]
    %v75 = vld [vmem:[%s1 + $0x58] sm:$0xf]
    %v76 = vld [vmem:[%s1 + $0x5c] sm:$0xf]
    %v77 = vld [vmem:[%s1 + $0x60] sm:$0xf]
    %v78 = vld [vmem:[%s1 + $0x64] sm:$0xf]
    %v79 = vld [vmem:[%s1 + $0x68] sm:$0xf]
    %v80 = vld [vmem:[%s1 + $0x6c] sm:$0xf]
    %v81 = vld [vmem:[%s1 + $0x70] sm:$0xf]
    %v82 = vld [vmem:[%s1 + $0x74] sm:$0xf]
    %v83 = vld [vmem:[%s1 + $0x78] sm:$0xf]
    %v84 = vld [vmem:[%s1 + $0x7c] sm:$0xf]
    %v85 = vld [vmem:[%s2] sm:$0x1]
    %v87 = vlaneseq
    %v88 = vshrl.u32 %v87, 7
    %v89 = vsub.s32 0, %v88
    %v90 = vrot.slane %v85, %v89
    %v124 = vunpack.c.l.b16 %v21
    %v125 = vunpack.c.h.b16 %v21
    %v126 = vunpack.c.l.b16 %v22
    %v127 = vunpack.c.h.b16 %v22
    %v128 = vunpack.c.l.b16 %v23
    %v129 = vunpack.c.h.b16 %v23
    %v130 = vunpack.c.l.b16 %v24
    %v131 = vunpack.c.h.b16 %v24
    %v132 = vunpack.c.l.b16 %v25
    %v133 = vunpack.c.h.b16 %v25
    %v134 = vunpack.c.l.b16 %v26
    %v135 = vunpack.c.h.b16 %v26
    %v136 = vunpack.c.l.b16 %v27
    %v137 = vunpack.c.h.b16 %v27
    %v138 = vunpack.c.l.b16 %v28
    %v139 = vunpack.c.h.b16 %v28
    %v140 = vunpack.c.l.b16 %v29
    %v141 = vunpack.c.h.b16 %v29
    %v142 = vunpack.c.l.b16 %v30
    %v143 = vunpack.c.h.b16 %v30
    %v144 = vunpack.c.l.b16 %v31
    %v145 = vunpack.c.h.b16 %v31
    %v146 = vunpack.c.l.b16 %v32
    %v147 = vunpack.c.h.b16 %v32
    %v148 = vunpack.c.l.b16 %v33
    %v149 = vunpack.c.h.b16 %v33
    %v150 = vunpack.c.l.b16 %v34
    %v151 = vunpack.c.h.b16 %v34
    %v152 = vunpack.c.l.b16 %v35
    %v153 = vunpack.c.h.b16 %v35
    %v154 = vunpack.c.l.b16 %v36
    %v155 = vunpack.c.h.b16 %v36
    %v156 = vunpack.c.l.b16 %v37
    %v157 = vunpack.c.h.b16 %v37
    %v158 = vunpack.c.l.b16 %v38
    %v159 = vunpack.c.h.b16 %v38
    %v160 = vunpack.c.l.b16 %v39
    %v161 = vunpack.c.h.b16 %v39
    %v162 = vunpack.c.l.b16 %v40
    %v163 = vunpack.c.h.b16 %v40
    %v164 = vunpack.c.l.b16 %v41
    %v165 = vunpack.c.h.b16 %v41
    %v166 = vunpack.c.l.b16 %v42
    %v167 = vunpack.c.h.b16 %v42
    %v168 = vunpack.c.l.b16 %v43
    %v169 = vunpack.c.h.b16 %v43
    %v170 = vunpack.c.l.b16 %v44
    %v171 = vunpack.c.h.b16 %v44
    %v172 = vunpack.c.l.b16 %v45
    %v173 = vunpack.c.h.b16 %v45
    %v174 = vunpack.c.l.b16 %v46
    %v175 = vunpack.c.h.b16 %v46
    %v176 = vunpack.c.l.b16 %v47
    %v177 = vunpack.c.h.b16 %v47
    %v178 = vunpack.c.l.b16 %v48
    %v179 = vunpack.c.h.b16 %v48
    %v180 = vunpack.c.l.b16 %v49
    %v181 = vunpack.c.h.b16 %v49
    %v182 = vunpack.c.l.b16 %v50
    %v183 = vunpack.c.h.b16 %v50
    %v184 = vunpack.c.l.b16 %v51
    %v185 = vunpack.c.h.b16 %v51
    %v186 = vunpack.c.l.b16 %v52
    %v187 = vunpack.c.h.b16 %v52
    %v188 = vpack.c.b16 %v126, %v124
    %v189 = vpack.c.b16 %v127, %v125
    %v190 = vpack.c.b16 %v130, %v128
    %v191 = vpack.c.b16 %v131, %v129
    %v192 = vpack.c.b16 %v134, %v132
    %v193 = vpack.c.b16 %v135, %v133
    %v194 = vpack.c.b16 %v138, %v136
    %v195 = vpack.c.b16 %v139, %v137
    %v196 = vpack.c.b16 %v142, %v140
    %v197 = vpack.c.b16 %v143, %v141
    %v198 = vpack.c.b16 %v146, %v144
    %v199 = vpack.c.b16 %v147, %v145
    %v200 = vpack.c.b16 %v150, %v148
    %v201 = vpack.c.b16 %v151, %v149
    %v202 = vpack.c.b16 %v154, %v152
    %v203 = vpack.c.b16 %v155, %v153
    %v204 = vpack.c.b16 %v158, %v156
    %v205 = vpack.c.b16 %v159, %v157
    %v206 = vpack.c.b16 %v162, %v160
    %v207 = vpack.c.b16 %v163, %v161
    %v208 = vpack.c.b16 %v166, %v164
    %v209 = vpack.c.b16 %v167, %v165
    %v210 = vpack.c.b16 %v170, %v168
    %v211 = vpack.c.b16 %v171, %v169
    %v212 = vpack.c.b16 %v174, %v172
    %v213 = vpack.c.b16 %v175, %v173
    %v214 = vpack.c.b16 %v178, %v176
    %v215 = vpack.c.b16 %v179, %v177
    %v216 = vpack.c.b16 %v182, %v180
    %v217 = vpack.c.b16 %v183, %v181
    %v218 = vpack.c.b16 %v186, %v184
    %v219 = vpack.c.b16 %v187, %v185
    %v284 = vunpack.c.l.b16 %v53
    %v285 = vunpack.c.l.b16 %v54
    %v286 = vunpack.c.l.b16 %v55
    %v287 = vunpack.c.l.b16 %v56
    %v288 = vunpack.c.l.b16 %v57
    %v289 = vunpack.c.l.b16 %v58
    %v290 = vunpack.c.l.b16 %v59
    %v291 = vunpack.c.l.b16 %v60
    %v292 = vunpack.c.l.b16 %v61
    %v293 = vunpack.c.l.b16 %v62
    %v294 = vunpack.c.l.b16 %v63
    %v295 = vunpack.c.l.b16 %v64
    %v296 = vunpack.c.l.b16 %v65
    %v297 = vunpack.c.l.b16 %v66
    %v298 = vunpack.c.l.b16 %v67
    %v299 = vunpack.c.l.b16 %v68
    %v300 = vunpack.c.l.b16 %v69
    %v301 = vunpack.c.l.b16 %v70
    %v302 = vunpack.c.l.b16 %v71
    %v303 = vunpack.c.l.b16 %v72
    %v304 = vunpack.c.l.b16 %v73
    %v305 = vunpack.c.l.b16 %v74
    %v306 = vunpack.c.l.b16 %v75
    %v307 = vunpack.c.l.b16 %v76
    %v308 = vunpack.c.l.b16 %v77
    %v309 = vunpack.c.l.b16 %v78
    %v310 = vunpack.c.l.b16 %v79
    %v311 = vunpack.c.l.b16 %v80
    %v312 = vunpack.c.l.b16 %v81
    %v313 = vunpack.c.l.b16 %v82
    %v314 = vunpack.c.l.b16 %v83
    %v315 = vunpack.c.l.b16 %v84
    %v316 = vpack.c.b16 %v285, %v284
    %v317 = vpack.c.b16 %v287, %v286
    %v318 = vpack.c.b16 %v289, %v288
    %v319 = vpack.c.b16 %v291, %v290
    %v320 = vpack.c.b16 %v293, %v292
    %v321 = vpack.c.b16 %v295, %v294
    %v322 = vpack.c.b16 %v297, %v296
    %v323 = vpack.c.b16 %v299, %v298
    %v324 = vpack.c.b16 %v301, %v300
    %v325 = vpack.c.b16 %v303, %v302
    %v326 = vpack.c.b16 %v305, %v304
    %v327 = vpack.c.b16 %v307, %v306
    %v328 = vpack.c.b16 %v309, %v308
    %v329 = vpack.c.b16 %v311, %v310
    %v330 = vpack.c.b16 %v313, %v312
    %v331 = vpack.c.b16 %v315, %v314
    %348 = vmatprep.subr.bf16.mxu0 0
    %349 = vmatpush1.bf16.msra.mxu0 %v316
    %350 = vmatprep.subr.bf16.mxu0 0
    %351 = vmatpush1.bf16.msra.mxu0 %v317
    %352 = vmatprep.subr.bf16.mxu0 0
    %353 = vmatpush1.bf16.msra.mxu0 %v318
    %354 = vmatprep.subr.bf16.mxu0 0
    %355 = vmatpush1.bf16.msra.mxu0 %v319
    %356 = vmatprep.subr.bf16.mxu0 0
    %357 = vmatpush1.bf16.msra.mxu0 %v320
    %358 = vmatprep.subr.bf16.mxu0 0
    %359 = vmatpush1.bf16.msra.mxu0 %v321
    %360 = vmatprep.subr.bf16.mxu0 0
    %361 = vmatpush1.bf16.msra.mxu0 %v322
    %362 = vmatprep.subr.bf16.mxu0 0
    %363 = vmatpush1.bf16.msra.mxu0 %v323
    %364 = vmatprep.subr.bf16.mxu0 0
    %365 = vmatpush1.bf16.msra.mxu0 %v324
    %366 = vmatprep.subr.bf16.mxu0 0
    %367 = vmatpush1.bf16.msra.mxu0 %v325
    %368 = vmatprep.subr.bf16.mxu0 0
    %369 = vmatpush1.bf16.msra.mxu0 %v326
    %370 = vmatprep.subr.bf16.mxu0 0
    %371 = vmatpush1.bf16.msra.mxu0 %v327
    %372 = vmatprep.subr.bf16.mxu0 0
    %373 = vmatpush1.bf16.msra.mxu0 %v328
    %374 = vmatprep.subr.bf16.mxu0 0
    %375 = vmatpush1.bf16.msra.mxu0 %v329
    %376 = vmatprep.subr.bf16.mxu0 0
    %377 = vmatpush1.bf16.msra.mxu0 %v330
    %378 = vmatprep.subr.bf16.mxu0 0
    %379 = vmatpush1.bf16.msra.mxu0 %v331
    %380 = vmatprep.mubr.bf16.mxu0 %v189
    %381 = vmatmul.mubr.bf16.gmra.mrb[0].mxu0 %v188
    %v382 = vpop.f32.mrb[0].mxu0
    %v383 = vadd.f32 %v90, %v382
    %v384 = vpop.f32.mrb[0].mxu0
    %v385 = vpop.f32.mrb[0].mxu0
    %v386 = vadd.f32 %v90, %v385
    %v387 = vpop.f32.mrb[0].mxu0
    %388 = vmatprep.mubr.bf16.mxu0 %v191
    %389 = vmatmul.mubr.bf16.gmra.mrb[0].mxu0 %v190
    %v390 = vpop.f32.mrb[0].mxu0
    %v391 = vadd.f32 %v90, %v390
    %v392 = vpop.f32.mrb[0].mxu0
    %v393 = vpop.f32.mrb[0].mxu0
    %v394 = vadd.f32 %v90, %v393
    %v395 = vpop.f32.mrb[0].mxu0
    %396 = vmatprep.mubr.bf16.mxu0 %v193
    %397 = vmatmul.mubr.bf16.gmra.mrb[0].mxu0 %v192
    %v398 = vpop.f32.mrb[0].mxu0
    %v399 = vadd.f32 %v90, %v398
    %v400 = vpop.f32.mrb[0].mxu0
    %v401 = vpop.f32.mrb[0].mxu0
    %v402 = vadd.f32 %v90, %v401
    %v403 = vpop.f32.mrb[0].mxu0
    %404 = vmatprep.mubr.bf16.mxu0 %v195
    %405 = vmatmul.mubr.bf16.gmra.mrb[0].mxu0 %v194
    %v406 = vpop.f32.mrb[0].mxu0
    %v407 = vadd.f32 %v90, %v406
    %v408 = vpop.f32.mrb[0].mxu0
    %v409 = vpop.f32.mrb[0].mxu0
    %v410 = vadd.f32 %v90, %v409
    %v411 = vpop.f32.mrb[0].mxu0
    %412 = vmatprep.mubr.bf16.mxu0 %v197
    %413 = vmatmul.mubr.bf16.gmra.mrb[0].mxu0 %v196
    %v414 = vpop.f32.mrb[0].mxu0
    %v415 = vadd.f32 %v90, %v414
    %v416 = vpop.f32.mrb[0].mxu0
    %v417 = vpop.f32.mrb[0].mxu0
    %v418 = vadd.f32 %v90, %v417
    %v419 = vpop.f32.mrb[0].mxu0
    %420 = vmatprep.mubr.bf16.mxu0 %v199
    %421 = vmatmul.mubr.bf16.gmra.mrb[0].mxu0 %v198
    %v422 = vpop.f32.mrb[0].mxu0
    %v423 = vadd.f32 %v90, %v422
    %v424 = vpop.f32.mrb[0].mxu0
    %v425 = vpop.f32.mrb[0].mxu0
    %v426 = vadd.f32 %v90, %v425
    %v427 = vpop.f32.mrb[0].mxu0
    %428 = vmatprep.mubr.bf16.mxu0 %v201
    %429 = vmatmul.mubr.bf16.gmra.mrb[0].mxu0 %v200
    %v430 = vpop.f32.mrb[0].mxu0
    %v431 = vadd.f32 %v90, %v430
    %v432 = vpop.f32.mrb[0].mxu0
    %v433 = vpop.f32.mrb[0].mxu0
    %v434 = vadd.f32 %v90, %v433
    %v435 = vpop.f32.mrb[0].mxu0
    %436 = vmatprep.mubr.bf16.mxu0 %v203
    %437 = vmatmul.mubr.bf16.gmra.mrb[0].mxu0 %v202
    %v438 = vpop.f32.mrb[0].mxu0
    %v439 = vadd.f32 %v90, %v438
    %v440 = vpop.f32.mrb[0].mxu0
    %v441 = vpop.f32.mrb[0].mxu0
    %v442 = vadd.f32 %v90, %v441
    %v443 = vpop.f32.mrb[0].mxu0
    %444 = vmatprep.mubr.bf16.mxu0 %v205
    %445 = vmatmul.mubr.bf16.gmra.mrb[0].mxu0 %v204
    %v446 = vpop.f32.mrb[0].mxu0
    %v447 = vadd.f32 %v90, %v446
    %v448 = vpop.f32.mrb[0].mxu0
    %v449 = vpop.f32.mrb[0].mxu0
    %v450 = vadd.f32 %v90, %v449
    %v451 = vpop.f32.mrb[0].mxu0
    %452 = vmatprep.mubr.bf16.mxu0 %v207
    %453 = vmatmul.mubr.bf16.gmra.mrb[0].mxu0 %v206
    %v454 = vpop.f32.mrb[0].mxu0
    %v455 = vadd.f32 %v90, %v454
    %v456 = vpop.f32.mrb[0].mxu0
    %v457 = vpop.f32.mrb[0].mxu0
    %v458 = vadd.f32 %v90, %v457
    %v459 = vpop.f32.mrb[0].mxu0
    %460 = vmatprep.mubr.bf16.mxu0 %v209
    %461 = vmatmul.mubr.bf16.gmra.mrb[0].mxu0 %v208
    %v462 = vpop.f32.mrb[0].mxu0
    %v463 = vadd.f32 %v90, %v462
    %v464 = vpop.f32.mrb[0].mxu0
    %v465 = vpop.f32.mrb[0].mxu0
    %v466 = vadd.f32 %v90, %v465
    %v467 = vpop.f32.mrb[0].mxu0
    %468 = vmatprep.mubr.bf16.mxu0 %v211
    %469 = vmatmul.mubr.bf16.gmra.mrb[0].mxu0 %v210
    %v470 = vpop.f32.mrb[0].mxu0
    %v471 = vadd.f32 %v90, %v470
    %v472 = vpop.f32.mrb[0].mxu0
    %v473 = vpop.f32.mrb[0].mxu0
    %v474 = vadd.f32 %v90, %v473
    %v475 = vpop.f32.mrb[0].mxu0
    %476 = vmatprep.mubr.bf16.mxu0 %v213
    %477 = vmatmul.mubr.bf16.gmra.mrb[0].mxu0 %v212
    %v478 = vpop.f32.mrb[0].mxu0
    %v479 = vadd.f32 %v90, %v478
    %v480 = vpop.f32.mrb[0].mxu0
    %v481 = vpop.f32.mrb[0].mxu0
    %v482 = vadd.f32 %v90, %v481
    %v483 = vpop.f32.mrb[0].mxu0
    %484 = vmatprep.mubr.bf16.mxu0 %v215
    %485 = vmatmul.mubr.bf16.gmra.mrb[0].mxu0 %v214
    %v486 = vpop.f32.mrb[0].mxu0
    %v487 = vadd.f32 %v90, %v486
    %v488 = vpop.f32.mrb[0].mxu0
    %v489 = vpop.f32.mrb[0].mxu0
    %v490 = vadd.f32 %v90, %v489
    %v491 = vpop.f32.mrb[0].mxu0
    %492 = vmatprep.mubr.bf16.mxu0 %v217
    %493 = vmatmul.mubr.bf16.gmra.mrb[0].mxu0 %v216
    %v494 = vpop.f32.mrb[0].mxu0
    %v495 = vadd.f32 %v90, %v494
    %v496 = vpop.f32.mrb[0].mxu0
    %v497 = vpop.f32.mrb[0].mxu0
    %v498 = vadd.f32 %v90, %v497
    %v499 = vpop.f32.mrb[0].mxu0
    %500 = vmatprep.mubr.bf16.mxu0 %v219
    %501 = vmatmul.mubr.bf16.gmra.mrb[0].mxu0 %v218
    %v502 = vpop.f32.mrb[0].mxu0
    %v503 = vadd.f32 %v90, %v502
    %v504 = vpop.f32.mrb[0].mxu0
    %v505 = vpop.f32.mrb[0].mxu0
    %v506 = vadd.f32 %v90, %v505
    %v507 = vpop.f32.mrb[0].mxu0
    %508 = vdwg.mxu0
    %v509 = vmax.f32 %v383, 0.0
    %v510 = vmax.f32 %v386, 0.0
    %v511 = vmax.f32 %v391, 0.0
    %v512 = vmax.f32 %v394, 0.0
    %v513 = vmax.f32 %v399, 0.0
    %v514 = vmax.f32 %v402, 0.0
    %v515 = vmax.f32 %v407, 0.0
    %v516 = vmax.f32 %v410, 0.0
    %v517 = vmax.f32 %v415, 0.0
    %v518 = vmax.f32 %v418, 0.0
    %v519 = vmax.f32 %v423, 0.0
    %v520 = vmax.f32 %v426, 0.0
    %v521 = vmax.f32 %v431, 0.0
    %v522 = vmax.f32 %v434, 0.0
    %v523 = vmax.f32 %v439, 0.0
    %v524 = vmax.f32 %v442, 0.0
    %v525 = vmax.f32 %v447, 0.0
    %v526 = vmax.f32 %v450, 0.0
    %v527 = vmax.f32 %v455, 0.0
    %v528 = vmax.f32 %v458, 0.0
    %v529 = vmax.f32 %v463, 0.0
    %v530 = vmax.f32 %v466, 0.0
    %v531 = vmax.f32 %v471, 0.0
    %v532 = vmax.f32 %v474, 0.0
    %v533 = vmax.f32 %v479, 0.0
    %v534 = vmax.f32 %v482, 0.0
    %v535 = vmax.f32 %v487, 0.0
    %v536 = vmax.f32 %v490, 0.0
    %v537 = vmax.f32 %v495, 0.0
    %v538 = vmax.f32 %v498, 0.0
    %v539 = vmax.f32 %v503, 0.0
    %v540 = vmax.f32 %v506, 0.0
    %v541 = vpack.c.bf16 %v510, %v509
    %v542 = vpack.c.bf16 %v512, %v511
    %v543 = vpack.c.bf16 %v514, %v513
    %v544 = vpack.c.bf16 %v516, %v515
    %v545 = vpack.c.bf16 %v518, %v517
    %v546 = vpack.c.bf16 %v520, %v519
    %v547 = vpack.c.bf16 %v522, %v521
    %v548 = vpack.c.bf16 %v524, %v523
    %v549 = vpack.c.bf16 %v526, %v525
    %v550 = vpack.c.bf16 %v528, %v527
    %v551 = vpack.c.bf16 %v530, %v529
    %v552 = vpack.c.bf16 %v532, %v531
    %v553 = vpack.c.bf16 %v534, %v533
    %v554 = vpack.c.bf16 %v536, %v535
    %v555 = vpack.c.bf16 %v538, %v537
    %v556 = vpack.c.bf16 %v540, %v539
    %v573 = vunpack.c.l.b16 %v541
    %v574 = vunpack.c.h.b16 %v541
    %v575 = vunpack.c.l.b16 %v542
    %v576 = vunpack.c.h.b16 %v542
    %v577 = vunpack.c.l.b16 %v543
    %v578 = vunpack.c.h.b16 %v543
    %v579 = vunpack.c.l.b16 %v544
    %v580 = vunpack.c.h.b16 %v544
    %v581 = vunpack.c.l.b16 %v545
    %v582 = vunpack.c.h.b16 %v545
    %v583 = vunpack.c.l.b16 %v546
    %v584 = vunpack.c.h.b16 %v546
    %v585 = vunpack.c.l.b16 %v547
    %v586 = vunpack.c.h.b16 %v547
    %v587 = vunpack.c.l.b16 %v548
    %v588 = vunpack.c.h.b16 %v548
    %v589 = vunpack.c.l.b16 %v549
    %v590 = vunpack.c.h.b16 %v549
    %v591 = vunpack.c.l.b16 %v550
    %v592 = vunpack.c.h.b16 %v550
    %v593 = vunpack.c.l.b16 %v551
    %v594 = vunpack.c.h.b16 %v551
    %v595 = vunpack.c.l.b16 %v552
    %v596 = vunpack.c.h.b16 %v552
    %v597 = vunpack.c.l.b16 %v553
    %v598 = vunpack.c.h.b16 %v553
    %v599 = vunpack.c.l.b16 %v554
    %v600 = vunpack.c.h.b16 %v554
    %v601 = vunpack.c.l.b16 %v555
    %v602 = vunpack.c.h.b16 %v555
    %v603 = vunpack.c.l.b16 %v556
    %v604 = vunpack.c.h.b16 %v556
    %v605 = vpack.c.b16 %v573, %v573
    %v606 = vpack.c.b16 %v574, %v574
    %v607 = vpack.c.b16 %v575, %v575
    %v608 = vpack.c.b16 %v576, %v576
    %v609 = vpack.c.b16 %v577, %v577
    %v610 = vpack.c.b16 %v578, %v578
    %v611 = vpack.c.b16 %v579, %v579
    %v612 = vpack.c.b16 %v580, %v580
    %v613 = vpack.c.b16 %v581, %v581
    %v614 = vpack.c.b16 %v582, %v582
    %v615 = vpack.c.b16 %v583, %v583
    %v616 = vpack.c.b16 %v584, %v584
    %v617 = vpack.c.b16 %v585, %v585
    %v618 = vpack.c.b16 %v586, %v586
    %v619 = vpack.c.b16 %v587, %v587
    %v620 = vpack.c.b16 %v588, %v588
    %v621 = vpack.c.b16 %v589, %v589
    %v622 = vpack.c.b16 %v590, %v590
    %v623 = vpack.c.b16 %v591, %v591
    %v624 = vpack.c.b16 %v592, %v592
    %v625 = vpack.c.b16 %v593, %v593
    %v626 = vpack.c.b16 %v594, %v594
    %v627 = vpack.c.b16 %v595, %v595
    %v628 = vpack.c.b16 %v596, %v596
    %v629 = vpack.c.b16 %v597, %v597
    %v630 = vpack.c.b16 %v598, %v598
    %v631 = vpack.c.b16 %v599, %v599
    %v632 = vpack.c.b16 %v600, %v600
    %v633 = vpack.c.b16 %v601, %v601
    %v634 = vpack.c.b16 %v602, %v602
    %v635 = vpack.c.b16 %v603, %v603
    %v636 = vpack.c.b16 %v604, %v604
    %669 = vst [vmem:[%s4] sm:$0xf] %v605
    %670 = vst [vmem:[%s4 + $0x4] sm:$0xf] %v606
    %671 = vst [vmem:[%s4 + $0x8] sm:$0xf] %v607
    %672 = vst [vmem:[%s4 + $0xc] sm:$0xf] %v608
    %673 = vst [vmem:[%s4 + $0x10] sm:$0xf] %v609
    %674 = vst [vmem:[%s4 + $0x14] sm:$0xf] %v610
    %675 = vst [vmem:[%s4 + $0x18] sm:$0xf] %v611
    %676 = vst [vmem:[%s4 + $0x1c] sm:$0xf] %v612
    %677 = vst [vmem:[%s4 + $0x20] sm:$0xf] %v613
    %678 = vst [vmem:[%s4 + $0x24] sm:$0xf] %v614
    %679 = vst [vmem:[%s4 + $0x28] sm:$0xf] %v615
    %680 = vst [vmem:[%s4 + $0x2c] sm:$0xf] %v616
    %681 = vst [vmem:[%s4 + $0x30] sm:$0xf] %v617
    %682 = vst [vmem:[%s4 + $0x34] sm:$0xf] %v618
    %683 = vst [vmem:[%s4 + $0x38] sm:$0xf] %v619
    %684 = vst [vmem:[%s4 + $0x3c] sm:$0xf] %v620
    %685 = vst [vmem:[%s4 + $0x40] sm:$0xf] %v621
    %686 = vst [vmem:[%s4 + $0x44] sm:$0xf] %v622
    %687 = vst [vmem:[%s4 + $0x48] sm:$0xf] %v623
    %688 = vst [vmem:[%s4 + $0x4c] sm:$0xf] %v624
    %689 = vst [vmem:[%s4 + $0x50] sm:$0xf] %v625
    %690 = vst [vmem:[%s4 + $0x54] sm:$0xf] %v626
    %691 = vst [vmem:[%s4 + $0x58] sm:$0xf] %v627
    %692 = vst [vmem:[%s4 + $0x5c] sm:$0xf] %v628
    %693 = vst [vmem:[%s4 + $0x60] sm:$0xf] %v629
    %694 = vst [vmem:[%s4 + $0x64] sm:$0xf] %v630
    %695 = vst [vmem:[%s4 + $0x68] sm:$0xf] %v631
    %696 = vst [vmem:[%s4 + $0x6c] sm:$0xf] %v632
    %697 = vst [vmem:[%s4 + $0x70] sm:$0xf] %v633
    %698 = vst [vmem:[%s4 + $0x74] sm:$0xf] %v634
    %699 = vst [vmem:[%s4 + $0x78] sm:$0xf] %v635
    %700 = vst [vmem:[%s4 + $0x7c] sm:$0xf] %v636
    %v701 = vmul.f32 %v509, %v509
    %v702 = vmul.f32 %v510, %v510
    %v703 = vmul.f32 %v511, %v511
    %v704 = vmul.f32 %v512, %v512
    %v705 = vmul.f32 %v513, %v513
    %v706 = vmul.f32 %v514, %v514
    %v707 = vmul.f32 %v515, %v515
    %v708 = vmul.f32 %v516, %v516
    %v709 = vmul.f32 %v517, %v517
    %v710 = vmul.f32 %v518, %v518
    %v711 = vmul.f32 %v519, %v519
    %v712 = vmul.f32 %v520, %v520
    %v713 = vmul.f32 %v521, %v521
    %v714 = vmul.f32 %v522, %v522
    %v715 = vmul.f32 %v523, %v523
    %v716 = vmul.f32 %v524, %v524
    %717 = vadd.xlane.f32.xlu0 %v701
    %v718 = vpop.xlane.xlu0 %717
    %719 = vadd.xlane.f32.xlu0 %v702
    %v720 = vpop.xlane.xlu0 %719
    %721 = vadd.xlane.f32.xlu0 %v703
    %v722 = vpop.xlane.xlu0 %721
    %723 = vadd.xlane.f32.xlu0 %v704
    %v724 = vpop.xlane.xlu0 %723
    %725 = vadd.xlane.f32.xlu0 %v705
    %v726 = vpop.xlane.xlu0 %725
    %727 = vadd.xlane.f32.xlu0 %v706
    %v728 = vpop.xlane.xlu0 %727
    %729 = vadd.xlane.f32.xlu0 %v707
    %v730 = vpop.xlane.xlu0 %729
    %731 = vadd.xlane.f32.xlu0 %v708
    %v732 = vpop.xlane.xlu0 %731
    %733 = vadd.xlane.f32.xlu0 %v709
    %v734 = vpop.xlane.xlu0 %733
    %735 = vadd.xlane.f32.xlu0 %v710
    %v736 = vpop.xlane.xlu0 %735
    %737 = vadd.xlane.f32.xlu0 %v711
    %v738 = vpop.xlane.xlu0 %737
    %739 = vadd.xlane.f32.xlu0 %v712
    %v740 = vpop.xlane.xlu0 %739
    %741 = vadd.xlane.f32.xlu0 %v713
    %v742 = vpop.xlane.xlu0 %741
    %743 = vadd.xlane.f32.xlu0 %v714
    %v744 = vpop.xlane.xlu0 %743
    %745 = vadd.xlane.f32.xlu0 %v715
    %v746 = vpop.xlane.xlu0 %745
    %747 = vadd.xlane.f32.xlu0 %v716
    %v748 = vpop.xlane.xlu0 %747
    %v749 = vadd.f32 %v718, 1e-10
    %v750 = vadd.f32 %v720, 1e-10
    %v751 = vadd.f32 %v722, 1e-10
    %v752 = vadd.f32 %v724, 1e-10
    %v753 = vadd.f32 %v726, 1e-10
    %v754 = vadd.f32 %v728, 1e-10
    %v755 = vadd.f32 %v730, 1e-10
    %v756 = vadd.f32 %v732, 1e-10
    %v757 = vadd.f32 %v734, 1e-10
    %v758 = vadd.f32 %v736, 1e-10
    %v759 = vadd.f32 %v738, 1e-10
    %v760 = vadd.f32 %v740, 1e-10
    %v761 = vadd.f32 %v742, 1e-10
    %v762 = vadd.f32 %v744, 1e-10
    %v763 = vadd.f32 %v746, 1e-10
    %v764 = vadd.f32 %v748, 1e-10
    %v765 = vrsqrt.pop %v749
    %v766 = vrsqrt.pop %v750
    %v767 = vrsqrt.pop %v751
    %v768 = vrsqrt.pop %v752
    %v769 = vrsqrt.pop %v753
    %v770 = vrsqrt.pop %v754
    %v771 = vrsqrt.pop %v755
    %v772 = vrsqrt.pop %v756
    %v773 = vrsqrt.pop %v757
    %v774 = vrsqrt.pop %v758
    %v775 = vrsqrt.pop %v759
    %v776 = vrsqrt.pop %v760
    %v777 = vrsqrt.pop %v761
    %v778 = vrsqrt.pop %v762
    %v779 = vrsqrt.pop %v763
    %v780 = vrsqrt.pop %v764
    %v781 = vmul.f32 %v509, %v765
    %v782 = vmul.f32 %v510, %v766
    %v783 = vmul.f32 %v511, %v767
    %v784 = vmul.f32 %v512, %v768
    %v785 = vmul.f32 %v513, %v769
    %v786 = vmul.f32 %v514, %v770
    %v787 = vmul.f32 %v515, %v771
    %v788 = vmul.f32 %v516, %v772
    %v789 = vmul.f32 %v517, %v773
    %v790 = vmul.f32 %v518, %v774
    %v791 = vmul.f32 %v519, %v775
    %v792 = vmul.f32 %v520, %v776
    %v793 = vmul.f32 %v521, %v777
    %v794 = vmul.f32 %v522, %v778
    %v795 = vmul.f32 %v523, %v779
    %v796 = vmul.f32 %v524, %v780
    %v797 = vmul.f32 %v525, %v525
    %v798 = vmul.f32 %v526, %v526
    %v799 = vmul.f32 %v527, %v527
    %v800 = vmul.f32 %v528, %v528
    %v801 = vmul.f32 %v529, %v529
    %v802 = vmul.f32 %v530, %v530
    %v803 = vmul.f32 %v531, %v531
    %v804 = vmul.f32 %v532, %v532
    %v805 = vmul.f32 %v533, %v533
    %v806 = vmul.f32 %v534, %v534
    %v807 = vmul.f32 %v535, %v535
    %v808 = vmul.f32 %v536, %v536
    %v809 = vmul.f32 %v537, %v537
    %v810 = vmul.f32 %v538, %v538
    %v811 = vmul.f32 %v539, %v539
    %v812 = vmul.f32 %v540, %v540
    %813 = vadd.xlane.f32.xlu0 %v797
    %v814 = vpop.xlane.xlu0 %813
    %815 = vadd.xlane.f32.xlu0 %v798
    %v816 = vpop.xlane.xlu0 %815
    %817 = vadd.xlane.f32.xlu0 %v799
    %v818 = vpop.xlane.xlu0 %817
    %819 = vadd.xlane.f32.xlu0 %v800
    %v820 = vpop.xlane.xlu0 %819
    %821 = vadd.xlane.f32.xlu0 %v801
    %v822 = vpop.xlane.xlu0 %821
    %823 = vadd.xlane.f32.xlu0 %v802
    %v824 = vpop.xlane.xlu0 %823
    %825 = vadd.xlane.f32.xlu0 %v803
    %v826 = vpop.xlane.xlu0 %825
    %827 = vadd.xlane.f32.xlu0 %v804
    %v828 = vpop.xlane.xlu0 %827
    %829 = vadd.xlane.f32.xlu0 %v805
    %v830 = vpop.xlane.xlu0 %829
    %831 = vadd.xlane.f32.xlu0 %v806
    %v832 = vpop.xlane.xlu0 %831
    %833 = vadd.xlane.f32.xlu0 %v807
    %v834 = vpop.xlane.xlu0 %833
    %835 = vadd.xlane.f32.xlu0 %v808
    %v836 = vpop.xlane.xlu0 %835
    %837 = vadd.xlane.f32.xlu0 %v809
    %v838 = vpop.xlane.xlu0 %837
    %839 = vadd.xlane.f32.xlu0 %v810
    %v840 = vpop.xlane.xlu0 %839
    %841 = vadd.xlane.f32.xlu0 %v811
    %v842 = vpop.xlane.xlu0 %841
    %843 = vadd.xlane.f32.xlu0 %v812
    %v844 = vpop.xlane.xlu0 %843
    %v845 = vadd.f32 %v814, 1e-10
    %v846 = vadd.f32 %v816, 1e-10
    %v847 = vadd.f32 %v818, 1e-10
    %v848 = vadd.f32 %v820, 1e-10
    %v849 = vadd.f32 %v822, 1e-10
    %v850 = vadd.f32 %v824, 1e-10
    %v851 = vadd.f32 %v826, 1e-10
    %v852 = vadd.f32 %v828, 1e-10
    %v853 = vadd.f32 %v830, 1e-10
    %v854 = vadd.f32 %v832, 1e-10
    %v855 = vadd.f32 %v834, 1e-10
    %v856 = vadd.f32 %v836, 1e-10
    %v857 = vadd.f32 %v838, 1e-10
    %v858 = vadd.f32 %v840, 1e-10
    %v859 = vadd.f32 %v842, 1e-10
    %v860 = vadd.f32 %v844, 1e-10
    %v861 = vrsqrt.pop %v845
    %v862 = vrsqrt.pop %v846
    %v863 = vrsqrt.pop %v847
    %v864 = vrsqrt.pop %v848
    %v865 = vrsqrt.pop %v849
    %v866 = vrsqrt.pop %v850
    %v867 = vrsqrt.pop %v851
    %v868 = vrsqrt.pop %v852
    %v869 = vrsqrt.pop %v853
    %v870 = vrsqrt.pop %v854
    %v871 = vrsqrt.pop %v855
    %v872 = vrsqrt.pop %v856
    %v873 = vrsqrt.pop %v857
    %v874 = vrsqrt.pop %v858
    %v875 = vrsqrt.pop %v859
    %v876 = vrsqrt.pop %v860
    %v877 = vmul.f32 %v525, %v861
    %v878 = vmul.f32 %v526, %v862
    %v879 = vmul.f32 %v527, %v863
    %v880 = vmul.f32 %v528, %v864
    %v881 = vmul.f32 %v529, %v865
    %v882 = vmul.f32 %v530, %v866
    %v883 = vmul.f32 %v531, %v867
    %v884 = vmul.f32 %v532, %v868
    %v885 = vmul.f32 %v533, %v869
    %v886 = vmul.f32 %v534, %v870
    %v887 = vmul.f32 %v535, %v871
    %v888 = vmul.f32 %v536, %v872
    %v889 = vmul.f32 %v537, %v873
    %v890 = vmul.f32 %v538, %v874
    %v891 = vmul.f32 %v539, %v875
    %v892 = vmul.f32 %v540, %v876
    %v893 = vsub.f32 %v781, %v877
    %v894 = vsub.f32 %v782, %v878
    %v895 = vsub.f32 %v783, %v879
    %v896 = vsub.f32 %v784, %v880
    %v897 = vsub.f32 %v785, %v881
    %v898 = vsub.f32 %v786, %v882
    %v899 = vsub.f32 %v787, %v883
    %v900 = vsub.f32 %v788, %v884
    %v901 = vsub.f32 %v789, %v885
    %v902 = vsub.f32 %v790, %v886
    %v903 = vsub.f32 %v791, %v887
    %v904 = vsub.f32 %v792, %v888
    %v905 = vsub.f32 %v793, %v889
    %v906 = vsub.f32 %v794, %v890
    %v907 = vsub.f32 %v795, %v891
    %v908 = vsub.f32 %v796, %v892
    %v909 = vmul.f32 %v893, %v893
    %v910 = vmul.f32 %v894, %v894
    %v911 = vmul.f32 %v895, %v895
    %v912 = vmul.f32 %v896, %v896
    %v913 = vmul.f32 %v897, %v897
    %v914 = vmul.f32 %v898, %v898
    %v915 = vmul.f32 %v899, %v899
    %v916 = vmul.f32 %v900, %v900
    %v917 = vmul.f32 %v901, %v901
    %v918 = vmul.f32 %v902, %v902
    %v919 = vmul.f32 %v903, %v903
    %v920 = vmul.f32 %v904, %v904
    %v921 = vmul.f32 %v905, %v905
    %v922 = vmul.f32 %v906, %v906
    %v923 = vmul.f32 %v907, %v907
    %v924 = vmul.f32 %v908, %v908
    %v925 = vld [vmem:[%s3] sm:$0x1]
    %v927 = vlaneseq
    %v928 = vshrl.u32 %v927, 7
    %v929 = vsub.s32 0, %v928
    %v930 = vrot.slane %v925, %v929
    %v932 = vmul.f32 %v909, %v930
    %v933 = vmul.f32 %v910, %v930
    %v934 = vmul.f32 %v911, %v930
    %v935 = vmul.f32 %v912, %v930
    %v936 = vmul.f32 %v913, %v930
    %v937 = vmul.f32 %v914, %v930
    %v938 = vmul.f32 %v915, %v930
    %v939 = vmul.f32 %v916, %v930
    %v940 = vmul.f32 %v917, %v930
    %v941 = vmul.f32 %v918, %v930
    %v942 = vmul.f32 %v919, %v930
    %v943 = vmul.f32 %v920, %v930
    %v944 = vmul.f32 %v921, %v930
    %v945 = vmul.f32 %v922, %v930
    %v946 = vmul.f32 %v923, %v930
    %v947 = vmul.f32 %v924, %v930
    %948 = vadd.xlane.f32.xlu0 %v932
    %v949 = vpop.xlane.xlu0 %948
    %950 = vadd.xlane.f32.xlu0 %v933
    %v951 = vpop.xlane.xlu0 %950
    %952 = vadd.xlane.f32.xlu0 %v934
    %v953 = vpop.xlane.xlu0 %952
    %954 = vadd.xlane.f32.xlu0 %v935
    %v955 = vpop.xlane.xlu0 %954
    %956 = vadd.xlane.f32.xlu0 %v936
    %v957 = vpop.xlane.xlu0 %956
    %958 = vadd.xlane.f32.xlu0 %v937
    %v959 = vpop.xlane.xlu0 %958
    %960 = vadd.xlane.f32.xlu0 %v938
    %v961 = vpop.xlane.xlu0 %960
    %962 = vadd.xlane.f32.xlu0 %v939
    %v963 = vpop.xlane.xlu0 %962
    %964 = vadd.xlane.f32.xlu0 %v940
    %v965 = vpop.xlane.xlu0 %964
    %966 = vadd.xlane.f32.xlu0 %v941
    %v967 = vpop.xlane.xlu0 %966
    %968 = vadd.xlane.f32.xlu0 %v942
    %v969 = vpop.xlane.xlu0 %968
    %970 = vadd.xlane.f32.xlu0 %v943
    %v971 = vpop.xlane.xlu0 %970
    %972 = vadd.xlane.f32.xlu0 %v944
    %v973 = vpop.xlane.xlu0 %972
    %974 = vadd.xlane.f32.xlu0 %v945
    %v975 = vpop.xlane.xlu0 %974
    %976 = vadd.xlane.f32.xlu0 %v946
    %v977 = vpop.xlane.xlu0 %976
    %978 = vadd.xlane.f32.xlu0 %v947
    %v979 = vpop.xlane.xlu0 %978
    %v980 = vadd.f32 %v949, %v951
    %v981 = vadd.f32 %v980, %v953
    %v982 = vadd.f32 %v981, %v955
    %v983 = vadd.f32 %v982, %v957
    %v984 = vadd.f32 %v983, %v959
    %v985 = vadd.f32 %v984, %v961
    %v986 = vadd.f32 %v985, %v963
    %v987 = vadd.f32 %v986, %v965
    %v988 = vadd.f32 %v987, %v967
    %v989 = vadd.f32 %v988, %v969
    %v990 = vadd.f32 %v989, %v971
    %v991 = vadd.f32 %v990, %v973
    %v992 = vadd.f32 %v991, %v975
    %v993 = vadd.f32 %v992, %v977
    %v994 = vadd.f32 %v993, %v979
    %v995 = vrot.slane %v994, 4
    %v996 = vadd.f32 %v994, %v995
    %v997 = vrot.slane %v996, 2
    %v998 = vadd.f32 %v996, %v997
    %v999 = vrot.slane %v998, 1
    %v1000 = vadd.f32 %v998, %v999
    %v1001 = vmul.f32 %v1000, 0.015625
    %vm1002 = vcmask 0
    %1003 = vst.msk [vmem:[#allocation2] sm:$0x1] %vm1002, %v1001
    // Predicated region
    $region18: #{_forward.6} parent=1 // pred_check
      _
    $region19: #{_forward.6} parent=1 // pred_check_branch
      %1005 = sbr.rel (0) target = $region21
    $region20: #{_forward.6} parent=1 // pred_region
      _
    $region21: #{_forward.6} parent=1 // pred_fallthru
      _
    // Predicated region
    $region22: #{_forward.6} parent=1 // pred_check
      _
    $region23: #{_forward.6} parent=1 // pred_check_branch
      %1007 = sbr.rel (0) target = $region25
    $region24: #{_forward.6} parent=1 // pred_region
      %s1009 = ssub.s32 16, 16
      %1010 = vsyncadd [#allocation3], %s1009
      %s1012 = sshll.u32 [#allocation2], 4
      %s1013 = int_to_ptr.vmem [resolvable:$true] %s1012
      %1015 = dma.vmem_to_hbm [thread:$0]  %s1013, 16, %s5, [#allocation3]
    $region25: #{_forward.6} parent=1 // pred_fallthru
      _
    // Predicated region
    $region26: #{_forward.6} parent=1 // pred_check
      _
    $region27: #{_forward.6} parent=1 // pred_check_branch
      %1017 = sbr.rel (0) target = $region29
    $region28: #{_forward.6} parent=1 // pred_region
      _
    $region29: #{_forward.6} parent=1 // pred_fallthru
      _
    // Predicated region
    $region30: #{_forward.6} parent=1 // pred_check
      _
    $region31: #{_forward.6} parent=1 // pred_check_branch
      %1019 = sbr.rel (0) target = $region33
    $region32: #{_forward.6} parent=1 // pred_region
      %1020 = dma.done [#allocation3], 16
    $region33: #{_forward.6} parent=1 // pred_fallthru
      _
    %1021 = vsyncpa [#allocation3], 1

// kernel: _forward.4
$region0: #{_forward.4}
  #allocation0 [shape = 'u32[]', space=smem, size = 0x4, offset = 0x4, fixed_abs, tag = 'smem constant byte address 0x4 - core index']
  #allocation1 [shape = 'u32[144,128]{1,0:T(1,128)}', space=vmem, size = 0x12000, scoped, tag = 'internal scratch']
  %s0 = inlined_call_operand.vmem [shape: f32[48,128], index: 0, kind: input, shape index: {}]
  %s1 = inlined_call_operand.vmem [shape: f32[48,128], index: 1, kind: input, shape index: {}]
  %s2 = inlined_call_operand.hbm [shape: f32[1,1], index: 2, kind: output, shape index: {}]
  %s3 = sld [smem:[#allocation0]]
  $region18: #{_forward.4} parent=0
    _
  %s5 = ssub.s32 1, %s3
  %s6 = scalar_select 0, %s5, %s3
  $region1: #{_forward.4} parent=0
    #allocation2 [shape = 'u8[512]{0}', space=vmem, size = 0x400, scoped, tag = 'output window, operand 0, single buffered']
    #allocation3 [shape = 's32[1]{0}', space=sflag, size = 0x4, scoped, tag = 'scoped memory for _forward.4']
    %7 = vsyncpa [#allocation3], 0
    // Predicated region
    $region2: #{_forward.4} parent=1 // pred_check
      _
    $region3: #{_forward.4} parent=1 // pred_check_branch
      %9 = sbr.rel (0) target = $region5
    $region4: #{_forward.4} parent=1 // pred_region
      _
    $region5: #{_forward.4} parent=1 // pred_fallthru
      _
    // Predicated region
    $region6: #{_forward.4} parent=1 // pred_check
      _
    $region7: #{_forward.4} parent=1 // pred_check_branch
      %11 = sbr.rel (0) target = $region9
    $region8: #{_forward.4} parent=1 // pred_region
      _
    $region9: #{_forward.4} parent=1 // pred_fallthru
      _
    %v12 = vld [vmem:[%s0] sm:$0xff]
    %v13 = vld [vmem:[%s0 + $0x8] sm:$0xff]
    %v14 = vld [vmem:[%s0 + $0x10] sm:$0xff]
    %v15 = vld [vmem:[%s0 + $0x18] sm:$0xff]
    %v16 = vld [vmem:[%s0 + $0x20] sm:$0xff]
    %v17 = vld [vmem:[%s0 + $0x28] sm:$0xff]
    %v18 = vld [vmem:[%s1] sm:$0xff]
    %v19 = vld [vmem:[%s1 + $0x8] sm:$0xff]
    %v20 = vld [vmem:[%s1 + $0x10] sm:$0xff]
    %v21 = vld [vmem:[%s1 + $0x18] sm:$0xff]
    %v22 = vld [vmem:[%s1 + $0x20] sm:$0xff]
    %v23 = vld [vmem:[%s1 + $0x28] sm:$0xff]
    %v24 = vsub.f32 %v12, %v18
    %v25 = vsub.f32 %v13, %v19
    %v26 = vsub.f32 %v14, %v20
    %v27 = vsub.f32 %v15, %v21
    %v28 = vsub.f32 %v16, %v22
    %v29 = vsub.f32 %v17, %v23
    %v30 = vmul.f32 %v24, %v24
    %v31 = vmul.f32 %v25, %v25
    %v32 = vmul.f32 %v26, %v26
    %v33 = vmul.f32 %v27, %v27
    %v34 = vmul.f32 %v28, %v28
    %v35 = vmul.f32 %v29, %v29
    %36 = vadd.xlane.f32.xlu0 %v30
    %v37 = vpop.xlane.xlu0 %36
    %38 = vadd.xlane.f32.xlu0 %v31
    %v39 = vpop.xlane.xlu0 %38
    %40 = vadd.xlane.f32.xlu0 %v32
    %v41 = vpop.xlane.xlu0 %40
    %42 = vadd.xlane.f32.xlu0 %v33
    %v43 = vpop.xlane.xlu0 %42
    %44 = vadd.xlane.f32.xlu0 %v34
    %v45 = vpop.xlane.xlu0 %44
    %46 = vadd.xlane.f32.xlu0 %v35
    %v47 = vpop.xlane.xlu0 %46
    %v48 = vadd.f32 %v37, %v39
    %v49 = vadd.f32 %v48, %v41
    %v50 = vadd.f32 %v49, %v43
    %v51 = vadd.f32 %v50, %v45
    %v52 = vadd.f32 %v51, %v47
    %v53 = vrot.slane %v52, 4
    %v54 = vadd.f32 %v52, %v53
    %v55 = vrot.slane %v54, 2
    %v56 = vadd.f32 %v54, %v55
    %v57 = vrot.slane %v56, 1
    %v58 = vadd.f32 %v56, %v57
    %v59 = vmul.f32 %v58, 0.00016276042
    %vm60 = vcmask 0
    %61 = vst.msk [vmem:[#allocation2] sm:$0x1] %vm60, %v59
    // Predicated region
    $region10: #{_forward.4} parent=1 // pred_check
      _
    $region11: #{_forward.4} parent=1 // pred_check_branch
      %63 = sbr.rel (0) target = $region13
    $region12: #{_forward.4} parent=1 // pred_region
      %s65 = ssub.s32 16, 16
      %66 = vsyncadd [#allocation3], %s65
      %s68 = sshll.u32 [#allocation2], 4
      %s69 = int_to_ptr.vmem [resolvable:$true] %s68
      %71 = dma.vmem_to_hbm [thread:$0]  %s69, 16, %s2, [#allocation3]
    $region13: #{_forward.4} parent=1 // pred_fallthru
      _
    // Predicated region
    $region14: #{_forward.4} parent=1 // pred_check
      _
    $region15: #{_forward.4} parent=1 // pred_check_branch
      %73 = sbr.rel (0) target = $region17
    $region16: #{_forward.4} parent=1 // pred_region
      %74 = dma.done [#allocation3], 16
    $region17: #{_forward.4} parent=1 // pred_fallthru
      _
    %75 = vsyncpa [#allocation3], 1

// kernel: _forward.7
$region0: #{_forward.7}
  #allocation0 [shape = 'u32[]', space=smem, size = 0x4, offset = 0x4, fixed_abs, tag = 'smem constant byte address 0x4 - core index']
  #allocation1 [shape = 'u32[144,128]{1,0:T(1,128)}', space=vmem, size = 0x12000, scoped, tag = 'internal scratch']
  %s0 = inlined_call_operand.vmem [shape: bf16[64,384], index: 0, kind: input, shape index: {}]
  %s1 = inlined_call_operand.vmem [shape: bf16[384,128], index: 1, kind: input, shape index: {}]
  %s2 = inlined_call_operand.vmem [shape: f32[1,128], index: 2, kind: input, shape index: {}]
  %s3 = inlined_call_operand.vmem [shape: f32[1,128], index: 3, kind: input, shape index: {}]
  %s4 = inlined_call_operand.hbm [shape: bf16[64,128], index: 4, kind: output, shape index: {0}]
  %s5 = inlined_call_operand.hbm [shape: f32[1,1], index: 5, kind: output, shape index: {1}]
  %6 = xla_tuple %s4, %s5
  %s7 = sld [smem:[#allocation0]]
  $region34: #{_forward.7} parent=0
    _
  %s9 = ssub.s32 1, %s7
  %s10 = scalar_select 0, %s9, %s7
  $region1: #{_forward.7} parent=0
    #allocation2 [shape = 'u8[16384]{0}', space=vmem, size = 0x4000, scoped, tag = 'output window, operand 0, single buffered']
    #allocation3 [shape = 's32[1]{0}', space=sflag, size = 0x4, scoped, tag = 'scoped memory for _forward.7']
    #allocation4 [shape = 'u8[512]{0}', space=vmem, size = 0x400, scoped, tag = 'output window, operand 1, single buffered']
    #allocation5 [shape = 's32[1]{0}', space=sflag, size = 0x4, scoped, tag = 'scoped memory for _forward.7']
    %11 = vsyncpa [#allocation3], 0
    %12 = vsyncpa [#allocation5], 0
    // Predicated region
    $region2: #{_forward.7} parent=1 // pred_check
      _
    $region3: #{_forward.7} parent=1 // pred_check_branch
      %14 = sbr.rel (0) target = $region5
    $region4: #{_forward.7} parent=1 // pred_region
      _
    $region5: #{_forward.7} parent=1 // pred_fallthru
      _
    // Predicated region
    $region6: #{_forward.7} parent=1 // pred_check
      _
    $region7: #{_forward.7} parent=1 // pred_check_branch
      %16 = sbr.rel (0) target = $region9
    $region8: #{_forward.7} parent=1 // pred_region
      _
    $region9: #{_forward.7} parent=1 // pred_fallthru
      _
    // Predicated region
    $region10: #{_forward.7} parent=1 // pred_check
      _
    $region11: #{_forward.7} parent=1 // pred_check_branch
      %18 = sbr.rel (0) target = $region13
    $region12: #{_forward.7} parent=1 // pred_region
      _
    $region13: #{_forward.7} parent=1 // pred_fallthru
      _
    // Predicated region
    $region14: #{_forward.7} parent=1 // pred_check
      _
    $region15: #{_forward.7} parent=1 // pred_check_branch
      %20 = sbr.rel (0) target = $region17
    $region16: #{_forward.7} parent=1 // pred_region
      _
    $region17: #{_forward.7} parent=1 // pred_fallthru
      _
    %v22 = vld [vmem:[%s0] sm:$0xff]
    %v23 = vld [vmem:[%s0 + $0x8] sm:$0xf]
    %v24 = vld [vmem:[%s0 + $0xc] sm:$0xff]
    %v25 = vld [vmem:[%s0 + $0x14] sm:$0xf]
    %v26 = vld [vmem:[%s0 + $0x18] sm:$0xff]
    %v27 = vld [vmem:[%s0 + $0x20] sm:$0xf]
    %v28 = vld [vmem:[%s0 + $0x24] sm:$0xff]
    %v29 = vld [vmem:[%s0 + $0x2c] sm:$0xf]
    %v30 = vld [vmem:[%s0 + $0x30] sm:$0xff]
    %v31 = vld [vmem:[%s0 + $0x38] sm:$0xf]
    %v32 = vld [vmem:[%s0 + $0x3c] sm:$0xff]
    %v33 = vld [vmem:[%s0 + $0x44] sm:$0xf]
    %v34 = vld [vmem:[%s0 + $0x48] sm:$0xff]
    %v35 = vld [vmem:[%s0 + $0x50] sm:$0xf]
    %v36 = vld [vmem:[%s0 + $0x54] sm:$0xff]
    %v37 = vld [vmem:[%s0 + $0x5c] sm:$0xf]
    %v38 = vld [vmem:[%s1] sm:$0xf]
    %v39 = vld [vmem:[%s1 + $0x4] sm:$0xf]
    %v40 = vld [vmem:[%s1 + $0x8] sm:$0xf]
    %v41 = vld [vmem:[%s1 + $0xc] sm:$0xf]
    %v42 = vld [vmem:[%s1 + $0x10] sm:$0xf]
    %v43 = vld [vmem:[%s1 + $0x14] sm:$0xf]
    %v44 = vld [vmem:[%s1 + $0x18] sm:$0xf]
    %v45 = vld [vmem:[%s1 + $0x1c] sm:$0xf]
    %v46 = vld [vmem:[%s1 + $0x20] sm:$0xf]
    %v47 = vld [vmem:[%s1 + $0x24] sm:$0xf]
    %v48 = vld [vmem:[%s1 + $0x28] sm:$0xf]
    %v49 = vld [vmem:[%s1 + $0x2c] sm:$0xf]
    %v50 = vld [vmem:[%s1 + $0x30] sm:$0xf]
    %v51 = vld [vmem:[%s1 + $0x34] sm:$0xf]
    %v52 = vld [vmem:[%s1 + $0x38] sm:$0xf]
    %v53 = vld [vmem:[%s1 + $0x3c] sm:$0xf]
    %v54 = vld [vmem:[%s1 + $0x40] sm:$0xf]
    %v55 = vld [vmem:[%s1 + $0x44] sm:$0xf]
    %v56 = vld [vmem:[%s1 + $0x48] sm:$0xf]
    %v57 = vld [vmem:[%s1 + $0x4c] sm:$0xf]
    %v58 = vld [vmem:[%s1 + $0x50] sm:$0xf]
    %v59 = vld [vmem:[%s1 + $0x54] sm:$0xf]
    %v60 = vld [vmem:[%s1 + $0x58] sm:$0xf]
    %v61 = vld [vmem:[%s1 + $0x5c] sm:$0xf]
    %v62 = vld [vmem:[%s1 + $0x60] sm:$0xf]
    %v63 = vld [vmem:[%s1 + $0x64] sm:$0xf]
    %v64 = vld [vmem:[%s1 + $0x68] sm:$0xf]
    %v65 = vld [vmem:[%s1 + $0x6c] sm:$0xf]
    %v66 = vld [vmem:[%s1 + $0x70] sm:$0xf]
    %v67 = vld [vmem:[%s1 + $0x74] sm:$0xf]
    %v68 = vld [vmem:[%s1 + $0x78] sm:$0xf]
    %v69 = vld [vmem:[%s1 + $0x7c] sm:$0xf]
    %v70 = vld [vmem:[%s1 + $0x80] sm:$0xf]
    %v71 = vld [vmem:[%s1 + $0x84] sm:$0xf]
    %v72 = vld [vmem:[%s1 + $0x88] sm:$0xf]
    %v73 = vld [vmem:[%s1 + $0x8c] sm:$0xf]
    %v74 = vld [vmem:[%s1 + $0x90] sm:$0xf]
    %v75 = vld [vmem:[%s1 + $0x94] sm:$0xf]
    %v76 = vld [vmem:[%s1 + $0x98] sm:$0xf]
    %v77 = vld [vmem:[%s1 + $0x9c] sm:$0xf]
    %v78 = vld [vmem:[%s1 + $0xa0] sm:$0xf]
    %v79 = vld [vmem:[%s1 + $0xa4] sm:$0xf]
    %v80 = vld [vmem:[%s1 + $0xa8] sm:$0xf]
    %v81 = vld [vmem:[%s1 + $0xac] sm:$0xf]
    %v82 = vld [vmem:[%s1 + $0xb0] sm:$0xf]
    %v83 = vld [vmem:[%s1 + $0xb4] sm:$0xf]
    %v84 = vld [vmem:[%s1 + $0xb8] sm:$0xf]
    %v85 = vld [vmem:[%s1 + $0xbc] sm:$0xf]
    %v86 = vld [vmem:[%s2] sm:$0x1]
    %v88 = vlaneseq
    %v89 = vshrl.u32 %v88, 7
    %v90 = vsub.s32 0, %v89
    %v91 = vrot.slane %v86, %v90
    %v109 = vunpack.c.l.b16 %v22
    %v110 = vunpack.c.h.b16 %v22
    %v111 = vunpack.c.l.b16 %v23
    %v112 = vunpack.c.l.b16 %v24
    %v113 = vunpack.c.h.b16 %v24
    %v114 = vunpack.c.l.b16 %v25
    %v115 = vunpack.c.l.b16 %v26
    %v116 = vunpack.c.h.b16 %v26
    %v117 = vunpack.c.l.b16 %v27
    %v118 = vunpack.c.l.b16 %v28
    %v119 = vunpack.c.h.b16 %v28
    %v120 = vunpack.c.l.b16 %v29
    %v121 = vunpack.c.l.b16 %v30
    %v122 = vunpack.c.h.b16 %v30
    %v123 = vunpack.c.l.b16 %v31
    %v124 = vunpack.c.l.b16 %v32
    %v125 = vunpack.c.h.b16 %v32
    %v126 = vunpack.c.l.b16 %v33
    %v127 = vunpack.c.l.b16 %v34
    %v128 = vunpack.c.h.b16 %v34
    %v129 = vunpack.c.l.b16 %v35
    %v130 = vunpack.c.l.b16 %v36
    %v131 = vunpack.c.h.b16 %v36
    %v132 = vunpack.c.l.b16 %v37
    %v133 = vpack.c.b16 %v112, %v109
    %v134 = vpack.c.b16 %v113, %v110
    %v135 = vpack.c.b16 %v114, %v111
    %v136 = vpack.c.b16 %v118, %v115
    %v137 = vpack.c.b16 %v119, %v116
    %v138 = vpack.c.b16 %v120, %v117
    %v139 = vpack.c.b16 %v124, %v121
    %v140 = vpack.c.b16 %v125, %v122
    %v141 = vpack.c.b16 %v126, %v123
    %v142 = vpack.c.b16 %v130, %v127
    %v143 = vpack.c.b16 %v131, %v128
    %v144 = vpack.c.b16 %v132, %v129
    %v205 = vunpack.c.l.b16 %v38
    %v206 = vunpack.c.l.b16 %v39
    %v207 = vunpack.c.l.b16 %v40
    %v208 = vunpack.c.l.b16 %v41
    %v209 = vunpack.c.l.b16 %v42
    %v210 = vunpack.c.l.b16 %v43
    %v211 = vunpack.c.l.b16 %v44
    %v212 = vunpack.c.l.b16 %v45
    %v213 = vunpack.c.l.b16 %v46
    %v214 = vunpack.c.l.b16 %v47
    %v215 = vunpack.c.l.b16 %v48
    %v216 = vunpack.c.l.b16 %v49
    %v217 = vunpack.c.l.b16 %v50
    %v218 = vunpack.c.l.b16 %v51
    %v219 = vunpack.c.l.b16 %v52
    %v220 = vunpack.c.l.b16 %v53
    %v221 = vunpack.c.l.b16 %v54
    %v222 = vunpack.c.l.b16 %v55
    %v223 = vunpack.c.l.b16 %v56
    %v224 = vunpack.c.l.b16 %v57
    %v225 = vunpack.c.l.b16 %v58
    %v226 = vunpack.c.l.b16 %v59
    %v227 = vunpack.c.l.b16 %v60
    %v228 = vunpack.c.l.b16 %v61
    %v229 = vunpack.c.l.b16 %v62
    %v230 = vunpack.c.l.b16 %v63
    %v231 = vunpack.c.l.b16 %v64
    %v232 = vunpack.c.l.b16 %v65
    %v233 = vunpack.c.l.b16 %v66
    %v234 = vunpack.c.l.b16 %v67
    %v235 = vunpack.c.l.b16 %v68
    %v236 = vunpack.c.l.b16 %v69
    %v237 = vunpack.c.l.b16 %v70
    %v238 = vunpack.c.l.b16 %v71
    %v239 = vunpack.c.l.b16 %v72
    %v240 = vunpack.c.l.b16 %v73
    %v241 = vunpack.c.l.b16 %v74
    %v242 = vunpack.c.l.b16 %v75
    %v243 = vunpack.c.l.b16 %v76
    %v244 = vunpack.c.l.b16 %v77
    %v245 = vunpack.c.l.b16 %v78
    %v246 = vunpack.c.l.b16 %v79
    %v247 = vunpack.c.l.b16 %v80
    %v248 = vunpack.c.l.b16 %v81
    %v249 = vunpack.c.l.b16 %v82
    %v250 = vunpack.c.l.b16 %v83
    %v251 = vunpack.c.l.b16 %v84
    %v252 = vunpack.c.l.b16 %v85
    %v253 = vpack.c.b16 %v206, %v205
    %v254 = vpack.c.b16 %v208, %v207
    %v255 = vpack.c.b16 %v210, %v209
    %v256 = vpack.c.b16 %v212, %v211
    %v257 = vpack.c.b16 %v214, %v213
    %v258 = vpack.c.b16 %v216, %v215
    %v259 = vpack.c.b16 %v218, %v217
    %v260 = vpack.c.b16 %v220, %v219
    %v261 = vpack.c.b16 %v222, %v221
    %v262 = vpack.c.b16 %v224, %v223
    %v263 = vpack.c.b16 %v226, %v225
    %v264 = vpack.c.b16 %v228, %v227
    %v265 = vpack.c.b16 %v230, %v229
    %v266 = vpack.c.b16 %v232, %v231
    %v267 = vpack.c.b16 %v234, %v233
    %v268 = vpack.c.b16 %v236, %v235
    %v269 = vpack.c.b16 %v238, %v237
    %v270 = vpack.c.b16 %v240, %v239
    %v271 = vpack.c.b16 %v242, %v241
    %v272 = vpack.c.b16 %v244, %v243
    %v273 = vpack.c.b16 %v246, %v245
    %v274 = vpack.c.b16 %v248, %v247
    %v275 = vpack.c.b16 %v250, %v249
    %v276 = vpack.c.b16 %v252, %v251
    %301 = vmatprep.subr.bf16.mxu0 0
    %302 = vmatpush1.bf16.msra.mxu0 %v253
    %303 = vmatprep.subr.bf16.mxu0 0
    %304 = vmatpush1.bf16.msra.mxu0 %v254
    %305 = vmatprep.subr.bf16.mxu0 0
    %306 = vmatpush1.bf16.msra.mxu0 %v255
    %307 = vmatprep.subr.bf16.mxu0 0
    %308 = vmatpush1.bf16.msra.mxu0 %v256
    %309 = vmatprep.subr.bf16.mxu0 0
    %310 = vmatpush1.bf16.msra.mxu0 %v257
    %311 = vmatprep.subr.bf16.mxu0 0
    %312 = vmatpush1.bf16.msra.mxu0 %v258
    %313 = vmatprep.subr.bf16.mxu0 0
    %314 = vmatpush1.bf16.msra.mxu0 %v259
    %315 = vmatprep.subr.bf16.mxu0 0
    %316 = vmatpush1.bf16.msra.mxu0 %v260
    %317 = vmatprep.subr.bf16.mxu0 0
    %318 = vmatpush1.bf16.msra.mxu0 %v261
    %319 = vmatprep.subr.bf16.mxu0 0
    %320 = vmatpush1.bf16.msra.mxu0 %v262
    %321 = vmatprep.subr.bf16.mxu0 0
    %322 = vmatpush1.bf16.msra.mxu0 %v263
    %323 = vmatprep.subr.bf16.mxu0 0
    %324 = vmatpush1.bf16.msra.mxu0 %v264
    %325 = vmatprep.subr.bf16.mxu0 0
    %326 = vmatpush1.bf16.msra.mxu0 %v265
    %327 = vmatprep.subr.bf16.mxu0 0
    %328 = vmatpush1.bf16.msra.mxu0 %v266
    %329 = vmatprep.subr.bf16.mxu0 0
    %330 = vmatpush1.bf16.msra.mxu0 %v267
    %331 = vmatprep.subr.bf16.mxu0 0
    %332 = vmatpush1.bf16.msra.mxu0 %v268
    %333 = vmatprep.mubr.bf16.mxu0 %v134
    %334 = vmatmul.mubr.bf16.gmra.mrb[0].mxu0 %v133
    %v335 = vpop.f32.mrb[0].mxu0
    %v336 = vadd.f32 %v91, %v335
    %v337 = vpop.f32.mrb[0].mxu0
    %v338 = vpop.f32.mrb[0].mxu0
    %v339 = vadd.f32 %v91, %v338
    %v340 = vpop.f32.mrb[0].mxu0
    %341 = vmatprep.mubr.bf16.mxu0 %v137
    %342 = vmatmul.mubr.bf16.gmra.mrb[0].mxu0 %v136
    %v343 = vpop.f32.mrb[0].mxu0
    %v344 = vadd.f32 %v91, %v343
    %v345 = vpop.f32.mrb[0].mxu0
    %v346 = vpop.f32.mrb[0].mxu0
    %v347 = vadd.f32 %v91, %v346
    %v348 = vpop.f32.mrb[0].mxu0
    %349 = vmatprep.mubr.bf16.mxu0 %v140
    %350 = vmatmul.mubr.bf16.gmra.mrb[0].mxu0 %v139
    %v351 = vpop.f32.mrb[0].mxu0
    %v352 = vadd.f32 %v91, %v351
    %v353 = vpop.f32.mrb[0].mxu0
    %v354 = vpop.f32.mrb[0].mxu0
    %v355 = vadd.f32 %v91, %v354
    %v356 = vpop.f32.mrb[0].mxu0
    %357 = vmatprep.mubr.bf16.mxu0 %v143
    %358 = vmatmul.mubr.bf16.gmra.mrb[0].mxu0 %v142
    %v359 = vpop.f32.mrb[0].mxu0
    %v360 = vadd.f32 %v91, %v359
    %v361 = vpop.f32.mrb[0].mxu0
    %v362 = vpop.f32.mrb[0].mxu0
    %v363 = vadd.f32 %v91, %v362
    %v364 = vpop.f32.mrb[0].mxu0
    %365 = vdwg.mxu0
    %366 = vmatprep.subr.bf16.mxu0 0
    %367 = vmatpush1.bf16.msra.mxu0 %v269
    %368 = vmatprep.subr.bf16.mxu0 0
    %369 = vmatpush1.bf16.msra.mxu0 %v270
    %370 = vmatprep.subr.bf16.mxu0 0
    %371 = vmatpush1.bf16.msra.mxu0 %v271
    %372 = vmatprep.subr.bf16.mxu0 0
    %373 = vmatpush1.bf16.msra.mxu0 %v272
    %374 = vmatprep.subr.bf16.mxu0 0
    %375 = vmatpush1.bf16.msra.mxu0 %v273
    %376 = vmatprep.subr.bf16.mxu0 0
    %377 = vmatpush1.bf16.msra.mxu0 %v274
    %378 = vmatprep.subr.bf16.mxu0 0
    %379 = vmatpush1.bf16.msra.mxu0 %v275
    %380 = vmatprep.subr.bf16.mxu0 0
    %381 = vmatpush1.bf16.msra.mxu0 %v276
    %382 = vmatprep.subr.bf16.mxu0 0
    %383 = vmatpush1.bf16.msra.mxu0 0
    %384 = vmatprep.subr.bf16.mxu0 0
    %385 = vmatpush1.bf16.msra.mxu0 0
    %386 = vmatprep.subr.bf16.mxu0 0
    %387 = vmatpush1.bf16.msra.mxu0 0
    %388 = vmatprep.subr.bf16.mxu0 0
    %389 = vmatpush1.bf16.msra.mxu0 0
    %390 = vmatprep.subr.bf16.mxu0 0
    %391 = vmatpush1.bf16.msra.mxu0 0
    %392 = vmatprep.subr.bf16.mxu0 0
    %393 = vmatpush1.bf16.msra.mxu0 0
    %394 = vmatprep.subr.bf16.mxu0 0
    %395 = vmatpush1.bf16.msra.mxu0 0
    %396 = vmatprep.subr.bf16.mxu0 0
    %397 = vmatpush1.bf16.msra.mxu0 0
    %398 = vmatprep.mubr.bf16.mxu0 0
    %399 = vmatmul.mubr.bf16.gmra.mrb[0].mxu0 %v135
    %v400 = vpop.f32.mrb[0].mxu0
    %v401 = vadd.f32 %v336, %v400
    %v402 = vpop.f32.mrb[0].mxu0
    %v403 = vpop.f32.mrb[0].mxu0
    %v404 = vadd.f32 %v339, %v403
    %v405 = vpop.f32.mrb[0].mxu0
    %406 = vmatprep.mubr.bf16.mxu0 0
    %407 = vmatmul.mubr.bf16.gmra.mrb[0].mxu0 %v138
    %v408 = vpop.f32.mrb[0].mxu0
    %v409 = vadd.f32 %v344, %v408
    %v410 = vpop.f32.mrb[0].mxu0
    %v411 = vpop.f32.mrb[0].mxu0
    %v412 = vadd.f32 %v347, %v411
    %v413 = vpop.f32.mrb[0].mxu0
    %414 = vmatprep.mubr.bf16.mxu0 0
    %415 = vmatmul.mubr.bf16.gmra.mrb[0].mxu0 %v141
    %v416 = vpop.f32.mrb[0].mxu0
    %v417 = vadd.f32 %v352, %v416
    %v418 = vpop.f32.mrb[0].mxu0
    %v419 = vpop.f32.mrb[0].mxu0
    %v420 = vadd.f32 %v355, %v419
    %v421 = vpop.f32.mrb[0].mxu0
    %422 = vmatprep.mubr.bf16.mxu0 0
    %423 = vmatmul.mubr.bf16.gmra.mrb[0].mxu0 %v144
    %v424 = vpop.f32.mrb[0].mxu0
    %v425 = vadd.f32 %v360, %v424
    %v426 = vpop.f32.mrb[0].mxu0
    %v427 = vpop.f32.mrb[0].mxu0
    %v428 = vadd.f32 %v363, %v427
    %v429 = vpop.f32.mrb[0].mxu0
    %430 = vdwg.mxu0
    %v431 = vmax.f32 %v401, 0.0
    %v432 = vmax.f32 %v404, 0.0
    %v433 = vmax.f32 %v409, 0.0
    %v434 = vmax.f32 %v412, 0.0
    %v435 = vmax.f32 %v417, 0.0
    %v436 = vmax.f32 %v420, 0.0
    %v437 = vmax.f32 %v425, 0.0
    %v438 = vmax.f32 %v428, 0.0
    %v439 = vpack.c.bf16 %v432, %v431
    %v440 = vpack.c.bf16 %v434, %v433
    %v441 = vpack.c.bf16 %v436, %v435
    %v442 = vpack.c.bf16 %v438, %v437
    %v447 = vunpack.c.l.b16 %v439
    %v448 = vunpack.c.h.b16 %v439
    %v449 = vunpack.c.l.b16 %v440
    %v450 = vunpack.c.h.b16 %v440
    %v451 = vunpack.c.l.b16 %v441
    %v452 = vunpack.c.h.b16 %v441
    %v453 = vunpack.c.l.b16 %v442
    %v454 = vunpack.c.h.b16 %v442
    %v455 = vpack.c.b16 %v447, %v447
    %v456 = vpack.c.b16 %v448, %v448
    %v457 = vpack.c.b16 %v449, %v449
    %v458 = vpack.c.b16 %v450, %v450
    %v459 = vpack.c.b16 %v451, %v451
    %v460 = vpack.c.b16 %v452, %v452
    %v461 = vpack.c.b16 %v453, %v453
    %v462 = vpack.c.b16 %v454, %v454
    %471 = vst [vmem:[#allocation2] sm:$0xf] %v455
    %472 = vst [vmem:[#allocation2 + $0x4] sm:$0xf] %v456
    %473 = vst [vmem:[#allocation2 + $0x8] sm:$0xf] %v457
    %474 = vst [vmem:[#allocation2 + $0xc] sm:$0xf] %v458
    %475 = vst [vmem:[#allocation2 + $0x10] sm:$0xf] %v459
    %476 = vst [vmem:[#allocation2 + $0x14] sm:$0xf] %v460
    %477 = vst [vmem:[#allocation2 + $0x18] sm:$0xf] %v461
    %478 = vst [vmem:[#allocation2 + $0x1c] sm:$0xf] %v462
    %v479 = vmul.f32 %v431, %v431
    %v480 = vmul.f32 %v432, %v432
    %v481 = vmul.f32 %v433, %v433
    %v482 = vmul.f32 %v434, %v434
    %483 = vadd.xlane.f32.xlu0 %v479
    %v484 = vpop.xlane.xlu0 %483
    %485 = vadd.xlane.f32.xlu0 %v480
    %v486 = vpop.xlane.xlu0 %485
    %487 = vadd.xlane.f32.xlu0 %v481
    %v488 = vpop.xlane.xlu0 %487
    %489 = vadd.xlane.f32.xlu0 %v482
    %v490 = vpop.xlane.xlu0 %489
    %v491 = vadd.f32 %v484, 1e-10
    %v492 = vadd.f32 %v486, 1e-10
    %v493 = vadd.f32 %v488, 1e-10
    %v494 = vadd.f32 %v490, 1e-10
    %v495 = vrsqrt.pop %v491
    %v496 = vrsqrt.pop %v492
    %v497 = vrsqrt.pop %v493
    %v498 = vrsqrt.pop %v494
    %v499 = vmul.f32 %v431, %v495
    %v500 = vmul.f32 %v432, %v496
    %v501 = vmul.f32 %v433, %v497
    %v502 = vmul.f32 %v434, %v498
    %v503 = vmul.f32 %v435, %v435
    %v504 = vmul.f32 %v436, %v436
    %v505 = vmul.f32 %v437, %v437
    %v506 = vmul.f32 %v438, %v438
    %507 = vadd.xlane.f32.xlu0 %v503
    %v508 = vpop.xlane.xlu0 %507
    %509 = vadd.xlane.f32.xlu0 %v504
    %v510 = vpop.xlane.xlu0 %509
    %511 = vadd.xlane.f32.xlu0 %v505
    %v512 = vpop.xlane.xlu0 %511
    %513 = vadd.xlane.f32.xlu0 %v506
    %v514 = vpop.xlane.xlu0 %513
    %v515 = vadd.f32 %v508, 1e-10
    %v516 = vadd.f32 %v510, 1e-10
    %v517 = vadd.f32 %v512, 1e-10
    %v518 = vadd.f32 %v514, 1e-10
    %v519 = vrsqrt.pop %v515
    %v520 = vrsqrt.pop %v516
    %v521 = vrsqrt.pop %v517
    %v522 = vrsqrt.pop %v518
    %v523 = vmul.f32 %v435, %v519
    %v524 = vmul.f32 %v436, %v520
    %v525 = vmul.f32 %v437, %v521
    %v526 = vmul.f32 %v438, %v522
    %v527 = vsub.f32 %v499, %v523
    %v528 = vsub.f32 %v500, %v524
    %v529 = vsub.f32 %v501, %v525
    %v530 = vsub.f32 %v502, %v526
    %v531 = vmul.f32 %v527, %v527
    %v532 = vmul.f32 %v528, %v528
    %v533 = vmul.f32 %v529, %v529
    %v534 = vmul.f32 %v530, %v530
    %v535 = vld [vmem:[%s3] sm:$0x1]
    %v537 = vlaneseq
    %v538 = vshrl.u32 %v537, 7
    %v539 = vsub.s32 0, %v538
    %v540 = vrot.slane %v535, %v539
    %v542 = vmul.f32 %v531, %v540
    %v543 = vmul.f32 %v532, %v540
    %v544 = vmul.f32 %v533, %v540
    %v545 = vmul.f32 %v534, %v540
    %546 = vadd.xlane.f32.xlu0 %v542
    %v547 = vpop.xlane.xlu0 %546
    %548 = vadd.xlane.f32.xlu0 %v543
    %v549 = vpop.xlane.xlu0 %548
    %550 = vadd.xlane.f32.xlu0 %v544
    %v551 = vpop.xlane.xlu0 %550
    %552 = vadd.xlane.f32.xlu0 %v545
    %v553 = vpop.xlane.xlu0 %552
    %v554 = vadd.f32 %v547, %v549
    %v555 = vadd.f32 %v554, %v551
    %v556 = vadd.f32 %v555, %v553
    %v557 = vrot.slane %v556, 4
    %v558 = vadd.f32 %v556, %v557
    %v559 = vrot.slane %v558, 2
    %v560 = vadd.f32 %v558, %v559
    %v561 = vrot.slane %v560, 1
    %v562 = vadd.f32 %v560, %v561
    %v563 = vmul.f32 %v562, 0.0625
    %vm564 = vcmask 0
    %565 = vst.msk [vmem:[#allocation4] sm:$0x1] %vm564, %v563
    // Predicated region
    $region18: #{_forward.7} parent=1 // pred_check
      _
    $region19: #{_forward.7} parent=1 // pred_check_branch
      %567 = sbr.rel (0) target = $region21
    $region20: #{_forward.7} parent=1 // pred_region
      %s569 = ssub.s32 512, 512
      %570 = vsyncadd [#allocation3], %s569
      %s571 = sshll.u32 [#allocation2], 4
      %s572 = int_to_ptr.vmem [resolvable:$true] %s571
      %577 = dma.vmem_to_hbm [thread:$0]  %s572, 512, %s4, [#allocation3], 64, 64, 4
    $region21: #{_forward.7} parent=1 // pred_fallthru
      _
    // Predicated region
    $region22: #{_forward.7} parent=1 // pred_check
      _
    $region23: #{_forward.7} parent=1 // pred_check_branch
      %579 = sbr.rel (0) target = $region25
    $region24: #{_forward.7} parent=1 // pred_region
      %s581 = ssub.s32 16, 16
      %582 = vsyncadd [#allocation5], %s581
      %s584 = sshll.u32 [#allocation4], 4
      %s585 = int_to_ptr.vmem [resolvable:$true] %s584
      %587 = dma.vmem_to_hbm [thread:$0]  %s585, 16, %s5, [#allocation5]
    $region25: #{_forward.7} parent=1 // pred_fallthru
      _
    // Predicated region
    $region26: #{_forward.7} parent=1 // pred_check
      _
    $region27: #{_forward.7} parent=1 // pred_check_branch
      %589 = sbr.rel (0) target = $region29
    $region28: #{_forward.7} parent=1 // pred_region
      %590 = dma.done [#allocation3], 512
    $region29: #{_forward.7} parent=1 // pred_fallthru
      _
    // Predicated region
    $region30: #{_forward.7} parent=1 // pred_check
      _
    $region31: #{_forward.7} parent=1 // pred_check_branch
      %592 = sbr.rel (0) target = $region33
    $region32: #{_forward.7} parent=1 // pred_region
      %593 = dma.done [#allocation5], 16
    $region33: #{_forward.7} parent=1 // pred_fallthru
      _
    %594 = vsyncpa [#allocation3], 1
    %595 = vsyncpa [#allocation5], 1

</llo_original>
